<compile_context>
chip_gen: v7x
topology: tpu7x:2x2x1
jax: 0.10.0
libtpu: 0.0.40
codegen_flags: <defaults>
</compile_context>

<pallas_src>
import numpy as np

import jax
import jax.numpy as jnp
from jax import lax
from jax.experimental import pallas as pl
from jax.experimental.pallas import tpu as pltpu

_BT = 8  # batch tile; a multiple of 8 keeps every leading-dim reshape tile-aligned


# ---------------------------------------------------------------------------
# Host-side (trace-time) weight re-layouts
# ---------------------------------------------------------------------------
def _build_conv1_toeplitz(w1):
    """w1: (6, C, 5, 5) torch OIHW -> (5, 32*C, 28*6) block-Toeplitz matrices.

    T[kh, iw*C + c, ow*6 + o] = w1[o, c, kh, iw - ow] if 0 <= iw - ow <= 4 else 0
    (iw indexes the zero-padded 32-wide input row, ow the 28-wide output row).
    """
    c_in = w1.shape[1]
    kh, iw, c, ow, o = np.meshgrid(np.arange(5), np.arange(32), np.arange(c_in),
                                   np.arange(28), np.arange(6), indexing="ij")
    kw = iw - ow
    valid = (kw >= 0) & (kw <= 4)
    vals = jnp.where(valid, w1[o, c, kh, np.clip(kw, 0, 4)], 0.0)
    return vals.reshape(5, 32 * c_in, 28 * 6).astype(jnp.float32)


def _build_conv2_toeplitz(w2):
    """w2: (16, 6, 5, 5) -> (5, 27*6, 10*16).

    Rows index the width-pooled-but-spread conv1 columns (iw in 0..26, c in 0..5);
    only even iw (= 2*pw) carries a real pooled value, odd iw rows are zeroed so
    the junk lanes left by the spread width-pool contribute nothing.
    """
    kh, iw, c, ow, o = np.meshgrid(np.arange(5), np.arange(27), np.arange(6),
                                   np.arange(10), np.arange(16), indexing="ij")
    pw = iw // 2
    kw = pw - ow
    valid = (iw % 2 == 0) & (kw >= 0) & (kw <= 4)
    vals = jnp.where(valid, w2[o, c, kh, np.clip(kw, 0, 4)], 0.0)
    return vals.reshape(5, 27 * 6, 10 * 16).astype(jnp.float32)


def _build_fc1_weight(fc1_w):
    """fc1_w: (120, 400) torch (out, in) with NCHW flatten order (o, qh, qw).

    Returns (5, 9*16, 120): per pooled output row qh, a matrix over the
    width-pooled-but-spread conv2 columns (ow in 0..8, o in 0..15); odd ow rows
    (junk lanes) are zeroed, and the torch flatten permutation is folded in.
    """
    qh, ow, o, j = np.meshgrid(np.arange(5), np.arange(9), np.arange(16),
                               np.arange(120), indexing="ij")
    qw = ow // 2
    valid = (ow % 2 == 0)
    vals = jnp.where(valid, fc1_w[j, o * 25 + qh * 5 + qw], 0.0)
    return vals.reshape(5, 9 * 16, 120).astype(jnp.float32)


# ---------------------------------------------------------------------------
# Fused forward kernel (Bt images per grid step)
# ---------------------------------------------------------------------------
def _fused_kernel(x_ref, w1t_ref, b1_ref, w2t_ref, b2_ref,
                  wf1_ref, bf1_ref, wf2_ref, bf2_ref, out_ref):
    bt = x_ref.shape[1]          # batch tile
    c32 = x_ref.shape[2]         # 32 * in_channels
    f1 = w1t_ref.shape[2]        # 168 = 28 * 6
    f2 = w2t_ref.shape[2]        # 160 = 10 * 16

    xv = x_ref[...]              # (32, bt, 32*C), rows = padded input height

    # ---- conv1 (5x5, pad 2) as 5 Toeplitz matmuls: M = 28*bt, K = 32C, N = 168
    y1 = jnp.zeros((28 * bt, f1), jnp.float32)
    for kh in range(5):
        lhs = xv[kh:kh + 28].reshape(28 * bt, c32)          # tile-aligned merge
        y1 = y1 + jnp.dot(lhs, w1t_ref[kh], preferred_element_type=jnp.float32)
    y1 = jnp.maximum(y1 + b1_ref[...], 0.0)                 # bias + relu (torch order)

    # ---- 2x2 max-pool: width pairs via shifted lane slices (odd lanes become
    # junk and are zero-weighted in w2t); height pairs via leading-dim reshape.
    p1 = jnp.maximum(y1[:, :-6], y1[:, 6:])                 # (28*bt, 162)
    p1 = p1.reshape(14, 2, bt, f1 - 6)
    p1 = jnp.maximum(p1[:, 0], p1[:, 1])                    # (14, bt, 162)

    # ---- conv2 (5x5, valid): M = 10*bt, K = 162, N = 160
    y2 = jnp.zeros((10 * bt, f2), jnp.float32)
    for kh in range(5):
        lhs = p1[kh:kh + 10].reshape(10 * bt, f1 - 6)
        y2 = y2 + jnp.dot(lhs, w2t_ref[kh], preferred_element_type=jnp.float32)
    y2 = jnp.maximum(y2 + b2_ref[...], 0.0)

    p2 = jnp.maximum(y2[:, :-16], y2[:, 16:])               # (10*bt, 144)
    p2 = p2.reshape(5, 2, bt, f2 - 16)
    p2 = jnp.maximum(p2[:, 0], p2[:, 1])                    # (5, bt, 144)

    # ---- fc1 (+relu): pool compaction + NCHW flatten folded into wf1 slices
    h = jnp.zeros((bt, wf1_ref.shape[2]), jnp.float32)
    for qh in range(5):
        h = h + jnp.dot(p2[qh], wf1_ref[qh], preferred_element_type=jnp.float32)
    h = jnp.maximum(h + bf1_ref[...], 0.0)

    # ---- fc2 (num_classes zero-padded to a full 128-lane tile -> dense store)
    out_ref[...] = (jnp.dot(h, wf2_ref[...], preferred_element_type=jnp.float32)
                    + bf2_ref[...])


# ---------------------------------------------------------------------------
# Host wrapper: layout prep (one-off, tiny) + single fused pallas_call
# ---------------------------------------------------------------------------
def parallel_net_forward(x, params, *, bt=_BT):
    """x: (B, in_channels, 28, 28) float32 NCHW -> (B, num_classes)."""
    B, C, H, W = x.shape
    assert (H, W) == (28, 28), "fc1 expects 16*5*5 features -> 28x28 input"
    assert bt % 8 == 0
    nc = params["fc2_b"].shape[0]
    nc_pad = 128                                            # lane-dense output

    # Pad batch to a multiple of the batch tile, zero-pad spatially (conv pad=2),
    # and lay the input out as (h, batch, w*chan) so matmul M dims are batch*h.
    b_pad = (-B) % bt
    bp = B + b_pad
    xq = jnp.pad(x.astype(jnp.float32),
                 ((0, b_pad), (0, 0), (2, 2), (2, 2)))      # (Bp, C, 32, 32)
    x_r = jnp.transpose(xq, (2, 0, 3, 1)).reshape(32, bp, 32 * C)

    w1t = _build_conv1_toeplitz(params["conv1_w"])          # (5, 32C, 168)
    b1r = jnp.tile(params["conv1_b"], 28)[None, :]          # (1, 168)
    w2t = _build_conv2_toeplitz(params["conv2_w"])          # (5, 162, 160)
    b2r = jnp.tile(params["conv2_b"], 10)[None, :]          # (1, 160)
    wf1 = _build_fc1_weight(params["fc1_w"])                # (5, 144, 120)
    bf1 = params["fc1_b"][None, :]                          # (1, 120)
    wf2 = jnp.zeros((120, nc_pad), jnp.float32).at[:, :nc].set(params["fc2_w"].T)
    bf2 = jnp.zeros((1, nc_pad), jnp.float32).at[0, :nc].set(params["fc2_b"])

    steps = bp // bt
    macs_per_step = (28 * bt * (32 * C) * 168 * 5
                     + 10 * bt * 162 * 160 * 5
                     + bt * 144 * 120 * 5
                     + bt * 120 * nc_pad)
    bytes_accessed = 4 * (x_r.size + w1t.size + b1r.size + w2t.size + b2r.size
                          + wf1.size + bf1.size + wf2.size + bf2.size
                          + bp * nc_pad)

    out = pl.pallas_call(
        _fused_kernel,
        out_shape=jax.ShapeDtypeStruct((bp, nc_pad), jnp.float32),
        grid=(steps,),
        in_specs=[
            pl.BlockSpec((32, bt, 32 * C), lambda i: (0, i, 0)),
            pl.BlockSpec((5, 32 * C, 168), lambda i: (0, 0, 0)),
            pl.BlockSpec((1, 168), lambda i: (0, 0)),
            pl.BlockSpec((5, 162, 160), lambda i: (0, 0, 0)),
            pl.BlockSpec((1, 160), lambda i: (0, 0)),
            pl.BlockSpec((5, 144, 120), lambda i: (0, 0, 0)),
            pl.BlockSpec((1, 120), lambda i: (0, 0)),
            pl.BlockSpec((120, nc_pad), lambda i: (0, 0)),
            pl.BlockSpec((1, nc_pad), lambda i: (0, 0)),
        ],
        out_specs=pl.BlockSpec((bt, nc_pad), lambda i: (i, 0)),
        compiler_params=pltpu.CompilerParams(
            dimension_semantics=("parallel",),   # v7x: batch tiles across 2 TCs
            vmem_limit_bytes=32 * 1024 * 1024,   # far above footprint, safe on v7x
        ),
        cost_estimate=pl.CostEstimate(flops=2 * steps * macs_per_step,
                                      transcendentals=0,
                                      bytes_accessed=int(bytes_accessed)),
    )(x_r, w1t, b1r, w2t, b2r, wf1, bf1, wf2, bf2)
    return out[:B, :nc]


# ---------------------------------------------------------------------------
# Params (PyTorch layouts + PyTorch-style uniform(-1/sqrt(fan_in)) init)
# ---------------------------------------------------------------------------
def init_params(key, in_channels=1, num_classes=10):
    ks = jax.random.split(key, 8)

    def u(k, shape, fan_in):
        bound = 1.0 / jnp.sqrt(jnp.float32(fan_in))
        return jax.random.uniform(k, shape, jnp.float32, -bound, bound)

    return {
        "conv1_w": u(ks[0], (6, in_channels, 5, 5), in_channels * 25),
        "conv1_b": u(ks[1], (6,), in_channels * 25),
        "conv2_w": u(ks[2], (16, 6, 5, 5), 6 * 25),
        "conv2_b": u(ks[3], (16,), 6 * 25),
        "fc1_w": u(ks[4], (120, 400), 400),       # torch nn.Linear: (out, in)
        "fc1_b": u(ks[5], (120,), 400),
        "fc2_w": u(ks[6], (num_classes, 120), 120),
        "fc2_b": u(ks[7], (num_classes,), 120),
    }


# Pure-JAX reference (exact PyTorch semantics) for the sanity check.
def _reference_forward(x, params):
    dn1 = lax.conv_dimension_numbers(x.shape, params["conv1_w"].shape,
                                     ("NCHW", "OIHW", "NCHW"))
    h = lax.conv_general_dilated(x, params["conv1_w"], (1, 1),
                                 [(2, 2), (2, 2)], dimension_numbers=dn1)
    h = jax.nn.relu(h + params["conv1_b"][None, :, None, None])
    h = lax.reduce_window(h, -jnp.inf, lax.max, (1, 1, 2, 2), (1, 1, 2, 2), "VALID")
    dn2 = lax.conv_dimension_numbers(h.shape, params["conv2_w"].shape,
                                     ("NCHW", "OIHW", "NCHW"))
    h = lax.conv_general_dilated(h, params["conv2_w"], (1, 1),
                                 [(0, 0), (0, 0)], dimension_numbers=dn2)
    h = jax.nn.relu(h + params["conv2_b"][None, :, None, None])
    h = lax.reduce_window(h, -jnp.inf, lax.max, (1, 1, 2, 2), (1, 1, 2, 2), "VALID")
    h = h.reshape(h.shape[0], -1)
    h = jax.nn.relu(h @ params["fc1_w"].T + params["fc1_b"])
    return h @ params["fc2_w"].T + params["fc2_b"]


if __name__ == "__main__":
    key = jax.random.PRNGKey(0)
    kx, kp = jax.random.split(key)
    B, C, NC = 16, 1, 10                       # grid = B/_BT = 2 steps
    x = jax.random.normal(kx, (B, C, 28, 28), jnp.float32)
    params = init_params(kp, in_channels=C, num_classes=NC)

    fwd = jax.jit(parallel_net_forward)
    out = fwd(x, params)
    jax.block_until_ready(out)
    assert out.shape == (B, NC) and out.dtype == jnp.float32

    ref = jax.jit(_reference_forward)(x, params)
    jax.block_until_ready(ref)
    max_err = float(jnp.max(jnp.abs(out - ref)))
    # All-f32 path (MXU f32 matmuls match XLA convs to ~1e-5); 1e-3 leaves margin
    # while still catching any layout / permutation bug.
    assert max_err < 1e-3, f"mismatch vs reference: {max_err}"

    print("KERNEL_OK")
</pallas_src>

<mosaic_0001>
module attributes {stable_mosaic.version = 11 : i64} {
  func.func private @main(%arg0: i32) attributes {dimension_semantics = [#tpu.dimension_semantics<core_parallel>], iteration_bounds = array<i64: 2>, tpu.core_type = #tpu.core_type<sc_scalar_subcore>, window_params = []} {
    return
  }
}

module attributes {stable_mosaic.version = 11 : i64} {
  func.func private @main(%arg0: i32) attributes {dimension_semantics = [#tpu.dimension_semantics<core_parallel>], iteration_bounds = array<i64: 2>, tpu.core_type = #tpu.core_type<sc_scalar_subcore>, window_params = []} {
    return
  }
}

module attributes {stable_mosaic.version = 11 : i64} {
  func.func @_fused_kernel(%arg0: i32, %arg1: memref<32x8x32xf32, #tpu.memory_space<vmem>>, %arg2: memref<5x32x168xf32, #tpu.memory_space<vmem>>, %arg3: memref<1x168xf32, #tpu.memory_space<vmem>>, %arg4: memref<5x162x160xf32, #tpu.memory_space<vmem>>, %arg5: memref<1x160xf32, #tpu.memory_space<vmem>>, %arg6: memref<5x144x120xf32, #tpu.memory_space<vmem>>, %arg7: memref<1x120xf32, #tpu.memory_space<vmem>>, %arg8: memref<120x128xf32, #tpu.memory_space<vmem>>, %arg9: memref<1x128xf32, #tpu.memory_space<vmem>>, %arg10: memref<8x128xf32, #tpu.memory_space<vmem>>) attributes {dimension_semantics = [#tpu.dimension_semantics<parallel>], iteration_bounds = array<i64: 2>, scalar_prefetch = 0 : i64, scratch_operands = 0 : i64, tpu.core_type = #tpu.core_type<tc>, window_params = [{transform_indices = @transform_0, window_bounds = array<i64: 32, 8, 32>}, {pipeline_mode = #tpu.pipeline_mode<synchronous>, transform_indices = @transform_1, window_bounds = array<i64: 5, 32, 168>}, {pipeline_mode = #tpu.pipeline_mode<synchronous>, transform_indices = @transform_2, window_bounds = array<i64: 1, 168>}, {pipeline_mode = #tpu.pipeline_mode<synchronous>, transform_indices = @transform_3, window_bounds = array<i64: 5, 162, 160>}, {pipeline_mode = #tpu.pipeline_mode<synchronous>, transform_indices = @transform_4, window_bounds = array<i64: 1, 160>}, {pipeline_mode = #tpu.pipeline_mode<synchronous>, transform_indices = @transform_5, window_bounds = array<i64: 5, 144, 120>}, {pipeline_mode = #tpu.pipeline_mode<synchronous>, transform_indices = @transform_6, window_bounds = array<i64: 1, 120>}, {pipeline_mode = #tpu.pipeline_mode<synchronous>, transform_indices = @transform_7, window_bounds = array<i64: 120, 128>}, {pipeline_mode = #tpu.pipeline_mode<synchronous>, transform_indices = @transform_8, window_bounds = array<i64: 1, 128>}, {transform_indices = @transform_9, window_bounds = array<i64: 8, 128>}]} {
    %c0 = arith.constant 0 : index
    %c0_0 = arith.constant 0 : index
    %c0_1 = arith.constant 0 : index
    %0 = vector.load %arg1[%c0, %c0_0, %c0_1] : memref<32x8x32xf32, #tpu.memory_space<vmem>>, vector<32x8x32xf32>
    %cst = arith.constant 0.000000e+00 : f32
    %1 = vector.broadcast %cst : f32 to vector<224x168xf32>
    %2 = vector.extract_strided_slice %0 {offsets = [0, 0, 0], sizes = [28, 8, 32], strides = [1, 1, 1]} : vector<32x8x32xf32> to vector<28x8x32xf32>
    %3 = vector.shape_cast %2 : vector<28x8x32xf32> to vector<224x32xf32>
    %c0_2 = arith.constant 0 : index
    %c0_3 = arith.constant 0 : index
    %c0_4 = arith.constant 0 : index
    %4 = vector.load %arg2[%c0_2, %c0_3, %c0_4] : memref<5x32x168xf32, #tpu.memory_space<vmem>>, vector<1x32x168xf32>
    %5 = vector.shape_cast %4 : vector<1x32x168xf32> to vector<32x168xf32>
    %cst_5 = arith.constant dense<0.000000e+00> : vector<224x168xf32>
    %6 = tpu.matmul %3, %5, %cst_5 {dimension_numbers = #tpu.dot_dimension_numbers<[1], [0], [0], [1], [0, 0, 1, 1], [], []>} : vector<224x32xf32>, vector<32x168xf32>, vector<224x168xf32> -> vector<224x168xf32>
    %7 = arith.addf %1, %6 : vector<224x168xf32>
    %8 = vector.extract_strided_slice %0 {offsets = [1, 0, 0], sizes = [28, 8, 32], strides = [1, 1, 1]} : vector<32x8x32xf32> to vector<28x8x32xf32>
    %9 = vector.shape_cast %8 : vector<28x8x32xf32> to vector<224x32xf32>
    %c1 = arith.constant 1 : index
    %c0_6 = arith.constant 0 : index
    %c0_7 = arith.constant 0 : index
    %10 = vector.load %arg2[%c1, %c0_6, %c0_7] : memref<5x32x168xf32, #tpu.memory_space<vmem>>, vector<1x32x168xf32>
    %11 = vector.shape_cast %10 : vector<1x32x168xf32> to vector<32x168xf32>
    %cst_8 = arith.constant dense<0.000000e+00> : vector<224x168xf32>
    %12 = tpu.matmul %9, %11, %cst_8 {dimension_numbers = #tpu.dot_dimension_numbers<[1], [0], [0], [1], [0, 0, 1, 1], [], []>} : vector<224x32xf32>, vector<32x168xf32>, vector<224x168xf32> -> vector<224x168xf32>
    %13 = arith.addf %7, %12 : vector<224x168xf32>
    %14 = vector.extract_strided_slice %0 {offsets = [2, 0, 0], sizes = [28, 8, 32], strides = [1, 1, 1]} : vector<32x8x32xf32> to vector<28x8x32xf32>
    %15 = vector.shape_cast %14 : vector<28x8x32xf32> to vector<224x32xf32>
    %c2 = arith.constant 2 : index
    %c0_9 = arith.constant 0 : index
    %c0_10 = arith.constant 0 : index
    %16 = vector.load %arg2[%c2, %c0_9, %c0_10] : memref<5x32x168xf32, #tpu.memory_space<vmem>>, vector<1x32x168xf32>
    %17 = vector.shape_cast %16 : vector<1x32x168xf32> to vector<32x168xf32>
    %cst_11 = arith.constant dense<0.000000e+00> : vector<224x168xf32>
    %18 = tpu.matmul %15, %17, %cst_11 {dimension_numbers = #tpu.dot_dimension_numbers<[1], [0], [0], [1], [0, 0, 1, 1], [], []>} : vector<224x32xf32>, vector<32x168xf32>, vector<224x168xf32> -> vector<224x168xf32>
    %19 = arith.addf %13, %18 : vector<224x168xf32>
    %20 = vector.extract_strided_slice %0 {offsets = [3, 0, 0], sizes = [28, 8, 32], strides = [1, 1, 1]} : vector<32x8x32xf32> to vector<28x8x32xf32>
    %21 = vector.shape_cast %20 : vector<28x8x32xf32> to vector<224x32xf32>
    %c3 = arith.constant 3 : index
    %c0_12 = arith.constant 0 : index
    %c0_13 = arith.constant 0 : index
    %22 = vector.load %arg2[%c3, %c0_12, %c0_13] : memref<5x32x168xf32, #tpu.memory_space<vmem>>, vector<1x32x168xf32>
    %23 = vector.shape_cast %22 : vector<1x32x168xf32> to vector<32x168xf32>
    %cst_14 = arith.constant dense<0.000000e+00> : vector<224x168xf32>
    %24 = tpu.matmul %21, %23, %cst_14 {dimension_numbers = #tpu.dot_dimension_numbers<[1], [0], [0], [1], [0, 0, 1, 1], [], []>} : vector<224x32xf32>, vector<32x168xf32>, vector<224x168xf32> -> vector<224x168xf32>
    %25 = arith.addf %19, %24 : vector<224x168xf32>
    %26 = vector.extract_strided_slice %0 {offsets = [4, 0, 0], sizes = [28, 8, 32], strides = [1, 1, 1]} : vector<32x8x32xf32> to vector<28x8x32xf32>
    %27 = vector.shape_cast %26 : vector<28x8x32xf32> to vector<224x32xf32>
    %c4 = arith.constant 4 : index
    %c0_15 = arith.constant 0 : index
    %c0_16 = arith.constant 0 : index
    %28 = vector.load %arg2[%c4, %c0_15, %c0_16] : memref<5x32x168xf32, #tpu.memory_space<vmem>>, vector<1x32x168xf32>
    %29 = vector.shape_cast %28 : vector<1x32x168xf32> to vector<32x168xf32>
    %cst_17 = arith.constant dense<0.000000e+00> : vector<224x168xf32>
    %30 = tpu.matmul %27, %29, %cst_17 {dimension_numbers = #tpu.dot_dimension_numbers<[1], [0], [0], [1], [0, 0, 1, 1], [], []>} : vector<224x32xf32>, vector<32x168xf32>, vector<224x168xf32> -> vector<224x168xf32>
    %31 = arith.addf %25, %30 : vector<224x168xf32>
    %c0_18 = arith.constant 0 : index
    %c0_19 = arith.constant 0 : index
    %32 = vector.load %arg3[%c0_18, %c0_19] : memref<1x168xf32, #tpu.memory_space<vmem>>, vector<1x168xf32>
    %33 = vector.broadcast %32 : vector<1x168xf32> to vector<224x168xf32>
    %34 = arith.addf %31, %33 : vector<224x168xf32>
    %cst_20 = arith.constant 0.000000e+00 : f32
    %35 = vector.broadcast %cst_20 : f32 to vector<224x168xf32>
    %36 = arith.maximumf %34, %35 : vector<224x168xf32>
    %37 = vector.extract_strided_slice %36 {offsets = [0, 0], sizes = [224, 162], strides = [1, 1]} : vector<224x168xf32> to vector<224x162xf32>
    %38 = vector.extract_strided_slice %36 {offsets = [0, 6], sizes = [224, 162], strides = [1, 1]} : vector<224x168xf32> to vector<224x162xf32>
    %39 = arith.maximumf %37, %38 : vector<224x162xf32>
    %40 = vector.shape_cast %39 : vector<224x162xf32> to vector<14x2x8x162xf32>
    %41 = vector.extract_strided_slice %40 {offsets = [0, 0, 0, 0], sizes = [14, 1, 8, 162], strides = [1, 1, 1, 1]} : vector<14x2x8x162xf32> to vector<14x1x8x162xf32>
    %42 = vector.shape_cast %41 : vector<14x1x8x162xf32> to vector<14x8x162xf32>
    %43 = vector.extract_strided_slice %40 {offsets = [0, 1, 0, 0], sizes = [14, 1, 8, 162], strides = [1, 1, 1, 1]} : vector<14x2x8x162xf32> to vector<14x1x8x162xf32>
    %44 = vector.shape_cast %43 : vector<14x1x8x162xf32> to vector<14x8x162xf32>
    %45 = arith.maximumf %42, %44 : vector<14x8x162xf32>
    %cst_21 = arith.constant 0.000000e+00 : f32
    %46 = vector.broadcast %cst_21 : f32 to vector<80x160xf32>
    %47 = vector.extract_strided_slice %45 {offsets = [0, 0, 0], sizes = [10, 8, 162], strides = [1, 1, 1]} : vector<14x8x162xf32> to vector<10x8x162xf32>
    %48 = vector.shape_cast %47 : vector<10x8x162xf32> to vector<80x162xf32>
    %c0_22 = arith.constant 0 : index
    %c0_23 = arith.constant 0 : index
    %c0_24 = arith.constant 0 : index
    %49 = vector.load %arg4[%c0_22, %c0_23, %c0_24] : memref<5x162x160xf32, #tpu.memory_space<vmem>>, vector<1x162x160xf32>
    %50 = vector.shape_cast %49 : vector<1x162x160xf32> to vector<162x160xf32>
    %cst_25 = arith.constant dense<0.000000e+00> : vector<80x160xf32>
    %51 = tpu.matmul %48, %50, %cst_25 {dimension_numbers = #tpu.dot_dimension_numbers<[1], [0], [0], [1], [0, 0, 1, 1], [], []>} : vector<80x162xf32>, vector<162x160xf32>, vector<80x160xf32> -> vector<80x160xf32>
    %52 = arith.addf %46, %51 : vector<80x160xf32>
    %53 = vector.extract_strided_slice %45 {offsets = [1, 0, 0], sizes = [10, 8, 162], strides = [1, 1, 1]} : vector<14x8x162xf32> to vector<10x8x162xf32>
    %54 = vector.shape_cast %53 : vector<10x8x162xf32> to vector<80x162xf32>
    %c1_26 = arith.constant 1 : index
    %c0_27 = arith.constant 0 : index
    %c0_28 = arith.constant 0 : index
    %55 = vector.load %arg4[%c1_26, %c0_27, %c0_28] : memref<5x162x160xf32, #tpu.memory_space<vmem>>, vector<1x162x160xf32>
    %56 = vector.shape_cast %55 : vector<1x162x160xf32> to vector<162x160xf32>
    %cst_29 = arith.constant dense<0.000000e+00> : vector<80x160xf32>
    %57 = tpu.matmul %54, %56, %cst_29 {dimension_numbers = #tpu.dot_dimension_numbers<[1], [0], [0], [1], [0, 0, 1, 1], [], []>} : vector<80x162xf32>, vector<162x160xf32>, vector<80x160xf32> -> vector<80x160xf32>
    %58 = arith.addf %52, %57 : vector<80x160xf32>
    %59 = vector.extract_strided_slice %45 {offsets = [2, 0, 0], sizes = [10, 8, 162], strides = [1, 1, 1]} : vector<14x8x162xf32> to vector<10x8x162xf32>
    %60 = vector.shape_cast %59 : vector<10x8x162xf32> to vector<80x162xf32>
    %c2_30 = arith.constant 2 : index
    %c0_31 = arith.constant 0 : index
    %c0_32 = arith.constant 0 : index
    %61 = vector.load %arg4[%c2_30, %c0_31, %c0_32] : memref<5x162x160xf32, #tpu.memory_space<vmem>>, vector<1x162x160xf32>
    %62 = vector.shape_cast %61 : vector<1x162x160xf32> to vector<162x160xf32>
    %cst_33 = arith.constant dense<0.000000e+00> : vector<80x160xf32>
    %63 = tpu.matmul %60, %62, %cst_33 {dimension_numbers = #tpu.dot_dimension_numbers<[1], [0], [0], [1], [0, 0, 1, 1], [], []>} : vector<80x162xf32>, vector<162x160xf32>, vector<80x160xf32> -> vector<80x160xf32>
    %64 = arith.addf %58, %63 : vector<80x160xf32>
    %65 = vector.extract_strided_slice %45 {offsets = [3, 0, 0], sizes = [10, 8, 162], strides = [1, 1, 1]} : vector<14x8x162xf32> to vector<10x8x162xf32>
    %66 = vector.shape_cast %65 : vector<10x8x162xf32> to vector<80x162xf32>
    %c3_34 = arith.constant 3 : index
    %c0_35 = arith.constant 0 : index
    %c0_36 = arith.constant 0 : index
    %67 = vector.load %arg4[%c3_34, %c0_35, %c0_36] : memref<5x162x160xf32, #tpu.memory_space<vmem>>, vector<1x162x160xf32>
    %68 = vector.shape_cast %67 : vector<1x162x160xf32> to vector<162x160xf32>
    %cst_37 = arith.constant dense<0.000000e+00> : vector<80x160xf32>
    %69 = tpu.matmul %66, %68, %cst_37 {dimension_numbers = #tpu.dot_dimension_numbers<[1], [0], [0], [1], [0, 0, 1, 1], [], []>} : vector<80x162xf32>, vector<162x160xf32>, vector<80x160xf32> -> vector<80x160xf32>
    %70 = arith.addf %64, %69 : vector<80x160xf32>
    %71 = vector.extract_strided_slice %45 {offsets = [4, 0, 0], sizes = [10, 8, 162], strides = [1, 1, 1]} : vector<14x8x162xf32> to vector<10x8x162xf32>
    %72 = vector.shape_cast %71 : vector<10x8x162xf32> to vector<80x162xf32>
    %c4_38 = arith.constant 4 : index
    %c0_39 = arith.constant 0 : index
    %c0_40 = arith.constant 0 : index
    %73 = vector.load %arg4[%c4_38, %c0_39, %c0_40] : memref<5x162x160xf32, #tpu.memory_space<vmem>>, vector<1x162x160xf32>
    %74 = vector.shape_cast %73 : vector<1x162x160xf32> to vector<162x160xf32>
    %cst_41 = arith.constant dense<0.000000e+00> : vector<80x160xf32>
    %75 = tpu.matmul %72, %74, %cst_41 {dimension_numbers = #tpu.dot_dimension_numbers<[1], [0], [0], [1], [0, 0, 1, 1], [], []>} : vector<80x162xf32>, vector<162x160xf32>, vector<80x160xf32> -> vector<80x160xf32>
    %76 = arith.addf %70, %75 : vector<80x160xf32>
    %c0_42 = arith.constant 0 : index
    %c0_43 = arith.constant 0 : index
    %77 = vector.load %arg5[%c0_42, %c0_43] : memref<1x160xf32, #tpu.memory_space<vmem>>, vector<1x160xf32>
    %78 = vector.broadcast %77 : vector<1x160xf32> to vector<80x160xf32>
    %79 = arith.addf %76, %78 : vector<80x160xf32>
    %cst_44 = arith.constant 0.000000e+00 : f32
    %80 = vector.broadcast %cst_44 : f32 to vector<80x160xf32>
    %81 = arith.maximumf %79, %80 : vector<80x160xf32>
    %82 = vector.extract_strided_slice %81 {offsets = [0, 0], sizes = [80, 144], strides = [1, 1]} : vector<80x160xf32> to vector<80x144xf32>
    %83 = vector.extract_strided_slice %81 {offsets = [0, 16], sizes = [80, 144], strides = [1, 1]} : vector<80x160xf32> to vector<80x144xf32>
    %84 = arith.maximumf %82, %83 : vector<80x144xf32>
    %85 = vector.shape_cast %84 : vector<80x144xf32> to vector<5x2x8x144xf32>
    %86 = vector.extract_strided_slice %85 {offsets = [0, 0, 0, 0], sizes = [5, 1, 8, 144], strides = [1, 1, 1, 1]} : vector<5x2x8x144xf32> to vector<5x1x8x144xf32>
    %87 = vector.shape_cast %86 : vector<5x1x8x144xf32> to vector<5x8x144xf32>
    %88 = vector.extract_strided_slice %85 {offsets = [0, 1, 0, 0], sizes = [5, 1, 8, 144], strides = [1, 1, 1, 1]} : vector<5x2x8x144xf32> to vector<5x1x8x144xf32>
    %89 = vector.shape_cast %88 : vector<5x1x8x144xf32> to vector<5x8x144xf32>
    %90 = arith.maximumf %87, %89 : vector<5x8x144xf32>
    %cst_45 = arith.constant 0.000000e+00 : f32
    %91 = vector.broadcast %cst_45 : f32 to vector<8x120xf32>
    %92 = vector.extract_strided_slice %90 {offsets = [0, 0, 0], sizes = [1, 8, 144], strides = [1, 1, 1]} : vector<5x8x144xf32> to vector<1x8x144xf32>
    %93 = vector.shape_cast %92 : vector<1x8x144xf32> to vector<8x144xf32>
    %c0_46 = arith.constant 0 : index
    %c0_47 = arith.constant 0 : index
    %c0_48 = arith.constant 0 : index
    %94 = vector.load %arg6[%c0_46, %c0_47, %c0_48] : memref<5x144x120xf32, #tpu.memory_space<vmem>>, vector<1x144x120xf32>
    %95 = vector.shape_cast %94 : vector<1x144x120xf32> to vector<144x120xf32>
    %cst_49 = arith.constant dense<0.000000e+00> : vector<8x120xf32>
    %96 = tpu.matmul %93, %95, %cst_49 {dimension_numbers = #tpu.dot_dimension_numbers<[1], [0], [0], [1], [0, 0, 1, 1], [], []>} : vector<8x144xf32>, vector<144x120xf32>, vector<8x120xf32> -> vector<8x120xf32>
    %97 = arith.addf %91, %96 : vector<8x120xf32>
    %98 = vector.extract_strided_slice %90 {offsets = [1, 0, 0], sizes = [1, 8, 144], strides = [1, 1, 1]} : vector<5x8x144xf32> to vector<1x8x144xf32>
    %99 = vector.shape_cast %98 : vector<1x8x144xf32> to vector<8x144xf32>
    %c1_50 = arith.constant 1 : index
    %c0_51 = arith.constant 0 : index
    %c0_52 = arith.constant 0 : index
    %100 = vector.load %arg6[%c1_50, %c0_51, %c0_52] : memref<5x144x120xf32, #tpu.memory_space<vmem>>, vector<1x144x120xf32>
    %101 = vector.shape_cast %100 : vector<1x144x120xf32> to vector<144x120xf32>
    %cst_53 = arith.constant dense<0.000000e+00> : vector<8x120xf32>
    %102 = tpu.matmul %99, %101, %cst_53 {dimension_numbers = #tpu.dot_dimension_numbers<[1], [0], [0], [1], [0, 0, 1, 1], [], []>} : vector<8x144xf32>, vector<144x120xf32>, vector<8x120xf32> -> vector<8x120xf32>
    %103 = arith.addf %97, %102 : vector<8x120xf32>
    %104 = vector.extract_strided_slice %90 {offsets = [2, 0, 0], sizes = [1, 8, 144], strides = [1, 1, 1]} : vector<5x8x144xf32> to vector<1x8x144xf32>
    %105 = vector.shape_cast %104 : vector<1x8x144xf32> to vector<8x144xf32>
    %c2_54 = arith.constant 2 : index
    %c0_55 = arith.constant 0 : index
    %c0_56 = arith.constant 0 : index
    %106 = vector.load %arg6[%c2_54, %c0_55, %c0_56] : memref<5x144x120xf32, #tpu.memory_space<vmem>>, vector<1x144x120xf32>
    %107 = vector.shape_cast %106 : vector<1x144x120xf32> to vector<144x120xf32>
    %cst_57 = arith.constant dense<0.000000e+00> : vector<8x120xf32>
    %108 = tpu.matmul %105, %107, %cst_57 {dimension_numbers = #tpu.dot_dimension_numbers<[1], [0], [0], [1], [0, 0, 1, 1], [], []>} : vector<8x144xf32>, vector<144x120xf32>, vector<8x120xf32> -> vector<8x120xf32>
    %109 = arith.addf %103, %108 : vector<8x120xf32>
    %110 = vector.extract_strided_slice %90 {offsets = [3, 0, 0], sizes = [1, 8, 144], strides = [1, 1, 1]} : vector<5x8x144xf32> to vector<1x8x144xf32>
    %111 = vector.shape_cast %110 : vector<1x8x144xf32> to vector<8x144xf32>
    %c3_58 = arith.constant 3 : index
    %c0_59 = arith.constant 0 : index
    %c0_60 = arith.constant 0 : index
    %112 = vector.load %arg6[%c3_58, %c0_59, %c0_60] : memref<5x144x120xf32, #tpu.memory_space<vmem>>, vector<1x144x120xf32>
    %113 = vector.shape_cast %112 : vector<1x144x120xf32> to vector<144x120xf32>
    %cst_61 = arith.constant dense<0.000000e+00> : vector<8x120xf32>
    %114 = tpu.matmul %111, %113, %cst_61 {dimension_numbers = #tpu.dot_dimension_numbers<[1], [0], [0], [1], [0, 0, 1, 1], [], []>} : vector<8x144xf32>, vector<144x120xf32>, vector<8x120xf32> -> vector<8x120xf32>
    %115 = arith.addf %109, %114 : vector<8x120xf32>
    %116 = vector.extract_strided_slice %90 {offsets = [4, 0, 0], sizes = [1, 8, 144], strides = [1, 1, 1]} : vector<5x8x144xf32> to vector<1x8x144xf32>
    %117 = vector.shape_cast %116 : vector<1x8x144xf32> to vector<8x144xf32>
    %c4_62 = arith.constant 4 : index
    %c0_63 = arith.constant 0 : index
    %c0_64 = arith.constant 0 : index
    %118 = vector.load %arg6[%c4_62, %c0_63, %c0_64] : memref<5x144x120xf32, #tpu.memory_space<vmem>>, vector<1x144x120xf32>
    %119 = vector.shape_cast %118 : vector<1x144x120xf32> to vector<144x120xf32>
    %cst_65 = arith.constant dense<0.000000e+00> : vector<8x120xf32>
    %120 = tpu.matmul %117, %119, %cst_65 {dimension_numbers = #tpu.dot_dimension_numbers<[1], [0], [0], [1], [0, 0, 1, 1], [], []>} : vector<8x144xf32>, vector<144x120xf32>, vector<8x120xf32> -> vector<8x120xf32>
    %121 = arith.addf %115, %120 : vector<8x120xf32>
    %c0_66 = arith.constant 0 : index
    %c0_67 = arith.constant 0 : index
    %122 = vector.load %arg7[%c0_66, %c0_67] : memref<1x120xf32, #tpu.memory_space<vmem>>, vector<1x120xf32>
    %123 = vector.broadcast %122 : vector<1x120xf32> to vector<8x120xf32>
    %124 = arith.addf %121, %123 : vector<8x120xf32>
    %cst_68 = arith.constant 0.000000e+00 : f32
    %125 = vector.broadcast %cst_68 : f32 to vector<8x120xf32>
    %126 = arith.maximumf %124, %125 : vector<8x120xf32>
    %c0_69 = arith.constant 0 : index
    %c0_70 = arith.constant 0 : index
    %127 = vector.load %arg8[%c0_69, %c0_70] : memref<120x128xf32, #tpu.memory_space<vmem>>, vector<120x128xf32>
    %cst_71 = arith.constant dense<0.000000e+00> : vector<8x128xf32>
    %128 = tpu.matmul %126, %127, %cst_71 {dimension_numbers = #tpu.dot_dimension_numbers<[1], [0], [0], [1], [0, 0, 1, 1], [], []>} : vector<8x120xf32>, vector<120x128xf32>, vector<8x128xf32> -> vector<8x128xf32>
    %c0_72 = arith.constant 0 : index
    %c0_73 = arith.constant 0 : index
    %129 = vector.load %arg9[%c0_72, %c0_73] : memref<1x128xf32, #tpu.memory_space<vmem>>, vector<1x128xf32>
    %130 = vector.broadcast %129 : vector<1x128xf32> to vector<8x128xf32>
    %131 = arith.addf %128, %130 : vector<8x128xf32>
    %c0_74 = arith.constant 0 : index
    %c0_75 = arith.constant 0 : index
    %132 = vector.load %arg10[%c0_74, %c0_75] : memref<8x128xf32, #tpu.memory_space<vmem>>, vector<8x128xf32>
    tpu.vector_store %arg10[%c0_74, %c0_75], %131 {strides = array<i32>} : memref<8x128xf32, #tpu.memory_space<vmem>>, vector<8x128xf32>,
    return
  }
  func.func @transform_0(%arg0: i32) -> (i32, i32, i32) {
    %c0_i32 = arith.constant 0 : i32
    %c0_i32_0 = arith.constant 0 : i32
    %c0_i32_1 = arith.constant 0 : i32
    return %c0_i32, %arg0, %c0_i32_0 : i32, i32, i32
  }
  func.func @transform_1(%arg0: i32) -> (i32, i32, i32) {
    %c0_i32 = arith.constant 0 : i32
    %c0_i32_0 = arith.constant 0 : i32
    %c0_i32_1 = arith.constant 0 : i32
    %c0_i32_2 = arith.constant 0 : i32
    return %c0_i32, %c0_i32_0, %c0_i32_1 : i32, i32, i32
  }
  func.func @transform_2(%arg0: i32) -> (i32, i32) {
    %c0_i32 = arith.constant 0 : i32
    %c0_i32_0 = arith.constant 0 : i32
    %c0_i32_1 = arith.constant 0 : i32
    return %c0_i32, %c0_i32_0 : i32, i32
  }
  func.func @transform_3(%arg0: i32) -> (i32, i32, i32) {
    %c0_i32 = arith.constant 0 : i32
    %c0_i32_0 = arith.constant 0 : i32
    %c0_i32_1 = arith.constant 0 : i32
    %c0_i32_2 = arith.constant 0 : i32
    return %c0_i32, %c0_i32_0, %c0_i32_1 : i32, i32, i32
  }
  func.func @transform_4(%arg0: i32) -> (i32, i32) {
    %c0_i32 = arith.constant 0 : i32
    %c0_i32_0 = arith.constant 0 : i32
    %c0_i32_1 = arith.constant 0 : i32
    return %c0_i32, %c0_i32_0 : i32, i32
  }
  func.func @transform_5(%arg0: i32) -> (i32, i32, i32) {
    %c0_i32 = arith.constant 0 : i32
    %c0_i32_0 = arith.constant 0 : i32
    %c0_i32_1 = arith.constant 0 : i32
    %c0_i32_2 = arith.constant 0 : i32
    return %c0_i32, %c0_i32_0, %c0_i32_1 : i32, i32, i32
  }
  func.func @transform_6(%arg0: i32) -> (i32, i32) {
    %c0_i32 = arith.constant 0 : i32
    %c0_i32_0 = arith.constant 0 : i32
    %c0_i32_1 = arith.constant 0 : i32
    return %c0_i32, %c0_i32_0 : i32, i32
  }
  func.func @transform_7(%arg0: i32) -> (i32, i32) {
    %c0_i32 = arith.constant 0 : i32
    %c0_i32_0 = arith.constant 0 : i32
    %c0_i32_1 = arith.constant 0 : i32
    return %c0_i32, %c0_i32_0 : i32, i32
  }
  func.func @transform_8(%arg0: i32) -> (i32, i32) {
    %c0_i32 = arith.constant 0 : i32
    %c0_i32_0 = arith.constant 0 : i32
    %c0_i32_1 = arith.constant 0 : i32
    return %c0_i32, %c0_i32_0 : i32, i32
  }
  func.func @transform_9(%arg0: i32) -> (i32, i32) {
    %c0_i32 = arith.constant 0 : i32
    %c0_i32_0 = arith.constant 0 : i32
    return %arg0, %c0_i32 : i32, i32
  }
}

</mosaic_0001>

<llo_original>
// kernel: tile.13
$region0: #{tile.13}
  #allocation0 [shape = 's32[1]{0}', space=sflag, size = 0x4, scoped, tag = 'scoped memory for tile.13']
  %s0 = inlined_call_operand.vmem [shape: f32[6], index: 0, kind: input, shape index: {}]
  %s1 = inlined_call_operand.vmem [shape: f32[28,6], index: 1, kind: output, shape index: {}]
  // Predicated region
  $region2: #{tile.13} parent=0 // pred_check
    _
  $region3: #{tile.13} parent=0 // pred_check_branch
    %3 = sbr.rel (0) target = $region5
  $region4: #{tile.13} parent=0 // pred_region
    _
  $region5: #{tile.13} parent=0 // pred_fallthru
    _
  %v4 = vld [vmem:[%s0] ss:$0 sm:$0xff]
  %5 = vst [vmem:[%s1] sm:$0xff] %v4
  %s6 = scalar_lea.vmem %s1, 8
  %7 = vst [vmem:[%s6] sm:$0xff] %v4
  %s8 = scalar_lea.vmem %s1, 16
  %9 = vst [vmem:[%s8] sm:$0xff] %v4
  %s10 = scalar_lea.vmem %s1, 24
  %11 = vst [vmem:[%s10] sm:$0xff] %v4

// kernel: tile.14
$region0: #{tile.14}
  %s0 = inlined_call_operand.vmem [shape: f32[28,6], index: 0, kind: input, shape index: {}]
  %s1 = inlined_call_operand.vmem [shape: f32[1,168], index: 1, kind: output, shape index: {}]
  $region1: #{tile.14} parent=0
    #allocation0 [shape = 'u8[8192]{0}', space=vmem, size = 0x2000, scoped, tag = 'scoped mem for output reshape']
    %v2 = vld [vmem:[%s0] sm:$0x1]
    %vm3 = vcmask 48128
    %4 = vst.msk [vmem:[#allocation0] sm:$0x1] %vm3, %v2
    %s5 = scalar_lea.vmem %s0, 21
    %v6 = vld [vmem:[%s5] sm:$0x1]
    %s7 = scalar_lea.vmem %s0, 21
    %v8 = vld [vmem:[%s7] sm:$0x1]
    %vm9 = vcmask 15360
    %v10 = vsel %vm9, %v8, %v6
    %11 = vrot.lane.b32.xlu0 %v10, 126
    %v12 = vpop.permute.xlu0 %11
    %vm13 = vcmask 31744
    %s14 = scalar_lea.vmem [#allocation0], 8
    %15 = vst.msk [vmem:[%s14] sm:$0x1] %vm13, %v12
    %vm16 = vcmask 1048560
    %17 = vst.msk [vmem:[#allocation0] sm:$0x1] %vm16, %v12
    %s18 = scalar_lea.vmem %s0, 20
    %v19 = vld [vmem:[%s18] sm:$0x1]
    %20 = vrot.lane.b32.xlu0 %v19, 120
    %v21 = vpop.permute.xlu0 %20
    %vm22 = vcmask 1032128
    %23 = vst.msk [vmem:[#allocation0] sm:$0x1] %vm22, %v21
    %s24 = scalar_lea.vmem %s0, 19
    %v25 = vld [vmem:[%s24] sm:$0x1]
    %26 = vrot.lane.b32.xlu0 %v25, 114
    %v27 = vpop.permute.xlu0 %26
    %vm28 = vcmask 982928
    %29 = vst.msk [vmem:[#allocation0] sm:$0x1] %vm28, %v27
    %s30 = scalar_lea.vmem %s0, 18
    %v31 = vld [vmem:[%s30] sm:$0x1]
    %32 = vrot.lane.b32.xlu0 %v31, 108
    %v33 = vpop.permute.xlu0 %32
    %vm34 = vcmask 933728
    %35 = vst.msk [vmem:[#allocation0] sm:$0x1] %vm34, %v33
    %s36 = scalar_lea.vmem %s0, 17
    %v37 = vld [vmem:[%s36] sm:$0x1]
    %38 = vrot.lane.b32.xlu0 %v37, 102
    %v39 = vpop.permute.xlu0 %38
    %vm40 = vcmask 884528
    %41 = vst.msk [vmem:[#allocation0] sm:$0x1] %vm40, %v39
    %s42 = scalar_lea.vmem %s0, 16
    %v43 = vld [vmem:[%s42] sm:$0x1]
    %44 = vrot.lane.b32.xlu0 %v43, 96
    %v45 = vpop.permute.xlu0 %44
    %vm46 = vcmask 835328
    %47 = vst.msk [vmem:[#allocation0] sm:$0x1] %vm46, %v45
    %s48 = scalar_lea.vmem %s0, 15
    %v49 = vld [vmem:[%s48] sm:$0x1]
    %50 = vrot.lane.b32.xlu0 %v49, 90
    %v51 = vpop.permute.xlu0 %50
    %vm52 = vcmask 786128
    %53 = vst.msk [vmem:[#allocation0] sm:$0x1] %vm52, %v51
    %s54 = scalar_lea.vmem %s0, 14
    %v55 = vld [vmem:[%s54] sm:$0x1]
    %56 = vrot.lane.b32.xlu0 %v55, 84
    %v57 = vpop.permute.xlu0 %56
    %vm58 = vcmask 736928
    %59 = vst.msk [vmem:[#allocation0] sm:$0x1] %vm58, %v57
    %s60 = scalar_lea.vmem %s0, 13
    %v61 = vld [vmem:[%s60] sm:$0x1]
    %62 = vrot.lane.b32.xlu0 %v61, 78
    %v63 = vpop.permute.xlu0 %62
    %vm64 = vcmask 687728
    %65 = vst.msk [vmem:[#allocation0] sm:$0x1] %vm64, %v63
    %s66 = scalar_lea.vmem %s0, 12
    %v67 = vld [vmem:[%s66] sm:$0x1]
    %68 = vrot.lane.b32.xlu0 %v67, 72
    %v69 = vpop.permute.xlu0 %68
    %vm70 = vcmask 638528
    %71 = vst.msk [vmem:[#allocation0] sm:$0x1] %vm70, %v69
    %s72 = scalar_lea.vmem %s0, 11
    %v73 = vld [vmem:[%s72] sm:$0x1]
    %74 = vrot.lane.b32.xlu0 %v73, 66
    %v75 = vpop.permute.xlu0 %74
    %vm76 = vcmask 589328
    %77 = vst.msk [vmem:[#allocation0] sm:$0x1] %vm76, %v75
    %s78 = scalar_lea.vmem %s0, 10
    %v79 = vld [vmem:[%s78] sm:$0x1]
    %80 = vrot.lane.b32.xlu0 %v79, 60
    %v81 = vpop.permute.xlu0 %80
    %vm82 = vcmask 540128
    %83 = vst.msk [vmem:[#allocation0] sm:$0x1] %vm82, %v81
    %s84 = scalar_lea.vmem %s0, 9
    %v85 = vld [vmem:[%s84] sm:$0x1]
    %86 = vrot.lane.b32.xlu0 %v85, 54
    %v87 = vpop.permute.xlu0 %86
    %vm88 = vcmask 490928
    %89 = vst.msk [vmem:[#allocation0] sm:$0x1] %vm88, %v87
    %s90 = scalar_lea.vmem %s0, 8
    %v91 = vld [vmem:[%s90] sm:$0x1]
    %92 = vrot.lane.b32.xlu0 %v91, 48
    %v93 = vpop.permute.xlu0 %92
    %vm94 = vcmask 441728
    %95 = vst.msk [vmem:[#allocation0] sm:$0x1] %vm94, %v93
    %s96 = scalar_lea.vmem %s0, 7
    %v97 = vld [vmem:[%s96] sm:$0x1]
    %98 = vrot.lane.b32.xlu0 %v97, 42
    %v99 = vpop.permute.xlu0 %98
    %vm100 = vcmask 392528
    %101 = vst.msk [vmem:[#allocation0] sm:$0x1] %vm100, %v99
    %s102 = scalar_lea.vmem %s0, 6
    %v103 = vld [vmem:[%s102] sm:$0x1]
    %104 = vrot.lane.b32.xlu0 %v103, 36
    %v105 = vpop.permute.xlu0 %104
    %vm106 = vcmask 343328
    %107 = vst.msk [vmem:[#allocation0] sm:$0x1] %vm106, %v105
    %s108 = scalar_lea.vmem %s0, 27
    %v109 = vld [vmem:[%s108] sm:$0x1]
    %110 = vrot.lane.b32.xlu0 %v109, 34
    %v111 = vpop.permute.xlu0 %110
    %vm112 = vcmask 326928
    %s113 = scalar_lea.vmem [#allocation0], 8
    %114 = vst.msk [vmem:[%s113] sm:$0x1] %vm112, %v111
    %s115 = scalar_lea.vmem %s0, 5
    %v116 = vld [vmem:[%s115] sm:$0x1]
    %117 = vrot.lane.b32.xlu0 %v116, 30
    %v118 = vpop.permute.xlu0 %117
    %vm119 = vcmask 294128
    %120 = vst.msk [vmem:[#allocation0] sm:$0x1] %vm119, %v118
    %s121 = scalar_lea.vmem %s0, 26
    %v122 = vld [vmem:[%s121] sm:$0x1]
    %123 = vrot.lane.b32.xlu0 %v122, 28
    %v124 = vpop.permute.xlu0 %123
    %vm125 = vcmask 277728
    %s126 = scalar_lea.vmem [#allocation0], 8
    %127 = vst.msk [vmem:[%s126] sm:$0x1] %vm125, %v124
    %s128 = scalar_lea.vmem %s0, 4
    %v129 = vld [vmem:[%s128] sm:$0x1]
    %130 = vrot.lane.b32.xlu0 %v129, 24
    %v131 = vpop.permute.xlu0 %130
    %vm132 = vcmask 244928
    %133 = vst.msk [vmem:[#allocation0] sm:$0x1] %vm132, %v131
    %s134 = scalar_lea.vmem %s0, 25
    %v135 = vld [vmem:[%s134] sm:$0x1]
    %136 = vrot.lane.b32.xlu0 %v135, 22
    %v137 = vpop.permute.xlu0 %136
    %vm138 = vcmask 228528
    %s139 = scalar_lea.vmem [#allocation0], 8
    %140 = vst.msk [vmem:[%s139] sm:$0x1] %vm138, %v137
    %s141 = scalar_lea.vmem %s0, 3
    %v142 = vld [vmem:[%s141] sm:$0x1]
    %143 = vrot.lane.b32.xlu0 %v142, 18
    %v144 = vpop.permute.xlu0 %143
    %vm145 = vcmask 195728
    %146 = vst.msk [vmem:[#allocation0] sm:$0x1] %vm145, %v144
    %s147 = scalar_lea.vmem %s0, 24
    %v148 = vld [vmem:[%s147] sm:$0x1]
    %149 = vrot.lane.b32.xlu0 %v148, 16
    %v150 = vpop.permute.xlu0 %149
    %vm151 = vcmask 179328
    %s152 = scalar_lea.vmem [#allocation0], 8
    %153 = vst.msk [vmem:[%s152] sm:$0x1] %vm151, %v150
    %s154 = scalar_lea.vmem %s0, 2
    %v155 = vld [vmem:[%s154] sm:$0x1]
    %156 = vrot.lane.b32.xlu0 %v155, 12
    %v157 = vpop.permute.xlu0 %156
    %vm158 = vcmask 146528
    %159 = vst.msk [vmem:[#allocation0] sm:$0x1] %vm158, %v157
    %s160 = scalar_lea.vmem %s0, 23
    %v161 = vld [vmem:[%s160] sm:$0x1]
    %162 = vrot.lane.b32.xlu0 %v161, 10
    %v163 = vpop.permute.xlu0 %162
    %vm164 = vcmask 130128
    %s165 = scalar_lea.vmem [#allocation0], 8
    %166 = vst.msk [vmem:[%s165] sm:$0x1] %vm164, %v163
    %s167 = scalar_lea.vmem %s0, 1
    %v168 = vld [vmem:[%s167] sm:$0x1]
    %169 = vrot.lane.b32.xlu0 %v168, 6
    %v170 = vpop.permute.xlu0 %169
    %vm171 = vcmask 97328
    %172 = vst.msk [vmem:[#allocation0] sm:$0x1] %vm171, %v170
    %s173 = scalar_lea.vmem %s0, 22
    %v174 = vld [vmem:[%s173] sm:$0x1]
    %175 = vrot.lane.b32.xlu0 %v174, 4
    %v176 = vpop.permute.xlu0 %175
    %vm177 = vcmask 80928
    %s178 = scalar_lea.vmem [#allocation0], 8
    %179 = vst.msk [vmem:[%s178] sm:$0x1] %vm177, %v176
    %s181 = sshllo.u32 0, 1
    %v183 = vld [vmem:[#allocation0] sm:%s181]
    %s184 = sshllo.u32 0, 1
    %185 = vst [vmem:[%s1] sm:%s184] %v183
    %s186 = scalar_lea.vmem [#allocation0], 8
    %v187 = vld [vmem:[%s186] sm:%s181]
    %s188 = sshllo.u32 0, 1
    %s189 = scalar_lea.vmem %s1, 1
    %190 = vst [vmem:[%s189] sm:%s188] %v187

// kernel: tile.18
$region0: #{tile.18}
  #allocation0 [shape = 's32[1]{0}', space=sflag, size = 0x4, scoped, tag = 'scoped memory for tile.18']
  %s0 = inlined_call_operand.vmem [shape: f32[16], index: 0, kind: input, shape index: {}]
  %s1 = inlined_call_operand.vmem [shape: f32[10,16], index: 1, kind: output, shape index: {}]
  // Predicated region
  $region2: #{tile.18} parent=0 // pred_check
    _
  $region3: #{tile.18} parent=0 // pred_check_branch
    %3 = sbr.rel (0) target = $region5
  $region4: #{tile.18} parent=0 // pred_region
    _
  $region5: #{tile.18} parent=0 // pred_fallthru
    _
  %v4 = vld [vmem:[%s0] ss:$0 sm:$0xff]
  %5 = vst [vmem:[%s1] sm:$0xff] %v4
  %s6 = scalar_lea.vmem %s1, 8
  %7 = vst [vmem:[%s6] sm:$0xff] %v4

// kernel: tile.19
$region0: #{tile.19}
  %s0 = inlined_call_operand.vmem [shape: f32[10,16], index: 0, kind: input, shape index: {}]
  %s1 = inlined_call_operand.vmem [shape: f32[1,160], index: 1, kind: output, shape index: {}]
  $region1: #{tile.19} parent=0
    #allocation0 [shape = 'u8[8192]{0}', space=vmem, size = 0x2000, scoped, tag = 'scoped mem for output reshape']
    %s2 = smov 3
    %v3 = vld [vmem:[%s0] ss:$8 sm:%s2]
    %vm4 = vcmask 130048
    %5 = vst.msk [vmem:[#allocation0] ss:$8 sm:$0x3] %vm4, %v3
    %s6 = scalar_lea.vmem %s0, 7
    %v7 = vld [vmem:[%s6] sm:$0x1]
    %8 = vrot.lane.b32.xlu0 %v7, 112
    %v9 = vpop.permute.xlu0 %8
    %vm10 = vcmask 1048448
    %11 = vst.msk [vmem:[#allocation0] sm:$0x1] %vm10, %v9
    %s12 = scalar_lea.vmem %s0, 6
    %v13 = vld [vmem:[%s12] sm:$0x1]
    %14 = vrot.lane.b32.xlu0 %v13, 96
    %v15 = vpop.permute.xlu0 %14
    %vm16 = vcmask 917248
    %17 = vst.msk [vmem:[#allocation0] sm:$0x1] %vm16, %v15
    %s18 = scalar_lea.vmem %s0, 5
    %v19 = vld [vmem:[%s18] sm:$0x1]
    %20 = vrot.lane.b32.xlu0 %v19, 80
    %v21 = vpop.permute.xlu0 %20
    %vm22 = vcmask 786048
    %23 = vst.msk [vmem:[#allocation0] sm:$0x1] %vm22, %v21
    %s24 = scalar_lea.vmem %s0, 4
    %v25 = vld [vmem:[%s24] sm:$0x1]
    %26 = vrot.lane.b32.xlu0 %v25, 64
    %v27 = vpop.permute.xlu0 %26
    %vm28 = vcmask 654848
    %29 = vst.msk [vmem:[#allocation0] sm:$0x1] %vm28, %v27
    %s30 = scalar_lea.vmem %s0, 3
    %v31 = vld [vmem:[%s30] sm:$0x1]
    %32 = vrot.lane.b32.xlu0 %v31, 48
    %v33 = vpop.permute.xlu0 %32
    %vm34 = vcmask 523648
    %35 = vst.msk [vmem:[#allocation0] sm:$0x1] %vm34, %v33
    %s36 = scalar_lea.vmem %s0, 2
    %v37 = vld [vmem:[%s36] sm:$0x1]
    %38 = vrot.lane.b32.xlu0 %v37, 32
    %v39 = vpop.permute.xlu0 %38
    %vm40 = vcmask 392448
    %41 = vst.msk [vmem:[#allocation0] sm:$0x1] %vm40, %v39
    %s42 = scalar_lea.vmem %s0, 1
    %s43 = smov 3
    %v44 = vld [vmem:[%s42] ss:$8 sm:%s43]
    %45 = vrot.lane.b32.xlu0 %v44, 16
    %v46 = vpop.permute.xlu0 %45
    %vm47 = vcmask 261248
    %48 = vst.msk [vmem:[#allocation0] ss:$8 sm:$0x3] %vm47, %v46
    %s50 = sshllo.u32 0, 1
    %v52 = vld [vmem:[#allocation0] sm:%s50]
    %s53 = sshllo.u32 0, 1
    %54 = vst [vmem:[%s1] sm:%s53] %v52
    %s55 = scalar_lea.vmem [#allocation0], 8
    %v56 = vld [vmem:[%s55] sm:%s50]
    %s57 = sshllo.u32 0, 1
    %s58 = scalar_lea.vmem %s1, 1
    %59 = vst [vmem:[%s58] sm:%s57] %v56

// kernel: parallel_net_forward.1
$region0: #{parallel_net_forward.1}
  #allocation0 [shape = 'u32[]', space=smem, size = 0x4, offset = 0x4, fixed_abs, tag = 'smem constant byte address 0x4 - core index']
  #allocation1 [shape = 'u32[144,128]{1,0:T(1,128)}', space=vmem, size = 0x12000, scoped, tag = 'internal scratch']
  %s0 = inlined_call_operand.vmem [shape: f32[32,16,32], index: 0, kind: input, shape index: {}]
  %s1 = inlined_call_operand.vmem [shape: f32[5,32,168], index: 1, kind: input, shape index: {}]
  %s2 = inlined_call_operand.vmem [shape: f32[1,168], index: 2, kind: input, shape index: {}]
  %s3 = inlined_call_operand.vmem [shape: f32[5,162,160], index: 3, kind: input, shape index: {}]
  %s4 = inlined_call_operand.vmem [shape: f32[1,160], index: 4, kind: input, shape index: {}]
  %s5 = inlined_call_operand.vmem [shape: f32[5,144,120], index: 5, kind: input, shape index: {}]
  %s6 = inlined_call_operand.vmem [shape: f32[1,120], index: 6, kind: input, shape index: {}]
  %s7 = inlined_call_operand.vmem [shape: f32[120,128], index: 7, kind: input, shape index: {}]
  %s8 = inlined_call_operand.vmem [shape: f32[1,128], index: 8, kind: input, shape index: {}]
  %s9 = inlined_call_operand.hbm [shape: f32[16,128], index: 9, kind: output, shape index: {}]
  %s10 = sld [smem:[#allocation0]]
  $region107: #{parallel_net_forward.1} parent=0
    _
  %s12 = ssub.s32 1, %s10
  %s13 = scalar_select 0, %s12, %s10
  $region1: #{parallel_net_forward.1} parent=0
    #allocation2 [shape = 'u8[262144]{0}', space=vmem, size = 0x40000, scoped, tag = 'input window, operand 0']
    #allocation3 [shape = 'u8[8192]{0}', space=vmem, size = 0x2000, scoped, tag = 'output window, operand 0']
    #allocation4 [shape = 's32[2]{0}', space=sflag, size = 0x8, scoped, tag = 'scoped memory for parallel_net_forward.1']
    %14 = vsyncpa [#allocation4], 0
    %s15 = scalar_lea.sflag [#allocation4], 1
    %16 = vsyncpa %s15, 0
    loop: start=0, step=1, limit=4
    $region2: #{parallel_net_forward.1} parent=1 // loop_pre_header
      _
    $region3: #{parallel_net_forward.1} parent=1 // loop_header
      %s18 = sphi 0, %s22
      %p19 = scmp.ge.s32.totalorder %s18, 4
      %s28 = sphi 0, %s30
      %s31 = sphi 0, %s28
      %s32 = sphi 0, %s31
      %s48 = sphi 0, %s32
      %s52 = sphi 0, %s52
      %s54 = sphi 0, %s52
      %s55 = sphi 0, %s54
      %s69 = sphi 0, %s55
      %s73 = sphi 0, %s73
      %s75 = sphi 0, %s73
      %s76 = sphi 0, %s75
      %s90 = sphi 0, %s76
      %s94 = sphi 0, %s94
      %s96 = sphi 0, %s94
      %s97 = sphi 0, %s96
      %s111 = sphi 0, %s97
      %s115 = sphi 0, %s115
      %s117 = sphi 0, %s115
      %s118 = sphi 0, %s117
      %s132 = sphi 0, %s118
      %s136 = sphi 0, %s136
      %s138 = sphi 0, %s136
      %s139 = sphi 0, %s138
      %s153 = sphi 0, %s139
      %s157 = sphi 0, %s157
      %s159 = sphi 0, %s157
      %s160 = sphi 0, %s159
      %s174 = sphi 0, %s160
      %s178 = sphi 0, %s178
      %s180 = sphi 0, %s178
      %s181 = sphi 0, %s180
      %s195 = sphi 0, %s181
      %s199 = sphi 0, %s199
      %s201 = sphi 0, %s199
      %s202 = sphi 0, %s201
      %s216 = sphi 0, %s202
      %s222 = sphi 0, %s224
      %s225 = sphi 0, %s222
      %s226 = sphi 0, %s225
      %s242 = sphi 0, %s226
    $region4: #{parallel_net_forward.1} parent=1 // loop_header_branch
      %21 = sbr.rel (%p19) target = $region8
    $region5: #{parallel_net_forward.1} parent=1 // loop_body
      %s23 = ssub.s32 %s18, 1
      %s24 = ssub.s32 %s18, 2
      %s25 = sadd.s32 %s18, 1
      %s26 = ssub.s32 %s18, %s25
      %p27 = scmp.eq.s32.totalorder %s26, 0
      %s29 = sadd.s32 %s28, 1
      %s30 = scalar_select %p27, %s28, %s29
      %p33 = pneg %p27
      %p34 = scmp.eq.s32.totalorder %s18, 1
      %p35 = por %p33, %p34
      %p36 = scmp.ne.s32.totalorder %s28, %s31
      %p37 = scmp.eq.s32.totalorder %s18, 0
      %p38 = por %p36, %p37
      %p39 = scmp.ne.s32.totalorder %s28, %s31
      %p40 = scmp.eq.s32.totalorder %s23, 1
      %p41 = por %p39, %p40
      %p42 = scmp.ne.s32.totalorder %s31, %s32
      %p43 = scmp.eq.s32.totalorder %s23, 0
      %p44 = por %p42, %p43
      %p45 = scmp.ne.s32.totalorder %s31, %s32
      %p46 = scmp.eq.s32.totalorder %s24, 1
      %p47 = por %p45, %p46
      %p49 = scmp.ne.s32.totalorder %s32, %s48
      %p50 = scmp.eq.s32.totalorder %s24, 0
      %p51 = por %p49, %p50
      %s53 = sadd.s32 %s52, 1
      %p56 = scmp.eq.s32.totalorder %s18, 1
      %p57 = scmp.ne.s32.totalorder %s52, %s54
      %p58 = scmp.eq.s32.totalorder %s18, 0
      %p59 = por %p57, %p58
      %p60 = scmp.ne.s32.totalorder %s52, %s54
      %p61 = scmp.eq.s32.totalorder %s23, 1
      %p62 = por %p60, %p61
      %p63 = scmp.ne.s32.totalorder %s54, %s55
      %p64 = scmp.eq.s32.totalorder %s23, 0
      %p65 = por %p63, %p64
      %p66 = scmp.ne.s32.totalorder %s54, %s55
      %p67 = scmp.eq.s32.totalorder %s24, 1
      %p68 = por %p66, %p67
      %p70 = scmp.ne.s32.totalorder %s55, %s69
      %p71 = scmp.eq.s32.totalorder %s24, 0
      %p72 = por %p70, %p71
      %s74 = sadd.s32 %s73, 1
      %p77 = scmp.eq.s32.totalorder %s18, 1
      %p78 = scmp.ne.s32.totalorder %s73, %s75
      %p79 = scmp.eq.s32.totalorder %s18, 0
      %p80 = por %p78, %p79
      %p81 = scmp.ne.s32.totalorder %s73, %s75
      %p82 = scmp.eq.s32.totalorder %s23, 1
      %p83 = por %p81, %p82
      %p84 = scmp.ne.s32.totalorder %s75, %s76
      %p85 = scmp.eq.s32.totalorder %s23, 0
      %p86 = por %p84, %p85
      %p87 = scmp.ne.s32.totalorder %s75, %s76
      %p88 = scmp.eq.s32.totalorder %s24, 1
      %p89 = por %p87, %p88
      %p91 = scmp.ne.s32.totalorder %s76, %s90
      %p92 = scmp.eq.s32.totalorder %s24, 0
      %p93 = por %p91, %p92
      %s95 = sadd.s32 %s94, 1
      %p98 = scmp.eq.s32.totalorder %s18, 1
      %p99 = scmp.ne.s32.totalorder %s94, %s96
      %p100 = scmp.eq.s32.totalorder %s18, 0
      %p101 = por %p99, %p100
      %p102 = scmp.ne.s32.totalorder %s94, %s96
      %p103 = scmp.eq.s32.totalorder %s23, 1
      %p104 = por %p102, %p103
      %p105 = scmp.ne.s32.totalorder %s96, %s97
      %p106 = scmp.eq.s32.totalorder %s23, 0
      %p107 = por %p105, %p106
      %p108 = scmp.ne.s32.totalorder %s96, %s97
      %p109 = scmp.eq.s32.totalorder %s24, 1
      %p110 = por %p108, %p109
      %p112 = scmp.ne.s32.totalorder %s97, %s111
      %p113 = scmp.eq.s32.totalorder %s24, 0
      %p114 = por %p112, %p113
      %s116 = sadd.s32 %s115, 1
      %p119 = scmp.eq.s32.totalorder %s18, 1
      %p120 = scmp.ne.s32.totalorder %s115, %s117
      %p121 = scmp.eq.s32.totalorder %s18, 0
      %p122 = por %p120, %p121
      %p123 = scmp.ne.s32.totalorder %s115, %s117
      %p124 = scmp.eq.s32.totalorder %s23, 1
      %p125 = por %p123, %p124
      %p126 = scmp.ne.s32.totalorder %s117, %s118
      %p127 = scmp.eq.s32.totalorder %s23, 0
      %p128 = por %p126, %p127
      %p129 = scmp.ne.s32.totalorder %s117, %s118
      %p130 = scmp.eq.s32.totalorder %s24, 1
      %p131 = por %p129, %p130
      %p133 = scmp.ne.s32.totalorder %s118, %s132
      %p134 = scmp.eq.s32.totalorder %s24, 0
      %p135 = por %p133, %p134
      %s137 = sadd.s32 %s136, 1
      %p140 = scmp.eq.s32.totalorder %s18, 1
      %p141 = scmp.ne.s32.totalorder %s136, %s138
      %p142 = scmp.eq.s32.totalorder %s18, 0
      %p143 = por %p141, %p142
      %p144 = scmp.ne.s32.totalorder %s136, %s138
      %p145 = scmp.eq.s32.totalorder %s23, 1
      %p146 = por %p144, %p145
      %p147 = scmp.ne.s32.totalorder %s138, %s139
      %p148 = scmp.eq.s32.totalorder %s23, 0
      %p149 = por %p147, %p148
      %p150 = scmp.ne.s32.totalorder %s138, %s139
      %p151 = scmp.eq.s32.totalorder %s24, 1
      %p152 = por %p150, %p151
      %p154 = scmp.ne.s32.totalorder %s139, %s153
      %p155 = scmp.eq.s32.totalorder %s24, 0
      %p156 = por %p154, %p155
      %s158 = sadd.s32 %s157, 1
      %p161 = scmp.eq.s32.totalorder %s18, 1
      %p162 = scmp.ne.s32.totalorder %s157, %s159
      %p163 = scmp.eq.s32.totalorder %s18, 0
      %p164 = por %p162, %p163
      %p165 = scmp.ne.s32.totalorder %s157, %s159
      %p166 = scmp.eq.s32.totalorder %s23, 1
      %p167 = por %p165, %p166
      %p168 = scmp.ne.s32.totalorder %s159, %s160
      %p169 = scmp.eq.s32.totalorder %s23, 0
      %p170 = por %p168, %p169
      %p171 = scmp.ne.s32.totalorder %s159, %s160
      %p172 = scmp.eq.s32.totalorder %s24, 1
      %p173 = por %p171, %p172
      %p175 = scmp.ne.s32.totalorder %s160, %s174
      %p176 = scmp.eq.s32.totalorder %s24, 0
      %p177 = por %p175, %p176
      %s179 = sadd.s32 %s178, 1
      %p182 = scmp.eq.s32.totalorder %s18, 1
      %p183 = scmp.ne.s32.totalorder %s178, %s180
      %p184 = scmp.eq.s32.totalorder %s18, 0
      %p185 = por %p183, %p184
      %p186 = scmp.ne.s32.totalorder %s178, %s180
      %p187 = scmp.eq.s32.totalorder %s23, 1
      %p188 = por %p186, %p187
      %p189 = scmp.ne.s32.totalorder %s180, %s181
      %p190 = scmp.eq.s32.totalorder %s23, 0
      %p191 = por %p189, %p190
      %p192 = scmp.ne.s32.totalorder %s180, %s181
      %p193 = scmp.eq.s32.totalorder %s24, 1
      %p194 = por %p192, %p193
      %p196 = scmp.ne.s32.totalorder %s181, %s195
      %p197 = scmp.eq.s32.totalorder %s24, 0
      %p198 = por %p196, %p197
      %s200 = sadd.s32 %s199, 1
      %p203 = scmp.eq.s32.totalorder %s18, 1
      %p204 = scmp.ne.s32.totalorder %s199, %s201
      %p205 = scmp.eq.s32.totalorder %s18, 0
      %p206 = por %p204, %p205
      %p207 = scmp.ne.s32.totalorder %s199, %s201
      %p208 = scmp.eq.s32.totalorder %s23, 1
      %p209 = por %p207, %p208
      %p210 = scmp.ne.s32.totalorder %s201, %s202
      %p211 = scmp.eq.s32.totalorder %s23, 0
      %p212 = por %p210, %p211
      %p213 = scmp.ne.s32.totalorder %s201, %s202
      %p214 = scmp.eq.s32.totalorder %s24, 1
      %p215 = por %p213, %p214
      %p217 = scmp.ne.s32.totalorder %s202, %s216
      %p218 = scmp.eq.s32.totalorder %s24, 0
      %p219 = por %p217, %p218
      %s220 = ssub.s32 %s18, %s25
      %p221 = scmp.eq.s32.totalorder %s220, 0
      %s223 = sadd.s32 %s222, 1
      %s224 = scalar_select %p221, %s222, %s223
      %p227 = pneg %p221
      %p228 = scmp.eq.s32.totalorder %s18, 1
      %p229 = por %p227, %p228
      %p230 = scmp.ne.s32.totalorder %s222, %s225
      %p231 = scmp.eq.s32.totalorder %s18, 0
      %p232 = por %p230, %p231
      %p233 = scmp.ne.s32.totalorder %s222, %s225
      %p234 = scmp.eq.s32.totalorder %s23, 1
      %p235 = por %p233, %p234
      %p236 = scmp.ne.s32.totalorder %s225, %s226
      %p237 = scmp.eq.s32.totalorder %s23, 0
      %p238 = por %p236, %p237
      %p239 = scmp.ne.s32.totalorder %s225, %s226
      %p240 = scmp.eq.s32.totalorder %s24, 1
      %p241 = por %p239, %p240
      %p243 = scmp.ne.s32.totalorder %s226, %s242
      %p244 = scmp.eq.s32.totalorder %s24, 0
      %p245 = por %p243, %p244
      %p246 = scmp.le.s32.totalorder 1, %s18
      %p247 = scmp.lt.s32.totalorder %s18, 3
      %p248 = pnand %p246, %p247
      %p249 = pneg %p248
      // Predicated region
      $region9: #{parallel_net_forward.1} parent=5 // pred_check
        _
      $region10: #{parallel_net_forward.1} parent=5 // pred_check_branch
        %251 = sbr.rel (%p248) target = $region12
      $region11: #{parallel_net_forward.1} parent=5 // pred_region
        %s252 = ssub.s32 %s18, 1
        // Predicated region
        $region13: #{parallel_net_forward.1} parent=11 // pred_check
          %p253 = pneg %p65
        $region14: #{parallel_net_forward.1} parent=11 // pred_check_branch
          %255 = sbr.rel (%p253) target = $region16
        $region15: #{parallel_net_forward.1} parent=11 // pred_region
          _
        $region16: #{parallel_net_forward.1} parent=11 // pred_fallthru
          _
        // Predicated region
        $region17: #{parallel_net_forward.1} parent=11 // pred_check
          %p256 = pneg %p86
        $region18: #{parallel_net_forward.1} parent=11 // pred_check_branch
          %258 = sbr.rel (%p256) target = $region20
        $region19: #{parallel_net_forward.1} parent=11 // pred_region
          _
        $region20: #{parallel_net_forward.1} parent=11 // pred_fallthru
          _
        // Predicated region
        $region21: #{parallel_net_forward.1} parent=11 // pred_check
          %p259 = pneg %p107
        $region22: #{parallel_net_forward.1} parent=11 // pred_check_branch
          %261 = sbr.rel (%p259) target = $region24
        $region23: #{parallel_net_forward.1} parent=11 // pred_region
          _
        $region24: #{parallel_net_forward.1} parent=11 // pred_fallthru
          _
        // Predicated region
        $region25: #{parallel_net_forward.1} parent=11 // pred_check
          %p262 = pneg %p128
        $region26: #{parallel_net_forward.1} parent=11 // pred_check_branch
          %264 = sbr.rel (%p262) target = $region28
        $region27: #{parallel_net_forward.1} parent=11 // pred_region
          _
        $region28: #{parallel_net_forward.1} parent=11 // pred_fallthru
          _
        // Predicated region
        $region29: #{parallel_net_forward.1} parent=11 // pred_check
          %p265 = pneg %p149
        $region30: #{parallel_net_forward.1} parent=11 // pred_check_branch
          %267 = sbr.rel (%p265) target = $region32
        $region31: #{parallel_net_forward.1} parent=11 // pred_region
          _
        $region32: #{parallel_net_forward.1} parent=11 // pred_fallthru
          _
        // Predicated region
        $region33: #{parallel_net_forward.1} parent=11 // pred_check
          %p268 = pneg %p170
        $region34: #{parallel_net_forward.1} parent=11 // pred_check_branch
          %270 = sbr.rel (%p268) target = $region36
        $region35: #{parallel_net_forward.1} parent=11 // pred_region
          _
        $region36: #{parallel_net_forward.1} parent=11 // pred_fallthru
          _
        // Predicated region
        $region37: #{parallel_net_forward.1} parent=11 // pred_check
          %p271 = pneg %p191
        $region38: #{parallel_net_forward.1} parent=11 // pred_check_branch
          %273 = sbr.rel (%p271) target = $region40
        $region39: #{parallel_net_forward.1} parent=11 // pred_region
          _
        $region40: #{parallel_net_forward.1} parent=11 // pred_fallthru
          _
        // Predicated region
        $region41: #{parallel_net_forward.1} parent=11 // pred_check
          %p274 = pneg %p212
        $region42: #{parallel_net_forward.1} parent=11 // pred_check_branch
          %276 = sbr.rel (%p274) target = $region44
        $region43: #{parallel_net_forward.1} parent=11 // pred_region
          _
        $region44: #{parallel_net_forward.1} parent=11 // pred_fallthru
          _
      $region12: #{parallel_net_forward.1} parent=5 // pred_fallthru
        _
      %p277 = scmp.lt.s32.totalorder %s18, 2
      // Predicated region
      $region45: #{parallel_net_forward.1} parent=5 // pred_check
        %p278 = pneg %p277
      $region46: #{parallel_net_forward.1} parent=5 // pred_check_branch
        %280 = sbr.rel (%p278) target = $region48
      $region47: #{parallel_net_forward.1} parent=5 // pred_region
        // Predicated region
        $region49: #{parallel_net_forward.1} parent=47 // pred_check
          %p281 = pneg %p38
        $region50: #{parallel_net_forward.1} parent=47 // pred_check_branch
          %283 = sbr.rel (%p281) target = $region52
        $region51: #{parallel_net_forward.1} parent=47 // pred_region
          %s284 = sand.u32 %s28, 1
          %s285 = sand.u32 %s28, 1
          %s286 = smul.addr %s285, 256
          %s287 = scalar_lea.vmem [#allocation2], %s286
          %s288 = smul.addr %s18, 8
          %s289 = scalar_lea.vmem %s0, %s288
          // Predicated region
          $region53: #{parallel_net_forward.1} parent=51 // pred_check
            _
          $region54: #{parallel_net_forward.1} parent=51 // pred_check_branch
            %291 = sbr.rel (0) target = $region56
          $region55: #{parallel_net_forward.1} parent=51 // pred_region
            // Predicated region
            $region57: #{parallel_net_forward.1} parent=55 // pred_check
              _
            $region58: #{parallel_net_forward.1} parent=55 // pred_check_branch
              %293 = sbr.rel (0) target = $region60
            $region59: #{parallel_net_forward.1} parent=55 // pred_region
              // Predicated region
              $region72: #{parallel_net_forward.1} parent=59 // pred_check
                _
              $region73: #{parallel_net_forward.1} parent=59 // pred_check_branch
                %370 = sbr.rel (0) target = $region75
              $region74: #{parallel_net_forward.1} parent=59 // pred_region
                loop: start=0, step=1, limit=1
                $region76: #{parallel_net_forward.1} parent=74 // loop_pre_header
                  _
                $region77: #{parallel_net_forward.1} parent=74 // loop_header
                  %s372 = sphi 0, %s376
                  %p373 = scmp.ge.s32.totalorder %s372, 1
                  %s377 = sphi %s289, %s289
                  %s378 = sphi %s287, %s287
                $region78: #{parallel_net_forward.1} parent=74 // loop_header_branch
                  %375 = sbr.rel (%p373) target = $region82
                $region79: #{parallel_net_forward.1} parent=74 // loop_body
                  %v379 = vld [vmem:[%s377] sm:$0xff]
                  %380 = vst [vmem:[%s378] sm:$0xff] %v379
                  %v381 = vld [vmem:[%s377 + $0x10] sm:$0xff]
                  %382 = vst [vmem:[%s378 + $0x8] sm:$0xff] %v381
                  %v383 = vld [vmem:[%s377 + $0x20] sm:$0xff]
                  %384 = vst [vmem:[%s378 + $0x10] sm:$0xff] %v383
                  %v385 = vld [vmem:[%s377 + $0x30] sm:$0xff]
                  %386 = vst [vmem:[%s378 + $0x18] sm:$0xff] %v385
                  %v387 = vld [vmem:[%s377 + $0x40] sm:$0xff]
                  %388 = vst [vmem:[%s378 + $0x20] sm:$0xff] %v387
                  %v389 = vld [vmem:[%s377 + $0x50] sm:$0xff]
                  %390 = vst [vmem:[%s378 + $0x28] sm:$0xff] %v389
                  %v391 = vld [vmem:[%s377 + $0x60] sm:$0xff]
                  %392 = vst [vmem:[%s378 + $0x30] sm:$0xff] %v391
                  %v393 = vld [vmem:[%s377 + $0x70] sm:$0xff]
                  %394 = vst [vmem:[%s378 + $0x38] sm:$0xff] %v393
                  %v395 = vld [vmem:[%s377 + $0x80] sm:$0xff]
                  %396 = vst [vmem:[%s378 + $0x40] sm:$0xff] %v395
                  %v397 = vld [vmem:[%s377 + $0x90] sm:$0xff]
                  %398 = vst [vmem:[%s378 + $0x48] sm:$0xff] %v397
                  %v399 = vld [vmem:[%s377 + $0xa0] sm:$0xff]
                  %400 = vst [vmem:[%s378 + $0x50] sm:$0xff] %v399
                  %v401 = vld [vmem:[%s377 + $0xb0] sm:$0xff]
                  %402 = vst [vmem:[%s378 + $0x58] sm:$0xff] %v401
                  %v403 = vld [vmem:[%s377 + $0xc0] sm:$0xff]
                  %404 = vst [vmem:[%s378 + $0x60] sm:$0xff] %v403
                  %v405 = vld [vmem:[%s377 + $0xd0] sm:$0xff]
                  %406 = vst [vmem:[%s378 + $0x68] sm:$0xff] %v405
                  %v407 = vld [vmem:[%s377 + $0xe0] sm:$0xff]
                  %408 = vst [vmem:[%s378 + $0x70] sm:$0xff] %v407
                  %v409 = vld [vmem:[%s377 + $0xf0] sm:$0xff]
                  %410 = vst [vmem:[%s378 + $0x78] sm:$0xff] %v409
                  %v411 = vld [vmem:[%s377 + $0x100] sm:$0xff]
                  %412 = vst [vmem:[%s378 + $0x80] sm:$0xff] %v411
                  %v413 = vld [vmem:[%s377 + $0x110] sm:$0xff]
                  %414 = vst [vmem:[%s378 + $0x88] sm:$0xff] %v413
                  %v415 = vld [vmem:[%s377 + $0x120] sm:$0xff]
                  %416 = vst [vmem:[%s378 + $0x90] sm:$0xff] %v415
                  %v417 = vld [vmem:[%s377 + $0x130] sm:$0xff]
                  %418 = vst [vmem:[%s378 + $0x98] sm:$0xff] %v417
                  %v419 = vld [vmem:[%s377 + $0x140] sm:$0xff]
                  %420 = vst [vmem:[%s378 + $0xa0] sm:$0xff] %v419
                  %v421 = vld [vmem:[%s377 + $0x150] sm:$0xff]
                  %422 = vst [vmem:[%s378 + $0xa8] sm:$0xff] %v421
                  %v423 = vld [vmem:[%s377 + $0x160] sm:$0xff]
                  %424 = vst [vmem:[%s378 + $0xb0] sm:$0xff] %v423
                  %v425 = vld [vmem:[%s377 + $0x170] sm:$0xff]
                  %426 = vst [vmem:[%s378 + $0xb8] sm:$0xff] %v425
                  %v427 = vld [vmem:[%s377 + $0x180] sm:$0xff]
                  %428 = vst [vmem:[%s378 + $0xc0] sm:$0xff] %v427
                  %v429 = vld [vmem:[%s377 + $0x190] sm:$0xff]
                  %430 = vst [vmem:[%s378 + $0xc8] sm:$0xff] %v429
                  %v431 = vld [vmem:[%s377 + $0x1a0] sm:$0xff]
                  %432 = vst [vmem:[%s378 + $0xd0] sm:$0xff] %v431
                  %v433 = vld [vmem:[%s377 + $0x1b0] sm:$0xff]
                  %434 = vst [vmem:[%s378 + $0xd8] sm:$0xff] %v433
                  %v435 = vld [vmem:[%s377 + $0x1c0] sm:$0xff]
                  %436 = vst [vmem:[%s378 + $0xe0] sm:$0xff] %v435
                  %v437 = vld [vmem:[%s377 + $0x1d0] sm:$0xff]
                  %438 = vst [vmem:[%s378 + $0xe8] sm:$0xff] %v437
                  %v439 = vld [vmem:[%s377 + $0x1e0] sm:$0xff]
                  %440 = vst [vmem:[%s378 + $0xf0] sm:$0xff] %v439
                  %v441 = vld [vmem:[%s377 + $0x1f0] sm:$0xff]
                  %442 = vst [vmem:[%s378 + $0xf8] sm:$0xff] %v441
                $region80: #{parallel_net_forward.1} parent=74 // loop_footer
                  %s376 = sadd.s32 1, %s372
                $region81: #{parallel_net_forward.1} parent=74 // loop_footer_branch
                  %371 = sbr.rel target = $region77
                $region82: #{parallel_net_forward.1} parent=74 // loop_exit
                  _
              $region75: #{parallel_net_forward.1} parent=59 // pred_fallthru
                _
              // Predicated region
              $region83: #{parallel_net_forward.1} parent=59 // pred_check
                _
              $region84: #{parallel_net_forward.1} parent=59 // pred_check_branch
                %444 = sbr.rel target = $region86
              $region85: #{parallel_net_forward.1} parent=59 // pred_region
                _
              $region86: #{parallel_net_forward.1} parent=59 // pred_fallthru
                _
            $region60: #{parallel_net_forward.1} parent=55 // pred_fallthru
              _
            // Predicated region
            $region61: #{parallel_net_forward.1} parent=55 // pred_check
              _
            $region62: #{parallel_net_forward.1} parent=55 // pred_check_branch
              %295 = sbr.rel target = $region64
            $region63: #{parallel_net_forward.1} parent=55 // pred_region
              loop: start=0, step=1, limit=1
              $region65: #{parallel_net_forward.1} parent=63 // loop_pre_header
                _
              $region66: #{parallel_net_forward.1} parent=63 // loop_header
                %s298 = sphi 0, %s302
                %p299 = scmp.ge.s32.totalorder %s298, 1
                %s303 = sphi %s289, %s289
                %s304 = sphi %s287, %s287
              $region67: #{parallel_net_forward.1} parent=63 // loop_header_branch
                %301 = sbr.rel (%p299) target = $region71
              $region68: #{parallel_net_forward.1} parent=63 // loop_body
                %v305 = vld [vmem:[%s303] sm:$0xff]
                %306 = vst [vmem:[%s304] sm:$0xff] %v305
                %v307 = vld [vmem:[%s303 + $0x10] sm:$0xff]
                %308 = vst [vmem:[%s304 + $0x8] sm:$0xff] %v307
                %v309 = vld [vmem:[%s303 + $0x20] sm:$0xff]
                %310 = vst [vmem:[%s304 + $0x10] sm:$0xff] %v309
                %v311 = vld [vmem:[%s303 + $0x30] sm:$0xff]
                %312 = vst [vmem:[%s304 + $0x18] sm:$0xff] %v311
                %v313 = vld [vmem:[%s303 + $0x40] sm:$0xff]
                %314 = vst [vmem:[%s304 + $0x20] sm:$0xff] %v313
                %v315 = vld [vmem:[%s303 + $0x50] sm:$0xff]
                %316 = vst [vmem:[%s304 + $0x28] sm:$0xff] %v315
                %v317 = vld [vmem:[%s303 + $0x60] sm:$0xff]
                %318 = vst [vmem:[%s304 + $0x30] sm:$0xff] %v317
                %v319 = vld [vmem:[%s303 + $0x70] sm:$0xff]
                %320 = vst [vmem:[%s304 + $0x38] sm:$0xff] %v319
                %v321 = vld [vmem:[%s303 + $0x80] sm:$0xff]
                %322 = vst [vmem:[%s304 + $0x40] sm:$0xff] %v321
                %v323 = vld [vmem:[%s303 + $0x90] sm:$0xff]
                %324 = vst [vmem:[%s304 + $0x48] sm:$0xff] %v323
                %v325 = vld [vmem:[%s303 + $0xa0] sm:$0xff]
                %326 = vst [vmem:[%s304 + $0x50] sm:$0xff] %v325
                %v327 = vld [vmem:[%s303 + $0xb0] sm:$0xff]
                %328 = vst [vmem:[%s304 + $0x58] sm:$0xff] %v327
                %v329 = vld [vmem:[%s303 + $0xc0] sm:$0xff]
                %330 = vst [vmem:[%s304 + $0x60] sm:$0xff] %v329
                %v331 = vld [vmem:[%s303 + $0xd0] sm:$0xff]
                %332 = vst [vmem:[%s304 + $0x68] sm:$0xff] %v331
                %v333 = vld [vmem:[%s303 + $0xe0] sm:$0xff]
                %334 = vst [vmem:[%s304 + $0x70] sm:$0xff] %v333
                %v335 = vld [vmem:[%s303 + $0xf0] sm:$0xff]
                %336 = vst [vmem:[%s304 + $0x78] sm:$0xff] %v335
                %v337 = vld [vmem:[%s303 + $0x100] sm:$0xff]
                %338 = vst [vmem:[%s304 + $0x80] sm:$0xff] %v337
                %v339 = vld [vmem:[%s303 + $0x110] sm:$0xff]
                %340 = vst [vmem:[%s304 + $0x88] sm:$0xff] %v339
                %v341 = vld [vmem:[%s303 + $0x120] sm:$0xff]
                %342 = vst [vmem:[%s304 + $0x90] sm:$0xff] %v341
                %v343 = vld [vmem:[%s303 + $0x130] sm:$0xff]
                %344 = vst [vmem:[%s304 + $0x98] sm:$0xff] %v343
                %v345 = vld [vmem:[%s303 + $0x140] sm:$0xff]
                %346 = vst [vmem:[%s304 + $0xa0] sm:$0xff] %v345
                %v347 = vld [vmem:[%s303 + $0x150] sm:$0xff]
                %348 = vst [vmem:[%s304 + $0xa8] sm:$0xff] %v347
                %v349 = vld [vmem:[%s303 + $0x160] sm:$0xff]
                %350 = vst [vmem:[%s304 + $0xb0] sm:$0xff] %v349
                %v351 = vld [vmem:[%s303 + $0x170] sm:$0xff]
                %352 = vst [vmem:[%s304 + $0xb8] sm:$0xff] %v351
                %v353 = vld [vmem:[%s303 + $0x180] sm:$0xff]
                %354 = vst [vmem:[%s304 + $0xc0] sm:$0xff] %v353
                %v355 = vld [vmem:[%s303 + $0x190] sm:$0xff]
                %356 = vst [vmem:[%s304 + $0xc8] sm:$0xff] %v355
                %v357 = vld [vmem:[%s303 + $0x1a0] sm:$0xff]
                %358 = vst [vmem:[%s304 + $0xd0] sm:$0xff] %v357
                %v359 = vld [vmem:[%s303 + $0x1b0] sm:$0xff]
                %360 = vst [vmem:[%s304 + $0xd8] sm:$0xff] %v359
                %v361 = vld [vmem:[%s303 + $0x1c0] sm:$0xff]
                %362 = vst [vmem:[%s304 + $0xe0] sm:$0xff] %v361
                %v363 = vld [vmem:[%s303 + $0x1d0] sm:$0xff]
                %364 = vst [vmem:[%s304 + $0xe8] sm:$0xff] %v363
                %v365 = vld [vmem:[%s303 + $0x1e0] sm:$0xff]
                %366 = vst [vmem:[%s304 + $0xf0] sm:$0xff] %v365
                %v367 = vld [vmem:[%s303 + $0x1f0] sm:$0xff]
                %368 = vst [vmem:[%s304 + $0xf8] sm:$0xff] %v367
              $region69: #{parallel_net_forward.1} parent=63 // loop_footer
                %s302 = sadd.s32 1, %s298
              $region70: #{parallel_net_forward.1} parent=63 // loop_footer_branch
                %297 = sbr.rel target = $region66
              $region71: #{parallel_net_forward.1} parent=63 // loop_exit
                _
            $region64: #{parallel_net_forward.1} parent=55 // pred_fallthru
              _
          $region56: #{parallel_net_forward.1} parent=51 // pred_fallthru
            _
          %445 = vnop
        $region52: #{parallel_net_forward.1} parent=47 // pred_fallthru
          _
      $region48: #{parallel_net_forward.1} parent=5 // pred_fallthru
        _
      %p446 = scmp.le.s32.totalorder 1, %s18
      %p447 = scmp.lt.s32.totalorder %s18, 3
      %p448 = pnand %p446, %p447
      %p449 = pneg %p448
      // Predicated region
      $region87: #{parallel_net_forward.1} parent=5 // pred_check
        _
      $region88: #{parallel_net_forward.1} parent=5 // pred_check_branch
        %451 = sbr.rel (%p448) target = $region90
      $region89: #{parallel_net_forward.1} parent=5 // pred_region
        %s452 = ssub.s32 %s18, 1
        %s453 = sand.u32 %s31, 1
        %s454 = sand.u32 %s31, 1
        %s455 = smul.addr %s454, 256
        %s456 = scalar_lea.vmem [#allocation2], %s455
        // Predicated region
        $region91: #{parallel_net_forward.1} parent=89 // pred_check
          %p457 = pneg %p44
        $region92: #{parallel_net_forward.1} parent=89 // pred_check_branch
          %459 = sbr.rel (%p457) target = $region94
        $region93: #{parallel_net_forward.1} parent=89 // pred_region
          _
        $region94: #{parallel_net_forward.1} parent=89 // pred_fallthru
          _
        %s460 = sand.u32 %s31, 1
        %s461 = sand.u32 %s31, 1
        %s462 = smul.addr %s461, 256
        %s463 = scalar_lea.vmem [#allocation2], %s462
        %p464 = pneg %p44
        %p465 = pneg %p41
        %p466 = pneg %p65
        %p467 = pneg %p62
        %p468 = pneg %p86
        %p469 = pneg %p83
        %p470 = pneg %p107
        %p471 = pneg %p104
        %p472 = pneg %p128
        %p473 = pneg %p125
        %p474 = pneg %p149
        %p475 = pneg %p146
        %p476 = pneg %p170
        %p477 = pneg %p167
        %p478 = pneg %p191
        %p479 = pneg %p188
        %p480 = pneg %p212
        %p481 = pneg %p209
        %p482 = pneg %p238
        %p483 = pneg %p235
        %s484 = sand.u32 %s225, 1
        %s485 = scalar_lea.sflag [#allocation4], %s484
        %s486 = sand.u32 %s225, 1
        %s487 = smul.addr %s486, 8
        %s488 = scalar_lea.vmem [#allocation3], %s487
        %v489 = vld [vmem:[%s456] sm:$0xff]
        %v490 = vld [vmem:[%s456 + $0x8] sm:$0xff]
        %v491 = vld [vmem:[%s456 + $0x10] sm:$0xff]
        %v492 = vld [vmem:[%s456 + $0x18] sm:$0xff]
        %v493 = vld [vmem:[%s456 + $0x20] sm:$0xff]
        %v494 = vld [vmem:[%s456 + $0x28] sm:$0xff]
        %v495 = vld [vmem:[%s456 + $0x30] sm:$0xff]
        %v496 = vld [vmem:[%s456 + $0x38] sm:$0xff]
        %v497 = vld [vmem:[%s456 + $0x40] sm:$0xff]
        %v498 = vld [vmem:[%s456 + $0x48] sm:$0xff]
        %v499 = vld [vmem:[%s456 + $0x50] sm:$0xff]
        %v500 = vld [vmem:[%s456 + $0x58] sm:$0xff]
        %v501 = vld [vmem:[%s456 + $0x60] sm:$0xff]
        %v502 = vld [vmem:[%s456 + $0x68] sm:$0xff]
        %v503 = vld [vmem:[%s456 + $0x70] sm:$0xff]
        %v504 = vld [vmem:[%s456 + $0x78] sm:$0xff]
        %v505 = vld [vmem:[%s456 + $0x80] sm:$0xff]
        %v506 = vld [vmem:[%s456 + $0x88] sm:$0xff]
        %v507 = vld [vmem:[%s456 + $0x90] sm:$0xff]
        %v508 = vld [vmem:[%s456 + $0x98] sm:$0xff]
        %v509 = vld [vmem:[%s456 + $0xa0] sm:$0xff]
        %v510 = vld [vmem:[%s456 + $0xa8] sm:$0xff]
        %v511 = vld [vmem:[%s456 + $0xb0] sm:$0xff]
        %v512 = vld [vmem:[%s456 + $0xb8] sm:$0xff]
        %v513 = vld [vmem:[%s456 + $0xc0] sm:$0xff]
        %v514 = vld [vmem:[%s456 + $0xc8] sm:$0xff]
        %v515 = vld [vmem:[%s456 + $0xd0] sm:$0xff]
        %v516 = vld [vmem:[%s456 + $0xd8] sm:$0xff]
        %v517 = vld [vmem:[%s456 + $0xe0] sm:$0xff]
        %v518 = vld [vmem:[%s456 + $0xe8] sm:$0xff]
        %v519 = vld [vmem:[%s456 + $0xf0] sm:$0xff]
        %v520 = vld [vmem:[%s456 + $0xf8] sm:$0xff]
        %v521 = vld [vmem:[%s1] sm:$0xff]
        %v522 = vld [vmem:[%s1 + $0x8] sm:$0xff]
        %v523 = vld [vmem:[%s1 + $0x10] sm:$0xff]
        %v524 = vld [vmem:[%s1 + $0x18] sm:$0xff]
        %v525 = vld [vmem:[%s1 + $0x20] sm:$0xff]
        %v526 = vld [vmem:[%s1 + $0x28] sm:$0xff]
        %v527 = vld [vmem:[%s1 + $0x30] sm:$0xff]
        %v528 = vld [vmem:[%s1 + $0x38] sm:$0xff]
        %s529 = scalar_lea.vmem %s1, 64
        %v530 = vld [vmem:[%s529] sm:$0xff]
        %v531 = vld [vmem:[%s529 + $0x8] sm:$0xff]
        %v532 = vld [vmem:[%s529 + $0x10] sm:$0xff]
        %v533 = vld [vmem:[%s529 + $0x18] sm:$0xff]
        %v534 = vld [vmem:[%s529 + $0x20] sm:$0xff]
        %v535 = vld [vmem:[%s529 + $0x28] sm:$0xff]
        %v536 = vld [vmem:[%s529 + $0x30] sm:$0xff]
        %v537 = vld [vmem:[%s529 + $0x38] sm:$0xff]
        %vm538 = vcmask 261120
        %v540 = vsel %vm538, %v490, 0
        %v543 = vsel %vm538, %v491, 0
        %v546 = vsel %vm538, %v492, 0
        %v549 = vsel %vm538, %v493, 0
        %v552 = vsel %vm538, %v494, 0
        %v555 = vsel %vm538, %v495, 0
        %v558 = vsel %vm538, %v496, 0
        %v561 = vsel %vm538, %v497, 0
        %v564 = vsel %vm538, %v498, 0
        %v567 = vsel %vm538, %v499, 0
        %v570 = vsel %vm538, %v500, 0
        %v573 = vsel %vm538, %v501, 0
        %v576 = vsel %vm538, %v502, 0
        %v579 = vsel %vm538, %v503, 0
        %v582 = vsel %vm538, %v504, 0
        %v585 = vsel %vm538, %v505, 0
        %v588 = vsel %vm538, %v506, 0
        %v591 = vsel %vm538, %v507, 0
        %v594 = vsel %vm538, %v508, 0
        %v597 = vsel %vm538, %v509, 0
        %v600 = vsel %vm538, %v510, 0
        %v603 = vsel %vm538, %v511, 0
        %v606 = vsel %vm538, %v512, 0
        %v609 = vsel %vm538, %v513, 0
        %v612 = vsel %vm538, %v514, 0
        %v615 = vsel %vm538, %v515, 0
        %v618 = vsel %vm538, %v516, 0
        %v621 = vsel %vm538, %v517, 0
        %623 = vmatprep.subr.mxu0 %v531
        %624 = vmatpush1.msra.mxu0 %v530
        %625 = vmatprep.subr.mxu0 %v533
        %626 = vmatpush1.msra.mxu0 %v532
        %627 = vmatprep.subr.mxu0 %v535
        %628 = vmatpush1.msra.mxu0 %v534
        %629 = vmatprep.subr.mxu0 %v537
        %630 = vmatpush1.msra.mxu0 %v536
        %631 = vmatprep.subr.mxu0 0.0
        %632 = vmatpush1.msra.mxu0 0.0
        %633 = vmatprep.subr.mxu0 0.0
        %634 = vmatpush1.msra.mxu0 0.0
        %635 = vmatprep.subr.mxu0 0.0
        %636 = vmatpush1.msra.mxu0 0.0
        %637 = vmatprep.subr.mxu0 0.0
        %638 = vmatpush1.msra.mxu0 0.0
        %639 = vmatprep.subr.mxu0 0.0
        %640 = vmatpush1.msra.mxu0 0.0
        %641 = vmatprep.subr.mxu0 0.0
        %642 = vmatpush1.msra.mxu0 0.0
        %643 = vmatprep.subr.mxu0 0.0
        %644 = vmatpush1.msra.mxu0 0.0
        %645 = vmatprep.subr.mxu0 0.0
        %646 = vmatpush1.msra.mxu0 0.0
        %647 = vmatprep.subr.mxu0 0.0
        %648 = vmatpush1.msra.mxu0 0.0
        %649 = vmatprep.subr.mxu0 0.0
        %650 = vmatpush1.msra.mxu0 0.0
        %651 = vmatprep.subr.mxu0 0.0
        %652 = vmatpush1.msra.mxu0 0.0
        %653 = vmatprep.subr.mxu0 0.0
        %654 = vmatpush1.msra.mxu0 0.0
        %655 = vmatprep.subr.mxu0 0.0
        %656 = vmatpush1.msra.mxu0 0.0
        %657 = vmatprep.subr.mxu0 0.0
        %658 = vmatpush1.msra.mxu0 0.0
        %659 = vmatprep.subr.mxu0 0.0
        %660 = vmatpush1.msra.mxu0 0.0
        %661 = vmatprep.subr.mxu0 0.0
        %662 = vmatpush1.msra.mxu0 0.0
        %663 = vmatprep.subr.mxu0 0.0
        %664 = vmatpush1.msra.mxu0 0.0
        %665 = vmatprep.subr.mxu0 0.0
        %666 = vmatpush1.msra.mxu0 0.0
        %667 = vmatprep.subr.mxu0 0.0
        %668 = vmatpush1.msra.mxu0 0.0
        %669 = vmatprep.subr.mxu0 0.0
        %670 = vmatpush1.msra.mxu0 0.0
        %671 = vmatprep.subr.mxu0 0.0
        %672 = vmatpush1.msra.mxu0 0.0
        %673 = vmatprep.subr.mxu0 0.0
        %674 = vmatpush1.msra.mxu0 0.0
        %675 = vmatprep.subr.mxu0 0.0
        %676 = vmatpush1.msra.mxu0 0.0
        %677 = vmatprep.subr.mxu0 0.0
        %678 = vmatpush1.msra.mxu0 0.0
        %679 = vmatprep.subr.mxu0 0.0
        %680 = vmatpush1.msra.mxu0 0.0
        %681 = vmatprep.subr.mxu0 0.0
        %682 = vmatpush1.msra.mxu0 0.0
        %683 = vmatprep.subr.mxu0 0.0
        %684 = vmatpush1.msra.mxu0 0.0
        %685 = vmatprep.subr.mxu0 0.0
        %686 = vmatpush1.msra.mxu0 0.0
        %687 = vmatprep.mubr.f32.mxu0 0.0
        %688 = vmatmul.mubr.f32.gmra.mrb[0].mxu0 %v540
        %v689 = vpop.f32.mrb[0].mxu0
        %v690 = vadd.f32 0.0, %v689
        %v691 = vpop.f32.mrb[0].mxu0
        %v692 = vadd.f32 0.0, %v691
        %693 = vmatprep.mubr.f32.mxu0 0.0
        %694 = vmatmul.mubr.f32.gmra.mrb[0].mxu0 %v543
        %v695 = vpop.f32.mrb[0].mxu0
        %v696 = vadd.f32 0.0, %v695
        %v697 = vpop.f32.mrb[0].mxu0
        %v698 = vadd.f32 0.0, %v697
        %699 = vmatprep.mubr.f32.mxu0 0.0
        %700 = vmatmul.mubr.f32.gmra.mrb[0].mxu0 %v546
        %v701 = vpop.f32.mrb[0].mxu0
        %v702 = vadd.f32 0.0, %v701
        %v703 = vpop.f32.mrb[0].mxu0
        %v704 = vadd.f32 0.0, %v703
        %705 = vmatprep.mubr.f32.mxu0 0.0
        %706 = vmatmul.mubr.f32.gmra.mrb[0].mxu0 %v549
        %v707 = vpop.f32.mrb[0].mxu0
        %v708 = vadd.f32 0.0, %v707
        %v709 = vpop.f32.mrb[0].mxu0
        %v710 = vadd.f32 0.0, %v709
        %711 = vmatprep.mubr.f32.mxu0 0.0
        %712 = vmatmul.mubr.f32.gmra.mrb[0].mxu0 %v552
        %v713 = vpop.f32.mrb[0].mxu0
        %v714 = vadd.f32 0.0, %v713
        %v715 = vpop.f32.mrb[0].mxu0
        %v716 = vadd.f32 0.0, %v715
        %717 = vmatprep.mubr.f32.mxu0 0.0
        %718 = vmatmul.mubr.f32.gmra.mrb[0].mxu0 %v555
        %v719 = vpop.f32.mrb[0].mxu0
        %v720 = vadd.f32 0.0, %v719
        %v721 = vpop.f32.mrb[0].mxu0
        %v722 = vadd.f32 0.0, %v721
        %723 = vmatprep.mubr.f32.mxu0 0.0
        %724 = vmatmul.mubr.f32.gmra.mrb[0].mxu0 %v558
        %v725 = vpop.f32.mrb[0].mxu0
        %v726 = vadd.f32 0.0, %v725
        %v727 = vpop.f32.mrb[0].mxu0
        %v728 = vadd.f32 0.0, %v727
        %729 = vmatprep.mubr.f32.mxu0 0.0
        %730 = vmatmul.mubr.f32.gmra.mrb[0].mxu0 %v561
        %v731 = vpop.f32.mrb[0].mxu0
        %v732 = vadd.f32 0.0, %v731
        %v733 = vpop.f32.mrb[0].mxu0
        %v734 = vadd.f32 0.0, %v733
        %735 = vmatprep.mubr.f32.mxu0 0.0
        %736 = vmatmul.mubr.f32.gmra.mrb[0].mxu0 %v564
        %v737 = vpop.f32.mrb[0].mxu0
        %v738 = vadd.f32 0.0, %v737
        %v739 = vpop.f32.mrb[0].mxu0
        %v740 = vadd.f32 0.0, %v739
        %741 = vmatprep.mubr.f32.mxu0 0.0
        %742 = vmatmul.mubr.f32.gmra.mrb[0].mxu0 %v567
        %v743 = vpop.f32.mrb[0].mxu0
        %v744 = vadd.f32 0.0, %v743
        %v745 = vpop.f32.mrb[0].mxu0
        %v746 = vadd.f32 0.0, %v745
        %747 = vmatprep.mubr.f32.mxu0 0.0
        %748 = vmatmul.mubr.f32.gmra.mrb[0].mxu0 %v570
        %v749 = vpop.f32.mrb[0].mxu0
        %v750 = vadd.f32 0.0, %v749
        %v751 = vpop.f32.mrb[0].mxu0
        %v752 = vadd.f32 0.0, %v751
        %753 = vmatprep.mubr.f32.mxu0 0.0
        %754 = vmatmul.mubr.f32.gmra.mrb[0].mxu0 %v573
        %v755 = vpop.f32.mrb[0].mxu0
        %v756 = vadd.f32 0.0, %v755
        %v757 = vpop.f32.mrb[0].mxu0
        %v758 = vadd.f32 0.0, %v757
        %759 = vmatprep.mubr.f32.mxu0 0.0
        %760 = vmatmul.mubr.f32.gmra.mrb[0].mxu0 %v576
        %v761 = vpop.f32.mrb[0].mxu0
        %v762 = vadd.f32 0.0, %v761
        %v763 = vpop.f32.mrb[0].mxu0
        %v764 = vadd.f32 0.0, %v763
        %765 = vmatprep.mubr.f32.mxu0 0.0
        %766 = vmatmul.mubr.f32.gmra.mrb[0].mxu0 %v579
        %v767 = vpop.f32.mrb[0].mxu0
        %v768 = vadd.f32 0.0, %v767
        %v769 = vpop.f32.mrb[0].mxu0
        %v770 = vadd.f32 0.0, %v769
        %771 = vmatprep.mubr.f32.mxu0 0.0
        %772 = vmatmul.mubr.f32.gmra.mrb[0].mxu0 %v582
        %v773 = vpop.f32.mrb[0].mxu0
        %v774 = vadd.f32 0.0, %v773
        %v775 = vpop.f32.mrb[0].mxu0
        %v776 = vadd.f32 0.0, %v775
        %777 = vmatprep.mubr.f32.mxu0 0.0
        %778 = vmatmul.mubr.f32.gmra.mrb[0].mxu0 %v585
        %v779 = vpop.f32.mrb[0].mxu0
        %v780 = vadd.f32 0.0, %v779
        %v781 = vpop.f32.mrb[0].mxu0
        %v782 = vadd.f32 0.0, %v781
        %783 = vmatprep.mubr.f32.mxu0 0.0
        %784 = vmatmul.mubr.f32.gmra.mrb[0].mxu0 %v588
        %v785 = vpop.f32.mrb[0].mxu0
        %v786 = vadd.f32 0.0, %v785
        %v787 = vpop.f32.mrb[0].mxu0
        %v788 = vadd.f32 0.0, %v787
        %789 = vmatprep.mubr.f32.mxu0 0.0
        %790 = vmatmul.mubr.f32.gmra.mrb[0].mxu0 %v591
        %v791 = vpop.f32.mrb[0].mxu0
        %v792 = vadd.f32 0.0, %v791
        %v793 = vpop.f32.mrb[0].mxu0
        %v794 = vadd.f32 0.0, %v793
        %795 = vmatprep.mubr.f32.mxu0 0.0
        %796 = vmatmul.mubr.f32.gmra.mrb[0].mxu0 %v594
        %v797 = vpop.f32.mrb[0].mxu0
        %v798 = vadd.f32 0.0, %v797
        %v799 = vpop.f32.mrb[0].mxu0
        %v800 = vadd.f32 0.0, %v799
        %801 = vmatprep.mubr.f32.mxu0 0.0
        %802 = vmatmul.mubr.f32.gmra.mrb[0].mxu0 %v597
        %v803 = vpop.f32.mrb[0].mxu0
        %v804 = vadd.f32 0.0, %v803
        %v805 = vpop.f32.mrb[0].mxu0
        %v806 = vadd.f32 0.0, %v805
        %807 = vmatprep.mubr.f32.mxu0 0.0
        %808 = vmatmul.mubr.f32.gmra.mrb[0].mxu0 %v600
        %v809 = vpop.f32.mrb[0].mxu0
        %v810 = vadd.f32 0.0, %v809
        %v811 = vpop.f32.mrb[0].mxu0
        %v812 = vadd.f32 0.0, %v811
        %813 = vmatprep.mubr.f32.mxu0 0.0
        %814 = vmatmul.mubr.f32.gmra.mrb[0].mxu0 %v603
        %v815 = vpop.f32.mrb[0].mxu0
        %v816 = vadd.f32 0.0, %v815
        %v817 = vpop.f32.mrb[0].mxu0
        %v818 = vadd.f32 0.0, %v817
        %819 = vmatprep.mubr.f32.mxu0 0.0
        %820 = vmatmul.mubr.f32.gmra.mrb[0].mxu0 %v606
        %v821 = vpop.f32.mrb[0].mxu0
        %v822 = vadd.f32 0.0, %v821
        %v823 = vpop.f32.mrb[0].mxu0
        %v824 = vadd.f32 0.0, %v823
        %825 = vmatprep.mubr.f32.mxu0 0.0
        %826 = vmatmul.mubr.f32.gmra.mrb[0].mxu0 %v609
        %v827 = vpop.f32.mrb[0].mxu0
        %v828 = vadd.f32 0.0, %v827
        %v829 = vpop.f32.mrb[0].mxu0
        %v830 = vadd.f32 0.0, %v829
        %831 = vmatprep.mubr.f32.mxu0 0.0
        %832 = vmatmul.mubr.f32.gmra.mrb[0].mxu0 %v612
        %v833 = vpop.f32.mrb[0].mxu0
        %v834 = vadd.f32 0.0, %v833
        %v835 = vpop.f32.mrb[0].mxu0
        %v836 = vadd.f32 0.0, %v835
        %837 = vmatprep.mubr.f32.mxu0 0.0
        %838 = vmatmul.mubr.f32.gmra.mrb[0].mxu0 %v615
        %v839 = vpop.f32.mrb[0].mxu0
        %v840 = vadd.f32 0.0, %v839
        %v841 = vpop.f32.mrb[0].mxu0
        %v842 = vadd.f32 0.0, %v841
        %843 = vmatprep.mubr.f32.mxu0 0.0
        %844 = vmatmul.mubr.f32.gmra.mrb[0].mxu0 %v618
        %v845 = vpop.f32.mrb[0].mxu0
        %v846 = vadd.f32 0.0, %v845
        %v847 = vpop.f32.mrb[0].mxu0
        %v848 = vadd.f32 0.0, %v847
        %849 = vmatprep.mubr.f32.mxu0 0.0
        %850 = vmatmul.mubr.f32.gmra.mrb[0].mxu0 %v621
        %v851 = vpop.f32.mrb[0].mxu0
        %v852 = vadd.f32 0.0, %v851
        %v853 = vpop.f32.mrb[0].mxu0
        %v854 = vadd.f32 0.0, %v853
        %855 = vdwg.mxu0
        %v857 = vsel %vm538, %v489, 0
        %859 = vmatprep.subr.mxu0 %v522
        %860 = vmatpush1.msra.mxu0 %v521
        %861 = vmatprep.subr.mxu0 %v524
        %862 = vmatpush1.msra.mxu0 %v523
        %863 = vmatprep.subr.mxu0 %v526
        %864 = vmatpush1.msra.mxu0 %v525
        %865 = vmatprep.subr.mxu0 %v528
        %866 = vmatpush1.msra.mxu0 %v527
        %867 = vmatprep.subr.mxu0 0.0
        %868 = vmatpush1.msra.mxu0 0.0
        %869 = vmatprep.subr.mxu0 0.0
        %870 = vmatpush1.msra.mxu0 0.0
        %871 = vmatprep.subr.mxu0 0.0
        %872 = vmatpush1.msra.mxu0 0.0
        %873 = vmatprep.subr.mxu0 0.0
        %874 = vmatpush1.msra.mxu0 0.0
        %875 = vmatprep.subr.mxu0 0.0
        %876 = vmatpush1.msra.mxu0 0.0
        %877 = vmatprep.subr.mxu0 0.0
        %878 = vmatpush1.msra.mxu0 0.0
        %879 = vmatprep.subr.mxu0 0.0
        %880 = vmatpush1.msra.mxu0 0.0
        %881 = vmatprep.subr.mxu0 0.0
        %882 = vmatpush1.msra.mxu0 0.0
        %883 = vmatprep.subr.mxu0 0.0
        %884 = vmatpush1.msra.mxu0 0.0
        %885 = vmatprep.subr.mxu0 0.0
        %886 = vmatpush1.msra.mxu0 0.0
        %887 = vmatprep.subr.mxu0 0.0
        %888 = vmatpush1.msra.mxu0 0.0
        %889 = vmatprep.subr.mxu0 0.0
        %890 = vmatpush1.msra.mxu0 0.0
        %891 = vmatprep.subr.mxu0 0.0
        %892 = vmatpush1.msra.mxu0 0.0
        %893 = vmatprep.subr.mxu0 0.0
        %894 = vmatpush1.msra.mxu0 0.0
        %895 = vmatprep.subr.mxu0 0.0
        %896 = vmatpush1.msra.mxu0 0.0
        %897 = vmatprep.subr.mxu0 0.0
        %898 = vmatpush1.msra.mxu0 0.0
        %899 = vmatprep.subr.mxu0 0.0
        %900 = vmatpush1.msra.mxu0 0.0
        %901 = vmatprep.subr.mxu0 0.0
        %902 = vmatpush1.msra.mxu0 0.0
        %903 = vmatprep.subr.mxu0 0.0
        %904 = vmatpush1.msra.mxu0 0.0
        %905 = vmatprep.subr.mxu0 0.0
        %906 = vmatpush1.msra.mxu0 0.0
        %907 = vmatprep.subr.mxu0 0.0
        %908 = vmatpush1.msra.mxu0 0.0
        %909 = vmatprep.subr.mxu0 0.0
        %910 = vmatpush1.msra.mxu0 0.0
        %911 = vmatprep.subr.mxu0 0.0
        %912 = vmatpush1.msra.mxu0 0.0
        %913 = vmatprep.subr.mxu0 0.0
        %914 = vmatpush1.msra.mxu0 0.0
        %915 = vmatprep.subr.mxu0 0.0
        %916 = vmatpush1.msra.mxu0 0.0
        %917 = vmatprep.subr.mxu0 0.0
        %918 = vmatpush1.msra.mxu0 0.0
        %919 = vmatprep.subr.mxu0 0.0
        %920 = vmatpush1.msra.mxu0 0.0
        %921 = vmatprep.subr.mxu0 0.0
        %922 = vmatpush1.msra.mxu0 0.0
        %923 = vmatprep.mubr.f32.mxu0 0.0
        %924 = vmatmul.mubr.f32.gmra.mrb[0].mxu0 %v857
        %v925 = vpop.f32.mrb[0].mxu0
        %v926 = vadd.f32 %v690, %v925
        %v927 = vpop.f32.mrb[0].mxu0
        %v928 = vadd.f32 %v692, %v927
        %929 = vmatprep.mubr.f32.mxu0 0.0
        %930 = vmatmul.mubr.f32.gmra.mrb[0].mxu0 %v540
        %v931 = vpop.f32.mrb[0].mxu0
        %v932 = vadd.f32 %v696, %v931
        %v933 = vpop.f32.mrb[0].mxu0
        %v934 = vadd.f32 %v698, %v933
        %935 = vmatprep.mubr.f32.mxu0 0.0
        %936 = vmatmul.mubr.f32.gmra.mrb[0].mxu0 %v543
        %v937 = vpop.f32.mrb[0].mxu0
        %v938 = vadd.f32 %v702, %v937
        %v939 = vpop.f32.mrb[0].mxu0
        %v940 = vadd.f32 %v704, %v939
        %941 = vmatprep.mubr.f32.mxu0 0.0
        %942 = vmatmul.mubr.f32.gmra.mrb[0].mxu0 %v546
        %v943 = vpop.f32.mrb[0].mxu0
        %v944 = vadd.f32 %v708, %v943
        %v945 = vpop.f32.mrb[0].mxu0
        %v946 = vadd.f32 %v710, %v945
        %947 = vmatprep.mubr.f32.mxu0 0.0
        %948 = vmatmul.mubr.f32.gmra.mrb[0].mxu0 %v549
        %v949 = vpop.f32.mrb[0].mxu0
        %v950 = vadd.f32 %v714, %v949
        %v951 = vpop.f32.mrb[0].mxu0
        %v952 = vadd.f32 %v716, %v951
        %953 = vmatprep.mubr.f32.mxu0 0.0
        %954 = vmatmul.mubr.f32.gmra.mrb[0].mxu0 %v552
        %v955 = vpop.f32.mrb[0].mxu0
        %v956 = vadd.f32 %v720, %v955
        %v957 = vpop.f32.mrb[0].mxu0
        %v958 = vadd.f32 %v722, %v957
        %959 = vmatprep.mubr.f32.mxu0 0.0
        %960 = vmatmul.mubr.f32.gmra.mrb[0].mxu0 %v555
        %v961 = vpop.f32.mrb[0].mxu0
        %v962 = vadd.f32 %v726, %v961
        %v963 = vpop.f32.mrb[0].mxu0
        %v964 = vadd.f32 %v728, %v963
        %965 = vmatprep.mubr.f32.mxu0 0.0
        %966 = vmatmul.mubr.f32.gmra.mrb[0].mxu0 %v558
        %v967 = vpop.f32.mrb[0].mxu0
        %v968 = vadd.f32 %v732, %v967
        %v969 = vpop.f32.mrb[0].mxu0
        %v970 = vadd.f32 %v734, %v969
        %971 = vmatprep.mubr.f32.mxu0 0.0
        %972 = vmatmul.mubr.f32.gmra.mrb[0].mxu0 %v561
        %v973 = vpop.f32.mrb[0].mxu0
        %v974 = vadd.f32 %v738, %v973
        %v975 = vpop.f32.mrb[0].mxu0
        %v976 = vadd.f32 %v740, %v975
        %977 = vmatprep.mubr.f32.mxu0 0.0
        %978 = vmatmul.mubr.f32.gmra.mrb[0].mxu0 %v564
        %v979 = vpop.f32.mrb[0].mxu0
        %v980 = vadd.f32 %v744, %v979
        %v981 = vpop.f32.mrb[0].mxu0
        %v982 = vadd.f32 %v746, %v981
        %983 = vmatprep.mubr.f32.mxu0 0.0
        %984 = vmatmul.mubr.f32.gmra.mrb[0].mxu0 %v567
        %v985 = vpop.f32.mrb[0].mxu0
        %v986 = vadd.f32 %v750, %v985
        %v987 = vpop.f32.mrb[0].mxu0
        %v988 = vadd.f32 %v752, %v987
        %989 = vmatprep.mubr.f32.mxu0 0.0
        %990 = vmatmul.mubr.f32.gmra.mrb[0].mxu0 %v570
        %v991 = vpop.f32.mrb[0].mxu0
        %v992 = vadd.f32 %v756, %v991
        %v993 = vpop.f32.mrb[0].mxu0
        %v994 = vadd.f32 %v758, %v993
        %995 = vmatprep.mubr.f32.mxu0 0.0
        %996 = vmatmul.mubr.f32.gmra.mrb[0].mxu0 %v573
        %v997 = vpop.f32.mrb[0].mxu0
        %v998 = vadd.f32 %v762, %v997
        %v999 = vpop.f32.mrb[0].mxu0
        %v1000 = vadd.f32 %v764, %v999
        %1001 = vmatprep.mubr.f32.mxu0 0.0
        %1002 = vmatmul.mubr.f32.gmra.mrb[0].mxu0 %v576
        %v1003 = vpop.f32.mrb[0].mxu0
        %v1004 = vadd.f32 %v768, %v1003
        %v1005 = vpop.f32.mrb[0].mxu0
        %v1006 = vadd.f32 %v770, %v1005
        %1007 = vmatprep.mubr.f32.mxu0 0.0
        %1008 = vmatmul.mubr.f32.gmra.mrb[0].mxu0 %v579
        %v1009 = vpop.f32.mrb[0].mxu0
        %v1010 = vadd.f32 %v774, %v1009
        %v1011 = vpop.f32.mrb[0].mxu0
        %v1012 = vadd.f32 %v776, %v1011
        %1013 = vmatprep.mubr.f32.mxu0 0.0
        %1014 = vmatmul.mubr.f32.gmra.mrb[0].mxu0 %v582
        %v1015 = vpop.f32.mrb[0].mxu0
        %v1016 = vadd.f32 %v780, %v1015
        %v1017 = vpop.f32.mrb[0].mxu0
        %v1018 = vadd.f32 %v782, %v1017
        %1019 = vmatprep.mubr.f32.mxu0 0.0
        %1020 = vmatmul.mubr.f32.gmra.mrb[0].mxu0 %v585
        %v1021 = vpop.f32.mrb[0].mxu0
        %v1022 = vadd.f32 %v786, %v1021
        %v1023 = vpop.f32.mrb[0].mxu0
        %v1024 = vadd.f32 %v788, %v1023
        %1025 = vmatprep.mubr.f32.mxu0 0.0
        %1026 = vmatmul.mubr.f32.gmra.mrb[0].mxu0 %v588
        %v1027 = vpop.f32.mrb[0].mxu0
        %v1028 = vadd.f32 %v792, %v1027
        %v1029 = vpop.f32.mrb[0].mxu0
        %v1030 = vadd.f32 %v794, %v1029
        %1031 = vmatprep.mubr.f32.mxu0 0.0
        %1032 = vmatmul.mubr.f32.gmra.mrb[0].mxu0 %v591
        %v1033 = vpop.f32.mrb[0].mxu0
        %v1034 = vadd.f32 %v798, %v1033
        %v1035 = vpop.f32.mrb[0].mxu0
        %v1036 = vadd.f32 %v800, %v1035
        %1037 = vmatprep.mubr.f32.mxu0 0.0
        %1038 = vmatmul.mubr.f32.gmra.mrb[0].mxu0 %v594
        %v1039 = vpop.f32.mrb[0].mxu0
        %v1040 = vadd.f32 %v804, %v1039
        %v1041 = vpop.f32.mrb[0].mxu0
        %v1042 = vadd.f32 %v806, %v1041
        %1043 = vmatprep.mubr.f32.mxu0 0.0
        %1044 = vmatmul.mubr.f32.gmra.mrb[0].mxu0 %v597
        %v1045 = vpop.f32.mrb[0].mxu0
        %v1046 = vadd.f32 %v810, %v1045
        %v1047 = vpop.f32.mrb[0].mxu0
        %v1048 = vadd.f32 %v812, %v1047
        %1049 = vmatprep.mubr.f32.mxu0 0.0
        %1050 = vmatmul.mubr.f32.gmra.mrb[0].mxu0 %v600
        %v1051 = vpop.f32.mrb[0].mxu0
        %v1052 = vadd.f32 %v816, %v1051
        %v1053 = vpop.f32.mrb[0].mxu0
        %v1054 = vadd.f32 %v818, %v1053
        %1055 = vmatprep.mubr.f32.mxu0 0.0
        %1056 = vmatmul.mubr.f32.gmra.mrb[0].mxu0 %v603
        %v1057 = vpop.f32.mrb[0].mxu0
        %v1058 = vadd.f32 %v822, %v1057
        %v1059 = vpop.f32.mrb[0].mxu0
        %v1060 = vadd.f32 %v824, %v1059
        %1061 = vmatprep.mubr.f32.mxu0 0.0
        %1062 = vmatmul.mubr.f32.gmra.mrb[0].mxu0 %v606
        %v1063 = vpop.f32.mrb[0].mxu0
        %v1064 = vadd.f32 %v828, %v1063
        %v1065 = vpop.f32.mrb[0].mxu0
        %v1066 = vadd.f32 %v830, %v1065
        %1067 = vmatprep.mubr.f32.mxu0 0.0
        %1068 = vmatmul.mubr.f32.gmra.mrb[0].mxu0 %v609
        %v1069 = vpop.f32.mrb[0].mxu0
        %v1070 = vadd.f32 %v834, %v1069
        %v1071 = vpop.f32.mrb[0].mxu0
        %v1072 = vadd.f32 %v836, %v1071
        %1073 = vmatprep.mubr.f32.mxu0 0.0
        %1074 = vmatmul.mubr.f32.gmra.mrb[0].mxu0 %v612
        %v1075 = vpop.f32.mrb[0].mxu0
        %v1076 = vadd.f32 %v840, %v1075
        %v1077 = vpop.f32.mrb[0].mxu0
        %v1078 = vadd.f32 %v842, %v1077
        %1079 = vmatprep.mubr.f32.mxu0 0.0
        %1080 = vmatmul.mubr.f32.gmra.mrb[0].mxu0 %v615
        %v1081 = vpop.f32.mrb[0].mxu0
        %v1082 = vadd.f32 %v846, %v1081
        %v1083 = vpop.f32.mrb[0].mxu0
        %v1084 = vadd.f32 %v848, %v1083
        %1085 = vmatprep.mubr.f32.mxu0 0.0
        %1086 = vmatmul.mubr.f32.gmra.mrb[0].mxu0 %v618
        %v1087 = vpop.f32.mrb[0].mxu0
        %v1088 = vadd.f32 %v852, %v1087
        %v1089 = vpop.f32.mrb[0].mxu0
        %v1090 = vadd.f32 %v854, %v1089
        %1091 = vdwg.mxu0
        %s1092 = scalar_lea.vmem %s1, 128
        %v1093 = vld [vmem:[%s1092] sm:$0xff]
        %v1094 = vld [vmem:[%s1092 + $0x8] sm:$0xff]
        %v1095 = vld [vmem:[%s1092 + $0x10] sm:$0xff]
        %v1096 = vld [vmem:[%s1092 + $0x18] sm:$0xff]
        %v1097 = vld [vmem:[%s1092 + $0x20] sm:$0xff]
        %v1098 = vld [vmem:[%s1092 + $0x28] sm:$0xff]
        %v1099 = vld [vmem:[%s1092 + $0x30] sm:$0xff]
        %v1100 = vld [vmem:[%s1092 + $0x38] sm:$0xff]
        %v1102 = vsel %vm538, %v518, 0
        %1104 = vmatprep.subr.mxu0 %v1094
        %1105 = vmatpush1.msra.mxu0 %v1093
        %1106 = vmatprep.subr.mxu0 %v1096
        %1107 = vmatpush1.msra.mxu0 %v1095
        %1108 = vmatprep.subr.mxu0 %v1098
        %1109 = vmatpush1.msra.mxu0 %v1097
        %1110 = vmatprep.subr.mxu0 %v1100
        %1111 = vmatpush1.msra.mxu0 %v1099
        %1112 = vmatprep.subr.mxu0 0.0
        %1113 = vmatpush1.msra.mxu0 0.0
        %1114 = vmatprep.subr.mxu0 0.0
        %1115 = vmatpush1.msra.mxu0 0.0
        %1116 = vmatprep.subr.mxu0 0.0
        %1117 = vmatpush1.msra.mxu0 0.0
        %1118 = vmatprep.subr.mxu0 0.0
        %1119 = vmatpush1.msra.mxu0 0.0
        %1120 = vmatprep.subr.mxu0 0.0
        %1121 = vmatpush1.msra.mxu0 0.0
        %1122 = vmatprep.subr.mxu0 0.0
        %1123 = vmatpush1.msra.mxu0 0.0
        %1124 = vmatprep.subr.mxu0 0.0
        %1125 = vmatpush1.msra.mxu0 0.0
        %1126 = vmatprep.subr.mxu0 0.0
        %1127 = vmatpush1.msra.mxu0 0.0
        %1128 = vmatprep.subr.mxu0 0.0
        %1129 = vmatpush1.msra.mxu0 0.0
        %1130 = vmatprep.subr.mxu0 0.0
        %1131 = vmatpush1.msra.mxu0 0.0
        %1132 = vmatprep.subr.mxu0 0.0
        %1133 = vmatpush1.msra.mxu0 0.0
        %1134 = vmatprep.subr.mxu0 0.0
        %1135 = vmatpush1.msra.mxu0 0.0
        %1136 = vmatprep.subr.mxu0 0.0
        %1137 = vmatpush1.msra.mxu0 0.0
        %1138 = vmatprep.subr.mxu0 0.0
        %1139 = vmatpush1.msra.mxu0 0.0
        %1140 = vmatprep.subr.mxu0 0.0
        %1141 = vmatpush1.msra.mxu0 0.0
        %1142 = vmatprep.subr.mxu0 0.0
        %1143 = vmatpush1.msra.mxu0 0.0
        %1144 = vmatprep.subr.mxu0 0.0
        %1145 = vmatpush1.msra.mxu0 0.0
        %1146 = vmatprep.subr.mxu0 0.0
        %1147 = vmatpush1.msra.mxu0 0.0
        %1148 = vmatprep.subr.mxu0 0.0
        %1149 = vmatpush1.msra.mxu0 0.0
        %1150 = vmatprep.subr.mxu0 0.0
        %1151 = vmatpush1.msra.mxu0 0.0
        %1152 = vmatprep.subr.mxu0 0.0
        %1153 = vmatpush1.msra.mxu0 0.0
        %1154 = vmatprep.subr.mxu0 0.0
        %1155 = vmatpush1.msra.mxu0 0.0
        %1156 = vmatprep.subr.mxu0 0.0
        %1157 = vmatpush1.msra.mxu0 0.0
        %1158 = vmatprep.subr.mxu0 0.0
        %1159 = vmatpush1.msra.mxu0 0.0
        %1160 = vmatprep.subr.mxu0 0.0
        %1161 = vmatpush1.msra.mxu0 0.0
        %1162 = vmatprep.subr.mxu0 0.0
        %1163 = vmatpush1.msra.mxu0 0.0
        %1164 = vmatprep.subr.mxu0 0.0
        %1165 = vmatpush1.msra.mxu0 0.0
        %1166 = vmatprep.subr.mxu0 0.0
        %1167 = vmatpush1.msra.mxu0 0.0
        %1168 = vmatprep.mubr.f32.mxu0 0.0
        %1169 = vmatmul.mubr.f32.gmra.mrb[0].mxu0 %v543
        %v1170 = vpop.f32.mrb[0].mxu0
        %v1171 = vadd.f32 0.0, %v1170
        %v1172 = vpop.f32.mrb[0].mxu0
        %v1173 = vadd.f32 0.0, %v1172
        %1174 = vmatprep.mubr.f32.mxu0 0.0
        %1175 = vmatmul.mubr.f32.gmra.mrb[0].mxu0 %v546
        %v1176 = vpop.f32.mrb[0].mxu0
        %v1177 = vadd.f32 0.0, %v1176
        %v1178 = vpop.f32.mrb[0].mxu0
        %v1179 = vadd.f32 0.0, %v1178
        %1180 = vmatprep.mubr.f32.mxu0 0.0
        %1181 = vmatmul.mubr.f32.gmra.mrb[0].mxu0 %v549
        %v1182 = vpop.f32.mrb[0].mxu0
        %v1183 = vadd.f32 0.0, %v1182
        %v1184 = vpop.f32.mrb[0].mxu0
        %v1185 = vadd.f32 0.0, %v1184
        %1186 = vmatprep.mubr.f32.mxu0 0.0
        %1187 = vmatmul.mubr.f32.gmra.mrb[0].mxu0 %v552
        %v1188 = vpop.f32.mrb[0].mxu0
        %v1189 = vadd.f32 0.0, %v1188
        %v1190 = vpop.f32.mrb[0].mxu0
        %v1191 = vadd.f32 0.0, %v1190
        %1192 = vmatprep.mubr.f32.mxu0 0.0
        %1193 = vmatmul.mubr.f32.gmra.mrb[0].mxu0 %v555
        %v1194 = vpop.f32.mrb[0].mxu0
        %v1195 = vadd.f32 0.0, %v1194
        %v1196 = vpop.f32.mrb[0].mxu0
        %v1197 = vadd.f32 0.0, %v1196
        %1198 = vmatprep.mubr.f32.mxu0 0.0
        %1199 = vmatmul.mubr.f32.gmra.mrb[0].mxu0 %v558
        %v1200 = vpop.f32.mrb[0].mxu0
        %v1201 = vadd.f32 0.0, %v1200
        %v1202 = vpop.f32.mrb[0].mxu0
        %v1203 = vadd.f32 0.0, %v1202
        %1204 = vmatprep.mubr.f32.mxu0 0.0
        %1205 = vmatmul.mubr.f32.gmra.mrb[0].mxu0 %v561
        %v1206 = vpop.f32.mrb[0].mxu0
        %v1207 = vadd.f32 0.0, %v1206
        %v1208 = vpop.f32.mrb[0].mxu0
        %v1209 = vadd.f32 0.0, %v1208
        %1210 = vmatprep.mubr.f32.mxu0 0.0
        %1211 = vmatmul.mubr.f32.gmra.mrb[0].mxu0 %v564
        %v1212 = vpop.f32.mrb[0].mxu0
        %v1213 = vadd.f32 0.0, %v1212
        %v1214 = vpop.f32.mrb[0].mxu0
        %v1215 = vadd.f32 0.0, %v1214
        %1216 = vmatprep.mubr.f32.mxu0 0.0
        %1217 = vmatmul.mubr.f32.gmra.mrb[0].mxu0 %v567
        %v1218 = vpop.f32.mrb[0].mxu0
        %v1219 = vadd.f32 0.0, %v1218
        %v1220 = vpop.f32.mrb[0].mxu0
        %v1221 = vadd.f32 0.0, %v1220
        %1222 = vmatprep.mubr.f32.mxu0 0.0
        %1223 = vmatmul.mubr.f32.gmra.mrb[0].mxu0 %v570
        %v1224 = vpop.f32.mrb[0].mxu0
        %v1225 = vadd.f32 0.0, %v1224
        %v1226 = vpop.f32.mrb[0].mxu0
        %v1227 = vadd.f32 0.0, %v1226
        %1228 = vmatprep.mubr.f32.mxu0 0.0
        %1229 = vmatmul.mubr.f32.gmra.mrb[0].mxu0 %v573
        %v1230 = vpop.f32.mrb[0].mxu0
        %v1231 = vadd.f32 0.0, %v1230
        %v1232 = vpop.f32.mrb[0].mxu0
        %v1233 = vadd.f32 0.0, %v1232
        %1234 = vmatprep.mubr.f32.mxu0 0.0
        %1235 = vmatmul.mubr.f32.gmra.mrb[0].mxu0 %v576
        %v1236 = vpop.f32.mrb[0].mxu0
        %v1237 = vadd.f32 0.0, %v1236
        %v1238 = vpop.f32.mrb[0].mxu0
        %v1239 = vadd.f32 0.0, %v1238
        %1240 = vmatprep.mubr.f32.mxu0 0.0
        %1241 = vmatmul.mubr.f32.gmra.mrb[0].mxu0 %v579
        %v1242 = vpop.f32.mrb[0].mxu0
        %v1243 = vadd.f32 0.0, %v1242
        %v1244 = vpop.f32.mrb[0].mxu0
        %v1245 = vadd.f32 0.0, %v1244
        %1246 = vmatprep.mubr.f32.mxu0 0.0
        %1247 = vmatmul.mubr.f32.gmra.mrb[0].mxu0 %v582
        %v1248 = vpop.f32.mrb[0].mxu0
        %v1249 = vadd.f32 0.0, %v1248
        %v1250 = vpop.f32.mrb[0].mxu0
        %v1251 = vadd.f32 0.0, %v1250
        %1252 = vmatprep.mubr.f32.mxu0 0.0
        %1253 = vmatmul.mubr.f32.gmra.mrb[0].mxu0 %v585
        %v1254 = vpop.f32.mrb[0].mxu0
        %v1255 = vadd.f32 0.0, %v1254
        %v1256 = vpop.f32.mrb[0].mxu0
        %v1257 = vadd.f32 0.0, %v1256
        %1258 = vmatprep.mubr.f32.mxu0 0.0
        %1259 = vmatmul.mubr.f32.gmra.mrb[0].mxu0 %v588
        %v1260 = vpop.f32.mrb[0].mxu0
        %v1261 = vadd.f32 0.0, %v1260
        %v1262 = vpop.f32.mrb[0].mxu0
        %v1263 = vadd.f32 0.0, %v1262
        %1264 = vmatprep.mubr.f32.mxu0 0.0
        %1265 = vmatmul.mubr.f32.gmra.mrb[0].mxu0 %v591
        %v1266 = vpop.f32.mrb[0].mxu0
        %v1267 = vadd.f32 0.0, %v1266
        %v1268 = vpop.f32.mrb[0].mxu0
        %v1269 = vadd.f32 0.0, %v1268
        %1270 = vmatprep.mubr.f32.mxu0 0.0
        %1271 = vmatmul.mubr.f32.gmra.mrb[0].mxu0 %v594
        %v1272 = vpop.f32.mrb[0].mxu0
        %v1273 = vadd.f32 0.0, %v1272
        %v1274 = vpop.f32.mrb[0].mxu0
        %v1275 = vadd.f32 0.0, %v1274
        %1276 = vmatprep.mubr.f32.mxu0 0.0
        %1277 = vmatmul.mubr.f32.gmra.mrb[0].mxu0 %v597
        %v1278 = vpop.f32.mrb[0].mxu0
        %v1279 = vadd.f32 0.0, %v1278
        %v1280 = vpop.f32.mrb[0].mxu0
        %v1281 = vadd.f32 0.0, %v1280
        %1282 = vmatprep.mubr.f32.mxu0 0.0
        %1283 = vmatmul.mubr.f32.gmra.mrb[0].mxu0 %v600
        %v1284 = vpop.f32.mrb[0].mxu0
        %v1285 = vadd.f32 0.0, %v1284
        %v1286 = vpop.f32.mrb[0].mxu0
        %v1287 = vadd.f32 0.0, %v1286
        %1288 = vmatprep.mubr.f32.mxu0 0.0
        %1289 = vmatmul.mubr.f32.gmra.mrb[0].mxu0 %v603
        %v1290 = vpop.f32.mrb[0].mxu0
        %v1291 = vadd.f32 0.0, %v1290
        %v1292 = vpop.f32.mrb[0].mxu0
        %v1293 = vadd.f32 0.0, %v1292
        %1294 = vmatprep.mubr.f32.mxu0 0.0
        %1295 = vmatmul.mubr.f32.gmra.mrb[0].mxu0 %v606
        %v1296 = vpop.f32.mrb[0].mxu0
        %v1297 = vadd.f32 0.0, %v1296
        %v1298 = vpop.f32.mrb[0].mxu0
        %v1299 = vadd.f32 0.0, %v1298
        %1300 = vmatprep.mubr.f32.mxu0 0.0
        %1301 = vmatmul.mubr.f32.gmra.mrb[0].mxu0 %v609
        %v1302 = vpop.f32.mrb[0].mxu0
        %v1303 = vadd.f32 0.0, %v1302
        %v1304 = vpop.f32.mrb[0].mxu0
        %v1305 = vadd.f32 0.0, %v1304
        %1306 = vmatprep.mubr.f32.mxu0 0.0
        %1307 = vmatmul.mubr.f32.gmra.mrb[0].mxu0 %v612
        %v1308 = vpop.f32.mrb[0].mxu0
        %v1309 = vadd.f32 0.0, %v1308
        %v1310 = vpop.f32.mrb[0].mxu0
        %v1311 = vadd.f32 0.0, %v1310
        %1312 = vmatprep.mubr.f32.mxu0 0.0
        %1313 = vmatmul.mubr.f32.gmra.mrb[0].mxu0 %v615
        %v1314 = vpop.f32.mrb[0].mxu0
        %v1315 = vadd.f32 0.0, %v1314
        %v1316 = vpop.f32.mrb[0].mxu0
        %v1317 = vadd.f32 0.0, %v1316
        %1318 = vmatprep.mubr.f32.mxu0 0.0
        %1319 = vmatmul.mubr.f32.gmra.mrb[0].mxu0 %v618
        %v1320 = vpop.f32.mrb[0].mxu0
        %v1321 = vadd.f32 0.0, %v1320
        %v1322 = vpop.f32.mrb[0].mxu0
        %v1323 = vadd.f32 0.0, %v1322
        %1324 = vmatprep.mubr.f32.mxu0 0.0
        %1325 = vmatmul.mubr.f32.gmra.mrb[0].mxu0 %v621
        %v1326 = vpop.f32.mrb[0].mxu0
        %v1327 = vadd.f32 0.0, %v1326
        %v1328 = vpop.f32.mrb[0].mxu0
        %v1329 = vadd.f32 0.0, %v1328
        %1330 = vmatprep.mubr.f32.mxu0 0.0
        %1331 = vmatmul.mubr.f32.gmra.mrb[0].mxu0 %v1102
        %v1332 = vpop.f32.mrb[0].mxu0
        %v1333 = vadd.f32 0.0, %v1332
        %v1334 = vpop.f32.mrb[0].mxu0
        %v1335 = vadd.f32 0.0, %v1334
        %1336 = vdwg.mxu0
        %v1337 = vadd.f32 %v926, %v1171
        %v1338 = vadd.f32 %v928, %v1173
        %v1339 = vadd.f32 %v932, %v1177
        %v1340 = vadd.f32 %v934, %v1179
        %v1341 = vadd.f32 %v938, %v1183
        %v1342 = vadd.f32 %v940, %v1185
        %v1343 = vadd.f32 %v944, %v1189
        %v1344 = vadd.f32 %v946, %v1191
        %v1345 = vadd.f32 %v950, %v1195
        %v1346 = vadd.f32 %v952, %v1197
        %v1347 = vadd.f32 %v956, %v1201
        %v1348 = vadd.f32 %v958, %v1203
        %v1349 = vadd.f32 %v962, %v1207
        %v1350 = vadd.f32 %v964, %v1209
        %v1351 = vadd.f32 %v968, %v1213
        %v1352 = vadd.f32 %v970, %v1215
        %v1353 = vadd.f32 %v974, %v1219
        %v1354 = vadd.f32 %v976, %v1221
        %v1355 = vadd.f32 %v980, %v1225
        %v1356 = vadd.f32 %v982, %v1227
        %v1357 = vadd.f32 %v986, %v1231
        %v1358 = vadd.f32 %v988, %v1233
        %v1359 = vadd.f32 %v992, %v1237
        %v1360 = vadd.f32 %v994, %v1239
        %v1361 = vadd.f32 %v998, %v1243
        %v1362 = vadd.f32 %v1000, %v1245
        %v1363 = vadd.f32 %v1004, %v1249
        %v1364 = vadd.f32 %v1006, %v1251
        %v1365 = vadd.f32 %v1010, %v1255
        %v1366 = vadd.f32 %v1012, %v1257
        %v1367 = vadd.f32 %v1016, %v1261
        %v1368 = vadd.f32 %v1018, %v1263
        %v1369 = vadd.f32 %v1022, %v1267
        %v1370 = vadd.f32 %v1024, %v1269
        %v1371 = vadd.f32 %v1028, %v1273
        %v1372 = vadd.f32 %v1030, %v1275
        %v1373 = vadd.f32 %v1034, %v1279
        %v1374 = vadd.f32 %v1036, %v1281
        %v1375 = vadd.f32 %v1040, %v1285
        %v1376 = vadd.f32 %v1042, %v1287
        %v1377 = vadd.f32 %v1046, %v1291
        %v1378 = vadd.f32 %v1048, %v1293
        %v1379 = vadd.f32 %v1052, %v1297
        %v1380 = vadd.f32 %v1054, %v1299
        %v1381 = vadd.f32 %v1058, %v1303
        %v1382 = vadd.f32 %v1060, %v1305
        %v1383 = vadd.f32 %v1064, %v1309
        %v1384 = vadd.f32 %v1066, %v1311
        %v1385 = vadd.f32 %v1070, %v1315
        %v1386 = vadd.f32 %v1072, %v1317
        %v1387 = vadd.f32 %v1076, %v1321
        %v1388 = vadd.f32 %v1078, %v1323
        %v1389 = vadd.f32 %v1082, %v1327
        %v1390 = vadd.f32 %v1084, %v1329
        %v1391 = vadd.f32 %v1088, %v1333
        %v1392 = vadd.f32 %v1090, %v1335
        %s1393 = scalar_lea.vmem %s1, 192
        %v1394 = vld [vmem:[%s1393] sm:$0xff]
        %v1395 = vld [vmem:[%s1393 + $0x8] sm:$0xff]
        %v1396 = vld [vmem:[%s1393 + $0x10] sm:$0xff]
        %v1397 = vld [vmem:[%s1393 + $0x18] sm:$0xff]
        %v1398 = vld [vmem:[%s1393 + $0x20] sm:$0xff]
        %v1399 = vld [vmem:[%s1393 + $0x28] sm:$0xff]
        %v1400 = vld [vmem:[%s1393 + $0x30] sm:$0xff]
        %v1401 = vld [vmem:[%s1393 + $0x38] sm:$0xff]
        %v1403 = vsel %vm538, %v519, 0
        %1405 = vmatprep.subr.mxu0 %v1395
        %1406 = vmatpush1.msra.mxu0 %v1394
        %1407 = vmatprep.subr.mxu0 %v1397
        %1408 = vmatpush1.msra.mxu0 %v1396
        %1409 = vmatprep.subr.mxu0 %v1399
        %1410 = vmatpush1.msra.mxu0 %v1398
        %1411 = vmatprep.subr.mxu0 %v1401
        %1412 = vmatpush1.msra.mxu0 %v1400
        %1413 = vmatprep.subr.mxu0 0.0
        %1414 = vmatpush1.msra.mxu0 0.0
        %1415 = vmatprep.subr.mxu0 0.0
        %1416 = vmatpush1.msra.mxu0 0.0
        %1417 = vmatprep.subr.mxu0 0.0
        %1418 = vmatpush1.msra.mxu0 0.0
        %1419 = vmatprep.subr.mxu0 0.0
        %1420 = vmatpush1.msra.mxu0 0.0
        %1421 = vmatprep.subr.mxu0 0.0
        %1422 = vmatpush1.msra.mxu0 0.0
        %1423 = vmatprep.subr.mxu0 0.0
        %1424 = vmatpush1.msra.mxu0 0.0
        %1425 = vmatprep.subr.mxu0 0.0
        %1426 = vmatpush1.msra.mxu0 0.0
        %1427 = vmatprep.subr.mxu0 0.0
        %1428 = vmatpush1.msra.mxu0 0.0
        %1429 = vmatprep.subr.mxu0 0.0
        %1430 = vmatpush1.msra.mxu0 0.0
        %1431 = vmatprep.subr.mxu0 0.0
        %1432 = vmatpush1.msra.mxu0 0.0
        %1433 = vmatprep.subr.mxu0 0.0
        %1434 = vmatpush1.msra.mxu0 0.0
        %1435 = vmatprep.subr.mxu0 0.0
        %1436 = vmatpush1.msra.mxu0 0.0
        %1437 = vmatprep.subr.mxu0 0.0
        %1438 = vmatpush1.msra.mxu0 0.0
        %1439 = vmatprep.subr.mxu0 0.0
        %1440 = vmatpush1.msra.mxu0 0.0
        %1441 = vmatprep.subr.mxu0 0.0
        %1442 = vmatpush1.msra.mxu0 0.0
        %1443 = vmatprep.subr.mxu0 0.0
        %1444 = vmatpush1.msra.mxu0 0.0
        %1445 = vmatprep.subr.mxu0 0.0
        %1446 = vmatpush1.msra.mxu0 0.0
        %1447 = vmatprep.subr.mxu0 0.0
        %1448 = vmatpush1.msra.mxu0 0.0
        %1449 = vmatprep.subr.mxu0 0.0
        %1450 = vmatpush1.msra.mxu0 0.0
        %1451 = vmatprep.subr.mxu0 0.0
        %1452 = vmatpush1.msra.mxu0 0.0
        %1453 = vmatprep.subr.mxu0 0.0
        %1454 = vmatpush1.msra.mxu0 0.0
        %1455 = vmatprep.subr.mxu0 0.0
        %1456 = vmatpush1.msra.mxu0 0.0
        %1457 = vmatprep.subr.mxu0 0.0
        %1458 = vmatpush1.msra.mxu0 0.0
        %1459 = vmatprep.subr.mxu0 0.0
        %1460 = vmatpush1.msra.mxu0 0.0
        %1461 = vmatprep.subr.mxu0 0.0
        %1462 = vmatpush1.msra.mxu0 0.0
        %1463 = vmatprep.subr.mxu0 0.0
        %1464 = vmatpush1.msra.mxu0 0.0
        %1465 = vmatprep.subr.mxu0 0.0
        %1466 = vmatpush1.msra.mxu0 0.0
        %1467 = vmatprep.subr.mxu0 0.0
        %1468 = vmatpush1.msra.mxu0 0.0
        %1469 = vmatprep.mubr.f32.mxu0 0.0
        %1470 = vmatmul.mubr.f32.gmra.mrb[0].mxu0 %v546
        %v1471 = vpop.f32.mrb[0].mxu0
        %v1472 = vadd.f32 0.0, %v1471
        %v1473 = vpop.f32.mrb[0].mxu0
        %v1474 = vadd.f32 0.0, %v1473
        %1475 = vmatprep.mubr.f32.mxu0 0.0
        %1476 = vmatmul.mubr.f32.gmra.mrb[0].mxu0 %v549
        %v1477 = vpop.f32.mrb[0].mxu0
        %v1478 = vadd.f32 0.0, %v1477
        %v1479 = vpop.f32.mrb[0].mxu0
        %v1480 = vadd.f32 0.0, %v1479
        %1481 = vmatprep.mubr.f32.mxu0 0.0
        %1482 = vmatmul.mubr.f32.gmra.mrb[0].mxu0 %v552
        %v1483 = vpop.f32.mrb[0].mxu0
        %v1484 = vadd.f32 0.0, %v1483
        %v1485 = vpop.f32.mrb[0].mxu0
        %v1486 = vadd.f32 0.0, %v1485
        %1487 = vmatprep.mubr.f32.mxu0 0.0
        %1488 = vmatmul.mubr.f32.gmra.mrb[0].mxu0 %v555
        %v1489 = vpop.f32.mrb[0].mxu0
        %v1490 = vadd.f32 0.0, %v1489
        %v1491 = vpop.f32.mrb[0].mxu0
        %v1492 = vadd.f32 0.0, %v1491
        %1493 = vmatprep.mubr.f32.mxu0 0.0
        %1494 = vmatmul.mubr.f32.gmra.mrb[0].mxu0 %v558
        %v1495 = vpop.f32.mrb[0].mxu0
        %v1496 = vadd.f32 0.0, %v1495
        %v1497 = vpop.f32.mrb[0].mxu0
        %v1498 = vadd.f32 0.0, %v1497
        %1499 = vmatprep.mubr.f32.mxu0 0.0
        %1500 = vmatmul.mubr.f32.gmra.mrb[0].mxu0 %v561
        %v1501 = vpop.f32.mrb[0].mxu0
        %v1502 = vadd.f32 0.0, %v1501
        %v1503 = vpop.f32.mrb[0].mxu0
        %v1504 = vadd.f32 0.0, %v1503
        %1505 = vmatprep.mubr.f32.mxu0 0.0
        %1506 = vmatmul.mubr.f32.gmra.mrb[0].mxu0 %v564
        %v1507 = vpop.f32.mrb[0].mxu0
        %v1508 = vadd.f32 0.0, %v1507
        %v1509 = vpop.f32.mrb[0].mxu0
        %v1510 = vadd.f32 0.0, %v1509
        %1511 = vmatprep.mubr.f32.mxu0 0.0
        %1512 = vmatmul.mubr.f32.gmra.mrb[0].mxu0 %v567
        %v1513 = vpop.f32.mrb[0].mxu0
        %v1514 = vadd.f32 0.0, %v1513
        %v1515 = vpop.f32.mrb[0].mxu0
        %v1516 = vadd.f32 0.0, %v1515
        %1517 = vmatprep.mubr.f32.mxu0 0.0
        %1518 = vmatmul.mubr.f32.gmra.mrb[0].mxu0 %v570
        %v1519 = vpop.f32.mrb[0].mxu0
        %v1520 = vadd.f32 0.0, %v1519
        %v1521 = vpop.f32.mrb[0].mxu0
        %v1522 = vadd.f32 0.0, %v1521
        %1523 = vmatprep.mubr.f32.mxu0 0.0
        %1524 = vmatmul.mubr.f32.gmra.mrb[0].mxu0 %v573
        %v1525 = vpop.f32.mrb[0].mxu0
        %v1526 = vadd.f32 0.0, %v1525
        %v1527 = vpop.f32.mrb[0].mxu0
        %v1528 = vadd.f32 0.0, %v1527
        %1529 = vmatprep.mubr.f32.mxu0 0.0
        %1530 = vmatmul.mubr.f32.gmra.mrb[0].mxu0 %v576
        %v1531 = vpop.f32.mrb[0].mxu0
        %v1532 = vadd.f32 0.0, %v1531
        %v1533 = vpop.f32.mrb[0].mxu0
        %v1534 = vadd.f32 0.0, %v1533
        %1535 = vmatprep.mubr.f32.mxu0 0.0
        %1536 = vmatmul.mubr.f32.gmra.mrb[0].mxu0 %v579
        %v1537 = vpop.f32.mrb[0].mxu0
        %v1538 = vadd.f32 0.0, %v1537
        %v1539 = vpop.f32.mrb[0].mxu0
        %v1540 = vadd.f32 0.0, %v1539
        %1541 = vmatprep.mubr.f32.mxu0 0.0
        %1542 = vmatmul.mubr.f32.gmra.mrb[0].mxu0 %v582
        %v1543 = vpop.f32.mrb[0].mxu0
        %v1544 = vadd.f32 0.0, %v1543
        %v1545 = vpop.f32.mrb[0].mxu0
        %v1546 = vadd.f32 0.0, %v1545
        %1547 = vmatprep.mubr.f32.mxu0 0.0
        %1548 = vmatmul.mubr.f32.gmra.mrb[0].mxu0 %v585
        %v1549 = vpop.f32.mrb[0].mxu0
        %v1550 = vadd.f32 0.0, %v1549
        %v1551 = vpop.f32.mrb[0].mxu0
        %v1552 = vadd.f32 0.0, %v1551
        %1553 = vmatprep.mubr.f32.mxu0 0.0
        %1554 = vmatmul.mubr.f32.gmra.mrb[0].mxu0 %v588
        %v1555 = vpop.f32.mrb[0].mxu0
        %v1556 = vadd.f32 0.0, %v1555
        %v1557 = vpop.f32.mrb[0].mxu0
        %v1558 = vadd.f32 0.0, %v1557
        %1559 = vmatprep.mubr.f32.mxu0 0.0
        %1560 = vmatmul.mubr.f32.gmra.mrb[0].mxu0 %v591
        %v1561 = vpop.f32.mrb[0].mxu0
        %v1562 = vadd.f32 0.0, %v1561
        %v1563 = vpop.f32.mrb[0].mxu0
        %v1564 = vadd.f32 0.0, %v1563
        %1565 = vmatprep.mubr.f32.mxu0 0.0
        %1566 = vmatmul.mubr.f32.gmra.mrb[0].mxu0 %v594
        %v1567 = vpop.f32.mrb[0].mxu0
        %v1568 = vadd.f32 0.0, %v1567
        %v1569 = vpop.f32.mrb[0].mxu0
        %v1570 = vadd.f32 0.0, %v1569
        %1571 = vmatprep.mubr.f32.mxu0 0.0
        %1572 = vmatmul.mubr.f32.gmra.mrb[0].mxu0 %v597
        %v1573 = vpop.f32.mrb[0].mxu0
        %v1574 = vadd.f32 0.0, %v1573
        %v1575 = vpop.f32.mrb[0].mxu0
        %v1576 = vadd.f32 0.0, %v1575
        %1577 = vmatprep.mubr.f32.mxu0 0.0
        %1578 = vmatmul.mubr.f32.gmra.mrb[0].mxu0 %v600
        %v1579 = vpop.f32.mrb[0].mxu0
        %v1580 = vadd.f32 0.0, %v1579
        %v1581 = vpop.f32.mrb[0].mxu0
        %v1582 = vadd.f32 0.0, %v1581
        %1583 = vmatprep.mubr.f32.mxu0 0.0
        %1584 = vmatmul.mubr.f32.gmra.mrb[0].mxu0 %v603
        %v1585 = vpop.f32.mrb[0].mxu0
        %v1586 = vadd.f32 0.0, %v1585
        %v1587 = vpop.f32.mrb[0].mxu0
        %v1588 = vadd.f32 0.0, %v1587
        %1589 = vmatprep.mubr.f32.mxu0 0.0
        %1590 = vmatmul.mubr.f32.gmra.mrb[0].mxu0 %v606
        %v1591 = vpop.f32.mrb[0].mxu0
        %v1592 = vadd.f32 0.0, %v1591
        %v1593 = vpop.f32.mrb[0].mxu0
        %v1594 = vadd.f32 0.0, %v1593
        %1595 = vmatprep.mubr.f32.mxu0 0.0
        %1596 = vmatmul.mubr.f32.gmra.mrb[0].mxu0 %v609
        %v1597 = vpop.f32.mrb[0].mxu0
        %v1598 = vadd.f32 0.0, %v1597
        %v1599 = vpop.f32.mrb[0].mxu0
        %v1600 = vadd.f32 0.0, %v1599
        %1601 = vmatprep.mubr.f32.mxu0 0.0
        %1602 = vmatmul.mubr.f32.gmra.mrb[0].mxu0 %v612
        %v1603 = vpop.f32.mrb[0].mxu0
        %v1604 = vadd.f32 0.0, %v1603
        %v1605 = vpop.f32.mrb[0].mxu0
        %v1606 = vadd.f32 0.0, %v1605
        %1607 = vmatprep.mubr.f32.mxu0 0.0
        %1608 = vmatmul.mubr.f32.gmra.mrb[0].mxu0 %v615
        %v1609 = vpop.f32.mrb[0].mxu0
        %v1610 = vadd.f32 0.0, %v1609
        %v1611 = vpop.f32.mrb[0].mxu0
        %v1612 = vadd.f32 0.0, %v1611
        %1613 = vmatprep.mubr.f32.mxu0 0.0
        %1614 = vmatmul.mubr.f32.gmra.mrb[0].mxu0 %v618
        %v1615 = vpop.f32.mrb[0].mxu0
        %v1616 = vadd.f32 0.0, %v1615
        %v1617 = vpop.f32.mrb[0].mxu0
        %v1618 = vadd.f32 0.0, %v1617
        %1619 = vmatprep.mubr.f32.mxu0 0.0
        %1620 = vmatmul.mubr.f32.gmra.mrb[0].mxu0 %v621
        %v1621 = vpop.f32.mrb[0].mxu0
        %v1622 = vadd.f32 0.0, %v1621
        %v1623 = vpop.f32.mrb[0].mxu0
        %v1624 = vadd.f32 0.0, %v1623
        %1625 = vmatprep.mubr.f32.mxu0 0.0
        %1626 = vmatmul.mubr.f32.gmra.mrb[0].mxu0 %v1102
        %v1627 = vpop.f32.mrb[0].mxu0
        %v1628 = vadd.f32 0.0, %v1627
        %v1629 = vpop.f32.mrb[0].mxu0
        %v1630 = vadd.f32 0.0, %v1629
        %1631 = vmatprep.mubr.f32.mxu0 0.0
        %1632 = vmatmul.mubr.f32.gmra.mrb[0].mxu0 %v1403
        %v1633 = vpop.f32.mrb[0].mxu0
        %v1634 = vadd.f32 0.0, %v1633
        %v1635 = vpop.f32.mrb[0].mxu0
        %v1636 = vadd.f32 0.0, %v1635
        %1637 = vdwg.mxu0
        %v1638 = vadd.f32 %v1337, %v1472
        %v1639 = vadd.f32 %v1338, %v1474
        %v1640 = vadd.f32 %v1339, %v1478
        %v1641 = vadd.f32 %v1340, %v1480
        %v1642 = vadd.f32 %v1341, %v1484
        %v1643 = vadd.f32 %v1342, %v1486
        %v1644 = vadd.f32 %v1343, %v1490
        %v1645 = vadd.f32 %v1344, %v1492
        %v1646 = vadd.f32 %v1345, %v1496
        %v1647 = vadd.f32 %v1346, %v1498
        %v1648 = vadd.f32 %v1347, %v1502
        %v1649 = vadd.f32 %v1348, %v1504
        %v1650 = vadd.f32 %v1349, %v1508
        %v1651 = vadd.f32 %v1350, %v1510
        %v1652 = vadd.f32 %v1351, %v1514
        %v1653 = vadd.f32 %v1352, %v1516
        %v1654 = vadd.f32 %v1353, %v1520
        %v1655 = vadd.f32 %v1354, %v1522
        %v1656 = vadd.f32 %v1355, %v1526
        %v1657 = vadd.f32 %v1356, %v1528
        %v1658 = vadd.f32 %v1357, %v1532
        %v1659 = vadd.f32 %v1358, %v1534
        %v1660 = vadd.f32 %v1359, %v1538
        %v1661 = vadd.f32 %v1360, %v1540
        %v1662 = vadd.f32 %v1361, %v1544
        %v1663 = vadd.f32 %v1362, %v1546
        %v1664 = vadd.f32 %v1363, %v1550
        %v1665 = vadd.f32 %v1364, %v1552
        %v1666 = vadd.f32 %v1365, %v1556
        %v1667 = vadd.f32 %v1366, %v1558
        %v1668 = vadd.f32 %v1367, %v1562
        %v1669 = vadd.f32 %v1368, %v1564
        %v1670 = vadd.f32 %v1369, %v1568
        %v1671 = vadd.f32 %v1370, %v1570
        %v1672 = vadd.f32 %v1371, %v1574
        %v1673 = vadd.f32 %v1372, %v1576
        %v1674 = vadd.f32 %v1373, %v1580
        %v1675 = vadd.f32 %v1374, %v1582
        %v1676 = vadd.f32 %v1375, %v1586
        %v1677 = vadd.f32 %v1376, %v1588
        %v1678 = vadd.f32 %v1377, %v1592
        %v1679 = vadd.f32 %v1378, %v1594
        %v1680 = vadd.f32 %v1379, %v1598
        %v1681 = vadd.f32 %v1380, %v1600
        %v1682 = vadd.f32 %v1381, %v1604
        %v1683 = vadd.f32 %v1382, %v1606
        %v1684 = vadd.f32 %v1383, %v1610
        %v1685 = vadd.f32 %v1384, %v1612
        %v1686 = vadd.f32 %v1385, %v1616
        %v1687 = vadd.f32 %v1386, %v1618
        %v1688 = vadd.f32 %v1387, %v1622
        %v1689 = vadd.f32 %v1388, %v1624
        %v1690 = vadd.f32 %v1389, %v1628
        %v1691 = vadd.f32 %v1390, %v1630
        %v1692 = vadd.f32 %v1391, %v1634
        %v1693 = vadd.f32 %v1392, %v1636
        %s1694 = scalar_lea.vmem %s1, 256
        %v1695 = vld [vmem:[%s1694] sm:$0xff]
        %v1696 = vld [vmem:[%s1694 + $0x8] sm:$0xff]
        %v1697 = vld [vmem:[%s1694 + $0x10] sm:$0xff]
        %v1698 = vld [vmem:[%s1694 + $0x18] sm:$0xff]
        %v1699 = vld [vmem:[%s1694 + $0x20] sm:$0xff]
        %v1700 = vld [vmem:[%s1694 + $0x28] sm:$0xff]
        %v1701 = vld [vmem:[%s1694 + $0x30] sm:$0xff]
        %v1702 = vld [vmem:[%s1694 + $0x38] sm:$0xff]
        %v1704 = vsel %vm538, %v520, 0
        %1706 = vmatprep.subr.mxu0 %v1696
        %1707 = vmatpush1.msra.mxu0 %v1695
        %1708 = vmatprep.subr.mxu0 %v1698
        %1709 = vmatpush1.msra.mxu0 %v1697
        %1710 = vmatprep.subr.mxu0 %v1700
        %1711 = vmatpush1.msra.mxu0 %v1699
        %1712 = vmatprep.subr.mxu0 %v1702
        %1713 = vmatpush1.msra.mxu0 %v1701
        %1714 = vmatprep.subr.mxu0 0.0
        %1715 = vmatpush1.msra.mxu0 0.0
        %1716 = vmatprep.subr.mxu0 0.0
        %1717 = vmatpush1.msra.mxu0 0.0
        %1718 = vmatprep.subr.mxu0 0.0
        %1719 = vmatpush1.msra.mxu0 0.0
        %1720 = vmatprep.subr.mxu0 0.0
        %1721 = vmatpush1.msra.mxu0 0.0
        %1722 = vmatprep.subr.mxu0 0.0
        %1723 = vmatpush1.msra.mxu0 0.0
        %1724 = vmatprep.subr.mxu0 0.0
        %1725 = vmatpush1.msra.mxu0 0.0
        %1726 = vmatprep.subr.mxu0 0.0
        %1727 = vmatpush1.msra.mxu0 0.0
        %1728 = vmatprep.subr.mxu0 0.0
        %1729 = vmatpush1.msra.mxu0 0.0
        %1730 = vmatprep.subr.mxu0 0.0
        %1731 = vmatpush1.msra.mxu0 0.0
        %1732 = vmatprep.subr.mxu0 0.0
        %1733 = vmatpush1.msra.mxu0 0.0
        %1734 = vmatprep.subr.mxu0 0.0
        %1735 = vmatpush1.msra.mxu0 0.0
        %1736 = vmatprep.subr.mxu0 0.0
        %1737 = vmatpush1.msra.mxu0 0.0
        %1738 = vmatprep.subr.mxu0 0.0
        %1739 = vmatpush1.msra.mxu0 0.0
        %1740 = vmatprep.subr.mxu0 0.0
        %1741 = vmatpush1.msra.mxu0 0.0
        %1742 = vmatprep.subr.mxu0 0.0
        %1743 = vmatpush1.msra.mxu0 0.0
        %1744 = vmatprep.subr.mxu0 0.0
        %1745 = vmatpush1.msra.mxu0 0.0
        %1746 = vmatprep.subr.mxu0 0.0
        %1747 = vmatpush1.msra.mxu0 0.0
        %1748 = vmatprep.subr.mxu0 0.0
        %1749 = vmatpush1.msra.mxu0 0.0
        %1750 = vmatprep.subr.mxu0 0.0
        %1751 = vmatpush1.msra.mxu0 0.0
        %1752 = vmatprep.subr.mxu0 0.0
        %1753 = vmatpush1.msra.mxu0 0.0
        %1754 = vmatprep.subr.mxu0 0.0
        %1755 = vmatpush1.msra.mxu0 0.0
        %1756 = vmatprep.subr.mxu0 0.0
        %1757 = vmatpush1.msra.mxu0 0.0
        %1758 = vmatprep.subr.mxu0 0.0
        %1759 = vmatpush1.msra.mxu0 0.0
        %1760 = vmatprep.subr.mxu0 0.0
        %1761 = vmatpush1.msra.mxu0 0.0
        %1762 = vmatprep.subr.mxu0 0.0
        %1763 = vmatpush1.msra.mxu0 0.0
        %1764 = vmatprep.subr.mxu0 0.0
        %1765 = vmatpush1.msra.mxu0 0.0
        %1766 = vmatprep.subr.mxu0 0.0
        %1767 = vmatpush1.msra.mxu0 0.0
        %1768 = vmatprep.subr.mxu0 0.0
        %1769 = vmatpush1.msra.mxu0 0.0
        %1770 = vmatprep.mubr.f32.mxu0 0.0
        %1771 = vmatmul.mubr.f32.gmra.mrb[0].mxu0 %v549
        %v1772 = vpop.f32.mrb[0].mxu0
        %v1773 = vadd.f32 0.0, %v1772
        %v1774 = vpop.f32.mrb[0].mxu0
        %v1775 = vadd.f32 0.0, %v1774
        %1776 = vmatprep.mubr.f32.mxu0 0.0
        %1777 = vmatmul.mubr.f32.gmra.mrb[0].mxu0 %v552
        %v1778 = vpop.f32.mrb[0].mxu0
        %v1779 = vadd.f32 0.0, %v1778
        %v1780 = vpop.f32.mrb[0].mxu0
        %v1781 = vadd.f32 0.0, %v1780
        %1782 = vmatprep.mubr.f32.mxu0 0.0
        %1783 = vmatmul.mubr.f32.gmra.mrb[0].mxu0 %v555
        %v1784 = vpop.f32.mrb[0].mxu0
        %v1785 = vadd.f32 0.0, %v1784
        %v1786 = vpop.f32.mrb[0].mxu0
        %v1787 = vadd.f32 0.0, %v1786
        %1788 = vmatprep.mubr.f32.mxu0 0.0
        %1789 = vmatmul.mubr.f32.gmra.mrb[0].mxu0 %v558
        %v1790 = vpop.f32.mrb[0].mxu0
        %v1791 = vadd.f32 0.0, %v1790
        %v1792 = vpop.f32.mrb[0].mxu0
        %v1793 = vadd.f32 0.0, %v1792
        %1794 = vmatprep.mubr.f32.mxu0 0.0
        %1795 = vmatmul.mubr.f32.gmra.mrb[0].mxu0 %v561
        %v1796 = vpop.f32.mrb[0].mxu0
        %v1797 = vadd.f32 0.0, %v1796
        %v1798 = vpop.f32.mrb[0].mxu0
        %v1799 = vadd.f32 0.0, %v1798
        %1800 = vmatprep.mubr.f32.mxu0 0.0
        %1801 = vmatmul.mubr.f32.gmra.mrb[0].mxu0 %v564
        %v1802 = vpop.f32.mrb[0].mxu0
        %v1803 = vadd.f32 0.0, %v1802
        %v1804 = vpop.f32.mrb[0].mxu0
        %v1805 = vadd.f32 0.0, %v1804
        %1806 = vmatprep.mubr.f32.mxu0 0.0
        %1807 = vmatmul.mubr.f32.gmra.mrb[0].mxu0 %v567
        %v1808 = vpop.f32.mrb[0].mxu0
        %v1809 = vadd.f32 0.0, %v1808
        %v1810 = vpop.f32.mrb[0].mxu0
        %v1811 = vadd.f32 0.0, %v1810
        %1812 = vmatprep.mubr.f32.mxu0 0.0
        %1813 = vmatmul.mubr.f32.gmra.mrb[0].mxu0 %v570
        %v1814 = vpop.f32.mrb[0].mxu0
        %v1815 = vadd.f32 0.0, %v1814
        %v1816 = vpop.f32.mrb[0].mxu0
        %v1817 = vadd.f32 0.0, %v1816
        %1818 = vmatprep.mubr.f32.mxu0 0.0
        %1819 = vmatmul.mubr.f32.gmra.mrb[0].mxu0 %v573
        %v1820 = vpop.f32.mrb[0].mxu0
        %v1821 = vadd.f32 0.0, %v1820
        %v1822 = vpop.f32.mrb[0].mxu0
        %v1823 = vadd.f32 0.0, %v1822
        %1824 = vmatprep.mubr.f32.mxu0 0.0
        %1825 = vmatmul.mubr.f32.gmra.mrb[0].mxu0 %v576
        %v1826 = vpop.f32.mrb[0].mxu0
        %v1827 = vadd.f32 0.0, %v1826
        %v1828 = vpop.f32.mrb[0].mxu0
        %v1829 = vadd.f32 0.0, %v1828
        %1830 = vmatprep.mubr.f32.mxu0 0.0
        %1831 = vmatmul.mubr.f32.gmra.mrb[0].mxu0 %v579
        %v1832 = vpop.f32.mrb[0].mxu0
        %v1833 = vadd.f32 0.0, %v1832
        %v1834 = vpop.f32.mrb[0].mxu0
        %v1835 = vadd.f32 0.0, %v1834
        %1836 = vmatprep.mubr.f32.mxu0 0.0
        %1837 = vmatmul.mubr.f32.gmra.mrb[0].mxu0 %v582
        %v1838 = vpop.f32.mrb[0].mxu0
        %v1839 = vadd.f32 0.0, %v1838
        %v1840 = vpop.f32.mrb[0].mxu0
        %v1841 = vadd.f32 0.0, %v1840
        %1842 = vmatprep.mubr.f32.mxu0 0.0
        %1843 = vmatmul.mubr.f32.gmra.mrb[0].mxu0 %v585
        %v1844 = vpop.f32.mrb[0].mxu0
        %v1845 = vadd.f32 0.0, %v1844
        %v1846 = vpop.f32.mrb[0].mxu0
        %v1847 = vadd.f32 0.0, %v1846
        %1848 = vmatprep.mubr.f32.mxu0 0.0
        %1849 = vmatmul.mubr.f32.gmra.mrb[0].mxu0 %v588
        %v1850 = vpop.f32.mrb[0].mxu0
        %v1851 = vadd.f32 0.0, %v1850
        %v1852 = vpop.f32.mrb[0].mxu0
        %v1853 = vadd.f32 0.0, %v1852
        %1854 = vmatprep.mubr.f32.mxu0 0.0
        %1855 = vmatmul.mubr.f32.gmra.mrb[0].mxu0 %v591
        %v1856 = vpop.f32.mrb[0].mxu0
        %v1857 = vadd.f32 0.0, %v1856
        %v1858 = vpop.f32.mrb[0].mxu0
        %v1859 = vadd.f32 0.0, %v1858
        %1860 = vmatprep.mubr.f32.mxu0 0.0
        %1861 = vmatmul.mubr.f32.gmra.mrb[0].mxu0 %v594
        %v1862 = vpop.f32.mrb[0].mxu0
        %v1863 = vadd.f32 0.0, %v1862
        %v1864 = vpop.f32.mrb[0].mxu0
        %v1865 = vadd.f32 0.0, %v1864
        %1866 = vmatprep.mubr.f32.mxu0 0.0
        %1867 = vmatmul.mubr.f32.gmra.mrb[0].mxu0 %v597
        %v1868 = vpop.f32.mrb[0].mxu0
        %v1869 = vadd.f32 0.0, %v1868
        %v1870 = vpop.f32.mrb[0].mxu0
        %v1871 = vadd.f32 0.0, %v1870
        %1872 = vmatprep.mubr.f32.mxu0 0.0
        %1873 = vmatmul.mubr.f32.gmra.mrb[0].mxu0 %v600
        %v1874 = vpop.f32.mrb[0].mxu0
        %v1875 = vadd.f32 0.0, %v1874
        %v1876 = vpop.f32.mrb[0].mxu0
        %v1877 = vadd.f32 0.0, %v1876
        %1878 = vmatprep.mubr.f32.mxu0 0.0
        %1879 = vmatmul.mubr.f32.gmra.mrb[0].mxu0 %v603
        %v1880 = vpop.f32.mrb[0].mxu0
        %v1881 = vadd.f32 0.0, %v1880
        %v1882 = vpop.f32.mrb[0].mxu0
        %v1883 = vadd.f32 0.0, %v1882
        %1884 = vmatprep.mubr.f32.mxu0 0.0
        %1885 = vmatmul.mubr.f32.gmra.mrb[0].mxu0 %v606
        %v1886 = vpop.f32.mrb[0].mxu0
        %v1887 = vadd.f32 0.0, %v1886
        %v1888 = vpop.f32.mrb[0].mxu0
        %v1889 = vadd.f32 0.0, %v1888
        %1890 = vmatprep.mubr.f32.mxu0 0.0
        %1891 = vmatmul.mubr.f32.gmra.mrb[0].mxu0 %v609
        %v1892 = vpop.f32.mrb[0].mxu0
        %v1893 = vadd.f32 0.0, %v1892
        %v1894 = vpop.f32.mrb[0].mxu0
        %v1895 = vadd.f32 0.0, %v1894
        %1896 = vmatprep.mubr.f32.mxu0 0.0
        %1897 = vmatmul.mubr.f32.gmra.mrb[0].mxu0 %v612
        %v1898 = vpop.f32.mrb[0].mxu0
        %v1899 = vadd.f32 0.0, %v1898
        %v1900 = vpop.f32.mrb[0].mxu0
        %v1901 = vadd.f32 0.0, %v1900
        %1902 = vmatprep.mubr.f32.mxu0 0.0
        %1903 = vmatmul.mubr.f32.gmra.mrb[0].mxu0 %v615
        %v1904 = vpop.f32.mrb[0].mxu0
        %v1905 = vadd.f32 0.0, %v1904
        %v1906 = vpop.f32.mrb[0].mxu0
        %v1907 = vadd.f32 0.0, %v1906
        %1908 = vmatprep.mubr.f32.mxu0 0.0
        %1909 = vmatmul.mubr.f32.gmra.mrb[0].mxu0 %v618
        %v1910 = vpop.f32.mrb[0].mxu0
        %v1911 = vadd.f32 0.0, %v1910
        %v1912 = vpop.f32.mrb[0].mxu0
        %v1913 = vadd.f32 0.0, %v1912
        %1914 = vmatprep.mubr.f32.mxu0 0.0
        %1915 = vmatmul.mubr.f32.gmra.mrb[0].mxu0 %v621
        %v1916 = vpop.f32.mrb[0].mxu0
        %v1917 = vadd.f32 0.0, %v1916
        %v1918 = vpop.f32.mrb[0].mxu0
        %v1919 = vadd.f32 0.0, %v1918
        %1920 = vmatprep.mubr.f32.mxu0 0.0
        %1921 = vmatmul.mubr.f32.gmra.mrb[0].mxu0 %v1102
        %v1922 = vpop.f32.mrb[0].mxu0
        %v1923 = vadd.f32 0.0, %v1922
        %v1924 = vpop.f32.mrb[0].mxu0
        %v1925 = vadd.f32 0.0, %v1924
        %1926 = vmatprep.mubr.f32.mxu0 0.0
        %1927 = vmatmul.mubr.f32.gmra.mrb[0].mxu0 %v1403
        %v1928 = vpop.f32.mrb[0].mxu0
        %v1929 = vadd.f32 0.0, %v1928
        %v1930 = vpop.f32.mrb[0].mxu0
        %v1931 = vadd.f32 0.0, %v1930
        %1932 = vmatprep.mubr.f32.mxu0 0.0
        %1933 = vmatmul.mubr.f32.gmra.mrb[0].mxu0 %v1704
        %v1934 = vpop.f32.mrb[0].mxu0
        %v1935 = vadd.f32 0.0, %v1934
        %v1936 = vpop.f32.mrb[0].mxu0
        %v1937 = vadd.f32 0.0, %v1936
        %1938 = vdwg.mxu0
        %v1939 = vadd.f32 %v1638, %v1773
        %v1940 = vadd.f32 %v1639, %v1775
        %v1941 = vadd.f32 %v1640, %v1779
        %v1942 = vadd.f32 %v1641, %v1781
        %v1943 = vadd.f32 %v1642, %v1785
        %v1944 = vadd.f32 %v1643, %v1787
        %v1945 = vadd.f32 %v1644, %v1791
        %v1946 = vadd.f32 %v1645, %v1793
        %v1947 = vadd.f32 %v1646, %v1797
        %v1948 = vadd.f32 %v1647, %v1799
        %v1949 = vadd.f32 %v1648, %v1803
        %v1950 = vadd.f32 %v1649, %v1805
        %v1951 = vadd.f32 %v1650, %v1809
        %v1952 = vadd.f32 %v1651, %v1811
        %v1953 = vadd.f32 %v1652, %v1815
        %v1954 = vadd.f32 %v1653, %v1817
        %v1955 = vadd.f32 %v1654, %v1821
        %v1956 = vadd.f32 %v1655, %v1823
        %v1957 = vadd.f32 %v1656, %v1827
        %v1958 = vadd.f32 %v1657, %v1829
        %v1959 = vadd.f32 %v1658, %v1833
        %v1960 = vadd.f32 %v1659, %v1835
        %v1961 = vadd.f32 %v1660, %v1839
        %v1962 = vadd.f32 %v1661, %v1841
        %v1963 = vadd.f32 %v1662, %v1845
        %v1964 = vadd.f32 %v1663, %v1847
        %v1965 = vadd.f32 %v1664, %v1851
        %v1966 = vadd.f32 %v1665, %v1853
        %v1967 = vadd.f32 %v1666, %v1857
        %v1968 = vadd.f32 %v1667, %v1859
        %v1969 = vadd.f32 %v1668, %v1863
        %v1970 = vadd.f32 %v1669, %v1865
        %v1971 = vadd.f32 %v1670, %v1869
        %v1972 = vadd.f32 %v1671, %v1871
        %v1973 = vadd.f32 %v1672, %v1875
        %v1974 = vadd.f32 %v1673, %v1877
        %v1975 = vadd.f32 %v1674, %v1881
        %v1976 = vadd.f32 %v1675, %v1883
        %v1977 = vadd.f32 %v1676, %v1887
        %v1978 = vadd.f32 %v1677, %v1889
        %v1979 = vadd.f32 %v1678, %v1893
        %v1980 = vadd.f32 %v1679, %v1895
        %v1981 = vadd.f32 %v1680, %v1899
        %v1982 = vadd.f32 %v1681, %v1901
        %v1983 = vadd.f32 %v1682, %v1905
        %v1984 = vadd.f32 %v1683, %v1907
        %v1985 = vadd.f32 %v1684, %v1911
        %v1986 = vadd.f32 %v1685, %v1913
        %v1987 = vadd.f32 %v1686, %v1917
        %v1988 = vadd.f32 %v1687, %v1919
        %v1989 = vadd.f32 %v1688, %v1923
        %v1990 = vadd.f32 %v1689, %v1925
        %v1991 = vadd.f32 %v1690, %v1929
        %v1992 = vadd.f32 %v1691, %v1931
        %v1993 = vadd.f32 %v1692, %v1935
        %v1994 = vadd.f32 %v1693, %v1937
        %v1995 = vld [vmem:[%s2] sm:$0x3]
        %v1997 = vlaneseq
        %v1998 = vshrl.u32 %v1997, 7
        %v1999 = vsub.s32 0, %v1998
        %v2000 = vrot.slane %v1995, %v1999
        %v2001 = vlaneseq
        %v2002 = vshrl.u32 %v2001, 7
        %v2003 = vsub.s32 1, %v2002
        %v2004 = vrot.slane %v1995, %v2003
        %v2007 = vadd.f32 %v1939, %v2000
        %v2008 = vadd.f32 %v1940, %v2004
        %v2009 = vadd.f32 %v1941, %v2000
        %v2010 = vadd.f32 %v1942, %v2004
        %v2011 = vadd.f32 %v1943, %v2000
        %v2012 = vadd.f32 %v1944, %v2004
        %v2013 = vadd.f32 %v1945, %v2000
        %v2014 = vadd.f32 %v1946, %v2004
        %v2015 = vadd.f32 %v1947, %v2000
        %v2016 = vadd.f32 %v1948, %v2004
        %v2017 = vadd.f32 %v1949, %v2000
        %v2018 = vadd.f32 %v1950, %v2004
        %v2019 = vadd.f32 %v1951, %v2000
        %v2020 = vadd.f32 %v1952, %v2004
        %v2021 = vadd.f32 %v1953, %v2000
        %v2022 = vadd.f32 %v1954, %v2004
        %v2023 = vadd.f32 %v1955, %v2000
        %v2024 = vadd.f32 %v1956, %v2004
        %v2025 = vadd.f32 %v1957, %v2000
        %v2026 = vadd.f32 %v1958, %v2004
        %v2027 = vadd.f32 %v1959, %v2000
        %v2028 = vadd.f32 %v1960, %v2004
        %v2029 = vadd.f32 %v1961, %v2000
        %v2030 = vadd.f32 %v1962, %v2004
        %v2031 = vadd.f32 %v1963, %v2000
        %v2032 = vadd.f32 %v1964, %v2004
        %v2033 = vadd.f32 %v1965, %v2000
        %v2034 = vadd.f32 %v1966, %v2004
        %v2035 = vadd.f32 %v1967, %v2000
        %v2036 = vadd.f32 %v1968, %v2004
        %v2037 = vadd.f32 %v1969, %v2000
        %v2038 = vadd.f32 %v1970, %v2004
        %v2039 = vadd.f32 %v1971, %v2000
        %v2040 = vadd.f32 %v1972, %v2004
        %v2041 = vadd.f32 %v1973, %v2000
        %v2042 = vadd.f32 %v1974, %v2004
        %v2043 = vadd.f32 %v1975, %v2000
        %v2044 = vadd.f32 %v1976, %v2004
        %v2045 = vadd.f32 %v1977, %v2000
        %v2046 = vadd.f32 %v1978, %v2004
        %v2047 = vadd.f32 %v1979, %v2000
        %v2048 = vadd.f32 %v1980, %v2004
        %v2049 = vadd.f32 %v1981, %v2000
        %v2050 = vadd.f32 %v1982, %v2004
        %v2051 = vadd.f32 %v1983, %v2000
        %v2052 = vadd.f32 %v1984, %v2004
        %v2053 = vadd.f32 %v1985, %v2000
        %v2054 = vadd.f32 %v1986, %v2004
        %v2055 = vadd.f32 %v1987, %v2000
        %v2056 = vadd.f32 %v1988, %v2004
        %v2057 = vadd.f32 %v1989, %v2000
        %v2058 = vadd.f32 %v1990, %v2004
        %v2059 = vadd.f32 %v1991, %v2000
        %v2060 = vadd.f32 %v1992, %v2004
        %v2061 = vadd.f32 %v1993, %v2000
        %v2062 = vadd.f32 %v1994, %v2004
        %v2063 = vmax.f32 %v2007, 0.0
        %v2064 = vmax.f32 %v2008, 0.0
        %v2065 = vmax.f32 %v2009, 0.0
        %v2066 = vmax.f32 %v2010, 0.0
        %v2067 = vmax.f32 %v2011, 0.0
        %v2068 = vmax.f32 %v2012, 0.0
        %v2069 = vmax.f32 %v2013, 0.0
        %v2070 = vmax.f32 %v2014, 0.0
        %v2071 = vmax.f32 %v2015, 0.0
        %v2072 = vmax.f32 %v2016, 0.0
        %v2073 = vmax.f32 %v2017, 0.0
        %v2074 = vmax.f32 %v2018, 0.0
        %v2075 = vmax.f32 %v2019, 0.0
        %v2076 = vmax.f32 %v2020, 0.0
        %v2077 = vmax.f32 %v2021, 0.0
        %v2078 = vmax.f32 %v2022, 0.0
        %v2079 = vmax.f32 %v2023, 0.0
        %v2080 = vmax.f32 %v2024, 0.0
        %v2081 = vmax.f32 %v2025, 0.0
        %v2082 = vmax.f32 %v2026, 0.0
        %v2083 = vmax.f32 %v2027, 0.0
        %v2084 = vmax.f32 %v2028, 0.0
        %v2085 = vmax.f32 %v2029, 0.0
        %v2086 = vmax.f32 %v2030, 0.0
        %v2087 = vmax.f32 %v2031, 0.0
        %v2088 = vmax.f32 %v2032, 0.0
        %v2089 = vmax.f32 %v2033, 0.0
        %v2090 = vmax.f32 %v2034, 0.0
        %v2091 = vmax.f32 %v2035, 0.0
        %v2092 = vmax.f32 %v2036, 0.0
        %v2093 = vmax.f32 %v2037, 0.0
        %v2094 = vmax.f32 %v2038, 0.0
        %v2095 = vmax.f32 %v2039, 0.0
        %v2096 = vmax.f32 %v2040, 0.0
        %v2097 = vmax.f32 %v2041, 0.0
        %v2098 = vmax.f32 %v2042, 0.0
        %v2099 = vmax.f32 %v2043, 0.0
        %v2100 = vmax.f32 %v2044, 0.0
        %v2101 = vmax.f32 %v2045, 0.0
        %v2102 = vmax.f32 %v2046, 0.0
        %v2103 = vmax.f32 %v2047, 0.0
        %v2104 = vmax.f32 %v2048, 0.0
        %v2105 = vmax.f32 %v2049, 0.0
        %v2106 = vmax.f32 %v2050, 0.0
        %v2107 = vmax.f32 %v2051, 0.0
        %v2108 = vmax.f32 %v2052, 0.0
        %v2109 = vmax.f32 %v2053, 0.0
        %v2110 = vmax.f32 %v2054, 0.0
        %v2111 = vmax.f32 %v2055, 0.0
        %v2112 = vmax.f32 %v2056, 0.0
        %v2113 = vmax.f32 %v2057, 0.0
        %v2114 = vmax.f32 %v2058, 0.0
        %v2115 = vmax.f32 %v2059, 0.0
        %v2116 = vmax.f32 %v2060, 0.0
        %v2117 = vmax.f32 %v2061, 0.0
        %v2118 = vmax.f32 %v2062, 0.0
        %2175 = vrot.lane.b32.xlu0 %v2063, 122
        %v2176 = vpop.permute.xlu0 %2175
        %2177 = vrot.lane.b32.xlu0 %v2064, 122
        %v2178 = vpop.permute.xlu0 %2177
        %2179 = vrot.lane.b32.xlu0 %v2065, 122
        %v2180 = vpop.permute.xlu0 %2179
        %2181 = vrot.lane.b32.xlu0 %v2066, 122
        %v2182 = vpop.permute.xlu0 %2181
        %2183 = vrot.lane.b32.xlu0 %v2067, 122
        %v2184 = vpop.permute.xlu0 %2183
        %2185 = vrot.lane.b32.xlu0 %v2068, 122
        %v2186 = vpop.permute.xlu0 %2185
        %2187 = vrot.lane.b32.xlu0 %v2069, 122
        %v2188 = vpop.permute.xlu0 %2187
        %2189 = vrot.lane.b32.xlu0 %v2070, 122
        %v2190 = vpop.permute.xlu0 %2189
        %2191 = vrot.lane.b32.xlu0 %v2071, 122
        %v2192 = vpop.permute.xlu0 %2191
        %2193 = vrot.lane.b32.xlu0 %v2072, 122
        %v2194 = vpop.permute.xlu0 %2193
        %2195 = vrot.lane.b32.xlu0 %v2073, 122
        %v2196 = vpop.permute.xlu0 %2195
        %2197 = vrot.lane.b32.xlu0 %v2074, 122
        %v2198 = vpop.permute.xlu0 %2197
        %2199 = vrot.lane.b32.xlu0 %v2075, 122
        %v2200 = vpop.permute.xlu0 %2199
        %2201 = vrot.lane.b32.xlu0 %v2076, 122
        %v2202 = vpop.permute.xlu0 %2201
        %2203 = vrot.lane.b32.xlu0 %v2077, 122
        %v2204 = vpop.permute.xlu0 %2203
        %2205 = vrot.lane.b32.xlu0 %v2078, 122
        %v2206 = vpop.permute.xlu0 %2205
        %2207 = vrot.lane.b32.xlu0 %v2079, 122
        %v2208 = vpop.permute.xlu0 %2207
        %2209 = vrot.lane.b32.xlu0 %v2080, 122
        %v2210 = vpop.permute.xlu0 %2209
        %2211 = vrot.lane.b32.xlu0 %v2081, 122
        %v2212 = vpop.permute.xlu0 %2211
        %2213 = vrot.lane.b32.xlu0 %v2082, 122
        %v2214 = vpop.permute.xlu0 %2213
        %2215 = vrot.lane.b32.xlu0 %v2083, 122
        %v2216 = vpop.permute.xlu0 %2215
        %2217 = vrot.lane.b32.xlu0 %v2084, 122
        %v2218 = vpop.permute.xlu0 %2217
        %2219 = vrot.lane.b32.xlu0 %v2085, 122
        %v2220 = vpop.permute.xlu0 %2219
        %2221 = vrot.lane.b32.xlu0 %v2086, 122
        %v2222 = vpop.permute.xlu0 %2221
        %2223 = vrot.lane.b32.xlu0 %v2087, 122
        %v2224 = vpop.permute.xlu0 %2223
        %2225 = vrot.lane.b32.xlu0 %v2088, 122
        %v2226 = vpop.permute.xlu0 %2225
        %2227 = vrot.lane.b32.xlu0 %v2089, 122
        %v2228 = vpop.permute.xlu0 %2227
        %2229 = vrot.lane.b32.xlu0 %v2090, 122
        %v2230 = vpop.permute.xlu0 %2229
        %2231 = vrot.lane.b32.xlu0 %v2091, 122
        %v2232 = vpop.permute.xlu0 %2231
        %2233 = vrot.lane.b32.xlu0 %v2092, 122
        %v2234 = vpop.permute.xlu0 %2233
        %2235 = vrot.lane.b32.xlu0 %v2093, 122
        %v2236 = vpop.permute.xlu0 %2235
        %2237 = vrot.lane.b32.xlu0 %v2094, 122
        %v2238 = vpop.permute.xlu0 %2237
        %2239 = vrot.lane.b32.xlu0 %v2095, 122
        %v2240 = vpop.permute.xlu0 %2239
        %2241 = vrot.lane.b32.xlu0 %v2096, 122
        %v2242 = vpop.permute.xlu0 %2241
        %2243 = vrot.lane.b32.xlu0 %v2097, 122
        %v2244 = vpop.permute.xlu0 %2243
        %2245 = vrot.lane.b32.xlu0 %v2098, 122
        %v2246 = vpop.permute.xlu0 %2245
        %2247 = vrot.lane.b32.xlu0 %v2099, 122
        %v2248 = vpop.permute.xlu0 %2247
        %2249 = vrot.lane.b32.xlu0 %v2100, 122
        %v2250 = vpop.permute.xlu0 %2249
        %2251 = vrot.lane.b32.xlu0 %v2101, 122
        %v2252 = vpop.permute.xlu0 %2251
        %2253 = vrot.lane.b32.xlu0 %v2102, 122
        %v2254 = vpop.permute.xlu0 %2253
        %2255 = vrot.lane.b32.xlu0 %v2103, 122
        %v2256 = vpop.permute.xlu0 %2255
        %2257 = vrot.lane.b32.xlu0 %v2104, 122
        %v2258 = vpop.permute.xlu0 %2257
        %2259 = vrot.lane.b32.xlu0 %v2105, 122
        %v2260 = vpop.permute.xlu0 %2259
        %2261 = vrot.lane.b32.xlu0 %v2106, 122
        %v2262 = vpop.permute.xlu0 %2261
        %2263 = vrot.lane.b32.xlu0 %v2107, 122
        %v2264 = vpop.permute.xlu0 %2263
        %2265 = vrot.lane.b32.xlu0 %v2108, 122
        %v2266 = vpop.permute.xlu0 %2265
        %2267 = vrot.lane.b32.xlu0 %v2109, 122
        %v2268 = vpop.permute.xlu0 %2267
        %2269 = vrot.lane.b32.xlu0 %v2110, 122
        %v2270 = vpop.permute.xlu0 %2269
        %2271 = vrot.lane.b32.xlu0 %v2111, 122
        %v2272 = vpop.permute.xlu0 %2271
        %2273 = vrot.lane.b32.xlu0 %v2112, 122
        %v2274 = vpop.permute.xlu0 %2273
        %2275 = vrot.lane.b32.xlu0 %v2113, 122
        %v2276 = vpop.permute.xlu0 %2275
        %2277 = vrot.lane.b32.xlu0 %v2114, 122
        %v2278 = vpop.permute.xlu0 %2277
        %2279 = vrot.lane.b32.xlu0 %v2115, 122
        %v2280 = vpop.permute.xlu0 %2279
        %2281 = vrot.lane.b32.xlu0 %v2116, 122
        %v2282 = vpop.permute.xlu0 %2281
        %2283 = vrot.lane.b32.xlu0 %v2117, 122
        %v2284 = vpop.permute.xlu0 %2283
        %2285 = vrot.lane.b32.xlu0 %v2118, 122
        %v2286 = vpop.permute.xlu0 %2285
        %vm2287 = vcmask 998400
        %v2288 = vsel %vm2287, %v2176, %v2178
        %v2289 = vsel %vm2287, %v2180, %v2182
        %v2290 = vsel %vm2287, %v2184, %v2186
        %v2291 = vsel %vm2287, %v2188, %v2190
        %v2292 = vsel %vm2287, %v2192, %v2194
        %v2293 = vsel %vm2287, %v2196, %v2198
        %v2294 = vsel %vm2287, %v2200, %v2202
        %v2295 = vsel %vm2287, %v2204, %v2206
        %v2296 = vsel %vm2287, %v2208, %v2210
        %v2297 = vsel %vm2287, %v2212, %v2214
        %v2298 = vsel %vm2287, %v2216, %v2218
        %v2299 = vsel %vm2287, %v2220, %v2222
        %v2300 = vsel %vm2287, %v2224, %v2226
        %v2301 = vsel %vm2287, %v2228, %v2230
        %v2302 = vsel %vm2287, %v2232, %v2234
        %v2303 = vsel %vm2287, %v2236, %v2238
        %v2304 = vsel %vm2287, %v2240, %v2242
        %v2305 = vsel %vm2287, %v2244, %v2246
        %v2306 = vsel %vm2287, %v2248, %v2250
        %v2307 = vsel %vm2287, %v2252, %v2254
        %v2308 = vsel %vm2287, %v2256, %v2258
        %v2309 = vsel %vm2287, %v2260, %v2262
        %v2310 = vsel %vm2287, %v2264, %v2266
        %v2311 = vsel %vm2287, %v2268, %v2270
        %v2312 = vsel %vm2287, %v2272, %v2274
        %v2313 = vsel %vm2287, %v2276, %v2278
        %v2314 = vsel %vm2287, %v2280, %v2282
        %v2315 = vsel %vm2287, %v2284, %v2286
        %v2372 = vmax.f32 %v2063, %v2288
        %v2373 = vmax.f32 %v2064, %v2178
        %v2374 = vmax.f32 %v2065, %v2289
        %v2375 = vmax.f32 %v2066, %v2182
        %v2376 = vmax.f32 %v2067, %v2290
        %v2377 = vmax.f32 %v2068, %v2186
        %v2378 = vmax.f32 %v2069, %v2291
        %v2379 = vmax.f32 %v2070, %v2190
        %v2380 = vmax.f32 %v2071, %v2292
        %v2381 = vmax.f32 %v2072, %v2194
        %v2382 = vmax.f32 %v2073, %v2293
        %v2383 = vmax.f32 %v2074, %v2198
        %v2384 = vmax.f32 %v2075, %v2294
        %v2385 = vmax.f32 %v2076, %v2202
        %v2386 = vmax.f32 %v2077, %v2295
        %v2387 = vmax.f32 %v2078, %v2206
        %v2388 = vmax.f32 %v2079, %v2296
        %v2389 = vmax.f32 %v2080, %v2210
        %v2390 = vmax.f32 %v2081, %v2297
        %v2391 = vmax.f32 %v2082, %v2214
        %v2392 = vmax.f32 %v2083, %v2298
        %v2393 = vmax.f32 %v2084, %v2218
        %v2394 = vmax.f32 %v2085, %v2299
        %v2395 = vmax.f32 %v2086, %v2222
        %v2396 = vmax.f32 %v2087, %v2300
        %v2397 = vmax.f32 %v2088, %v2226
        %v2398 = vmax.f32 %v2089, %v2301
        %v2399 = vmax.f32 %v2090, %v2230
        %v2400 = vmax.f32 %v2091, %v2302
        %v2401 = vmax.f32 %v2092, %v2234
        %v2402 = vmax.f32 %v2093, %v2303
        %v2403 = vmax.f32 %v2094, %v2238
        %v2404 = vmax.f32 %v2095, %v2304
        %v2405 = vmax.f32 %v2096, %v2242
        %v2406 = vmax.f32 %v2097, %v2305
        %v2407 = vmax.f32 %v2098, %v2246
        %v2408 = vmax.f32 %v2099, %v2306
        %v2409 = vmax.f32 %v2100, %v2250
        %v2410 = vmax.f32 %v2101, %v2307
        %v2411 = vmax.f32 %v2102, %v2254
        %v2412 = vmax.f32 %v2103, %v2308
        %v2413 = vmax.f32 %v2104, %v2258
        %v2414 = vmax.f32 %v2105, %v2309
        %v2415 = vmax.f32 %v2106, %v2262
        %v2416 = vmax.f32 %v2107, %v2310
        %v2417 = vmax.f32 %v2108, %v2266
        %v2418 = vmax.f32 %v2109, %v2311
        %v2419 = vmax.f32 %v2110, %v2270
        %v2420 = vmax.f32 %v2111, %v2312
        %v2421 = vmax.f32 %v2112, %v2274
        %v2422 = vmax.f32 %v2113, %v2313
        %v2423 = vmax.f32 %v2114, %v2278
        %v2424 = vmax.f32 %v2115, %v2314
        %v2425 = vmax.f32 %v2116, %v2282
        %v2426 = vmax.f32 %v2117, %v2315
        %v2427 = vmax.f32 %v2118, %v2286
        %v2428 = vmax.f32 %v2372, %v2374
        %v2429 = vmax.f32 %v2373, %v2375
        %v2430 = vmax.f32 %v2376, %v2378
        %v2431 = vmax.f32 %v2377, %v2379
        %v2432 = vmax.f32 %v2380, %v2382
        %v2433 = vmax.f32 %v2381, %v2383
        %v2434 = vmax.f32 %v2384, %v2386
        %v2435 = vmax.f32 %v2385, %v2387
        %v2436 = vmax.f32 %v2388, %v2390
        %v2437 = vmax.f32 %v2389, %v2391
        %v2438 = vmax.f32 %v2392, %v2394
        %v2439 = vmax.f32 %v2393, %v2395
        %v2440 = vmax.f32 %v2396, %v2398
        %v2441 = vmax.f32 %v2397, %v2399
        %v2442 = vmax.f32 %v2400, %v2402
        %v2443 = vmax.f32 %v2401, %v2403
        %v2444 = vmax.f32 %v2404, %v2406
        %v2445 = vmax.f32 %v2405, %v2407
        %v2446 = vmax.f32 %v2408, %v2410
        %v2447 = vmax.f32 %v2409, %v2411
        %v2448 = vmax.f32 %v2412, %v2414
        %v2449 = vmax.f32 %v2413, %v2415
        %v2450 = vmax.f32 %v2416, %v2418
        %v2451 = vmax.f32 %v2417, %v2419
        %v2452 = vmax.f32 %v2420, %v2422
        %v2453 = vmax.f32 %v2421, %v2423
        %v2454 = vmax.f32 %v2424, %v2426
        %v2455 = vmax.f32 %v2425, %v2427
        %v2456 = vld [vmem:[%s3] sm:$0xff]
        %v2457 = vld [vmem:[%s3 + $0x8] sm:$0xff]
        %v2458 = vld [vmem:[%s3 + $0x10] sm:$0xff]
        %v2459 = vld [vmem:[%s3 + $0x18] sm:$0xff]
        %v2460 = vld [vmem:[%s3 + $0x20] sm:$0xff]
        %v2461 = vld [vmem:[%s3 + $0x28] sm:$0xff]
        %v2462 = vld [vmem:[%s3 + $0x30] sm:$0xff]
        %v2463 = vld [vmem:[%s3 + $0x38] sm:$0xff]
        %v2464 = vld [vmem:[%s3 + $0x40] sm:$0xff]
        %v2465 = vld [vmem:[%s3 + $0x48] sm:$0xff]
        %v2466 = vld [vmem:[%s3 + $0x50] sm:$0xff]
        %v2467 = vld [vmem:[%s3 + $0x58] sm:$0xff]
        %v2468 = vld [vmem:[%s3 + $0x60] sm:$0xff]
        %v2469 = vld [vmem:[%s3 + $0x68] sm:$0xff]
        %v2470 = vld [vmem:[%s3 + $0x70] sm:$0xff]
        %v2471 = vld [vmem:[%s3 + $0x78] sm:$0xff]
        %v2472 = vld [vmem:[%s3 + $0x80] sm:$0xff]
        %v2473 = vld [vmem:[%s3 + $0x88] sm:$0xff]
        %v2474 = vld [vmem:[%s3 + $0x90] sm:$0xff]
        %v2475 = vld [vmem:[%s3 + $0x98] sm:$0xff]
        %v2476 = vld [vmem:[%s3 + $0xa0] sm:$0xff]
        %v2477 = vld [vmem:[%s3 + $0xa8] sm:$0xff]
        %v2478 = vld [vmem:[%s3 + $0xb0] sm:$0xff]
        %v2479 = vld [vmem:[%s3 + $0xb8] sm:$0xff]
        %v2480 = vld [vmem:[%s3 + $0xc0] sm:$0xff]
        %v2481 = vld [vmem:[%s3 + $0xc8] sm:$0xff]
        %v2482 = vld [vmem:[%s3 + $0xd0] sm:$0xff]
        %v2483 = vld [vmem:[%s3 + $0xd8] sm:$0xff]
        %v2484 = vld [vmem:[%s3 + $0xe0] sm:$0xff]
        %v2485 = vld [vmem:[%s3 + $0xe8] sm:$0xff]
        %v2486 = vld [vmem:[%s3 + $0xf0] sm:$0xff]
        %v2487 = vld [vmem:[%s3 + $0xf8] sm:$0xff]
        %v2488 = vld [vmem:[%s3 + $0x100] sm:$0xff]
        %v2489 = vld [vmem:[%s3 + $0x108] sm:$0xff]
        %v2490 = vld [vmem:[%s3 + $0x110] sm:$0xff]
        %v2491 = vld [vmem:[%s3 + $0x118] sm:$0xff]
        %v2492 = vld [vmem:[%s3 + $0x120] sm:$0xff]
        %v2493 = vld [vmem:[%s3 + $0x128] sm:$0xff]
        %v2494 = vld [vmem:[%s3 + $0x130] sm:$0xff]
        %v2495 = vld [vmem:[%s3 + $0x138] sm:$0xff]
        %v2496 = vld [vmem:[%s3 + $0x140] sm:$0x3]
        %v2497 = vld [vmem:[%s3 + $0x148] sm:$0x3]
        %s2498 = scalar_lea.vmem %s3, 336
        %v2499 = vld [vmem:[%s2498] sm:$0xff]
        %v2500 = vld [vmem:[%s2498 + $0x8] sm:$0xff]
        %v2501 = vld [vmem:[%s2498 + $0x10] sm:$0xff]
        %v2502 = vld [vmem:[%s2498 + $0x18] sm:$0xff]
        %v2503 = vld [vmem:[%s2498 + $0x20] sm:$0xff]
        %v2504 = vld [vmem:[%s2498 + $0x28] sm:$0xff]
        %v2505 = vld [vmem:[%s2498 + $0x30] sm:$0xff]
        %v2506 = vld [vmem:[%s2498 + $0x38] sm:$0xff]
        %v2507 = vld [vmem:[%s2498 + $0x40] sm:$0xff]
        %v2508 = vld [vmem:[%s2498 + $0x48] sm:$0xff]
        %v2509 = vld [vmem:[%s2498 + $0x50] sm:$0xff]
        %v2510 = vld [vmem:[%s2498 + $0x58] sm:$0xff]
        %v2511 = vld [vmem:[%s2498 + $0x60] sm:$0xff]
        %v2512 = vld [vmem:[%s2498 + $0x68] sm:$0xff]
        %v2513 = vld [vmem:[%s2498 + $0x70] sm:$0xff]
        %v2514 = vld [vmem:[%s2498 + $0x78] sm:$0xff]
        %v2515 = vld [vmem:[%s2498 + $0x80] sm:$0xff]
        %v2516 = vld [vmem:[%s2498 + $0x88] sm:$0xff]
        %v2517 = vld [vmem:[%s2498 + $0x90] sm:$0xff]
        %v2518 = vld [vmem:[%s2498 + $0x98] sm:$0xff]
        %v2519 = vld [vmem:[%s2498 + $0xa0] sm:$0xff]
        %v2520 = vld [vmem:[%s2498 + $0xa8] sm:$0xff]
        %v2521 = vld [vmem:[%s2498 + $0xb0] sm:$0xff]
        %v2522 = vld [vmem:[%s2498 + $0xb8] sm:$0xff]
        %v2523 = vld [vmem:[%s2498 + $0xc0] sm:$0xff]
        %v2524 = vld [vmem:[%s2498 + $0xc8] sm:$0xff]
        %v2525 = vld [vmem:[%s2498 + $0xd0] sm:$0xff]
        %v2526 = vld [vmem:[%s2498 + $0xd8] sm:$0xff]
        %v2527 = vld [vmem:[%s2498 + $0xe0] sm:$0xff]
        %v2528 = vld [vmem:[%s2498 + $0xe8] sm:$0xff]
        %v2529 = vld [vmem:[%s2498 + $0xf0] sm:$0xff]
        %v2530 = vld [vmem:[%s2498 + $0xf8] sm:$0xff]
        %v2531 = vld [vmem:[%s2498 + $0x100] sm:$0xff]
        %v2532 = vld [vmem:[%s2498 + $0x108] sm:$0xff]
        %v2533 = vld [vmem:[%s2498 + $0x110] sm:$0xff]
        %v2534 = vld [vmem:[%s2498 + $0x118] sm:$0xff]
        %v2535 = vld [vmem:[%s2498 + $0x120] sm:$0xff]
        %v2536 = vld [vmem:[%s2498 + $0x128] sm:$0xff]
        %v2537 = vld [vmem:[%s2498 + $0x130] sm:$0xff]
        %v2538 = vld [vmem:[%s2498 + $0x138] sm:$0xff]
        %v2539 = vld [vmem:[%s2498 + $0x140] sm:$0x3]
        %v2540 = vld [vmem:[%s2498 + $0x148] sm:$0x3]
        %vm2541 = vcmask 277504
        %v2543 = vsel %vm2541, %v2431, 0
        %v2546 = vsel %vm2541, %v2433, 0
        %v2549 = vsel %vm2541, %v2435, 0
        %v2552 = vsel %vm2541, %v2437, 0
        %v2555 = vsel %vm2541, %v2439, 0
        %v2558 = vsel %vm2541, %v2441, 0
        %v2561 = vsel %vm2541, %v2443, 0
        %v2564 = vsel %vm2541, %v2445, 0
        %v2567 = vsel %vm2541, %v2447, 0
        %v2570 = vsel %vm2541, %v2449, 0
        %vm2572 = vcmask 1041408
        %v2574 = vsel %vm2572, %v2539, 0
        %v2577 = vsel %vm2572, %v2540, 0
        %2579 = vmatprep.subr.mxu0 %v2500
        %2580 = vmatpush1.msra.mxu0 %v2499
        %2581 = vmatprep.subr.mxu0 %v2502
        %2582 = vmatpush1.msra.mxu0 %v2501
        %2583 = vmatprep.subr.mxu0 %v2504
        %2584 = vmatpush1.msra.mxu0 %v2503
        %2585 = vmatprep.subr.mxu0 %v2506
        %2586 = vmatpush1.msra.mxu0 %v2505
        %2587 = vmatprep.subr.mxu0 %v2508
        %2588 = vmatpush1.msra.mxu0 %v2507
        %2589 = vmatprep.subr.mxu0 %v2510
        %2590 = vmatpush1.msra.mxu0 %v2509
        %2591 = vmatprep.subr.mxu0 %v2512
        %2592 = vmatpush1.msra.mxu0 %v2511
        %2593 = vmatprep.subr.mxu0 %v2514
        %2594 = vmatpush1.msra.mxu0 %v2513
        %2595 = vmatprep.subr.mxu0 %v2516
        %2596 = vmatpush1.msra.mxu0 %v2515
        %2597 = vmatprep.subr.mxu0 %v2518
        %2598 = vmatpush1.msra.mxu0 %v2517
        %2599 = vmatprep.subr.mxu0 %v2520
        %2600 = vmatpush1.msra.mxu0 %v2519
        %2601 = vmatprep.subr.mxu0 %v2522
        %2602 = vmatpush1.msra.mxu0 %v2521
        %2603 = vmatprep.subr.mxu0 %v2524
        %2604 = vmatpush1.msra.mxu0 %v2523
        %2605 = vmatprep.subr.mxu0 %v2526
        %2606 = vmatpush1.msra.mxu0 %v2525
        %2607 = vmatprep.subr.mxu0 %v2528
        %2608 = vmatpush1.msra.mxu0 %v2527
        %2609 = vmatprep.subr.mxu0 %v2530
        %2610 = vmatpush1.msra.mxu0 %v2529
        %2611 = vmatprep.subr.mxu0 %v2532
        %2612 = vmatpush1.msra.mxu0 %v2531
        %2613 = vmatprep.subr.mxu0 %v2534
        %2614 = vmatpush1.msra.mxu0 %v2533
        %2615 = vmatprep.subr.mxu0 %v2536
        %2616 = vmatpush1.msra.mxu0 %v2535
        %2617 = vmatprep.subr.mxu0 %v2538
        %2618 = vmatpush1.msra.mxu0 %v2537
        %2619 = vmatprep.subr.mxu0 %v2577
        %2620 = vmatpush1.msra.mxu0 %v2574
        %2621 = vmatprep.subr.mxu0 0.0
        %2622 = vmatpush1.msra.mxu0 0.0
        %2623 = vmatprep.subr.mxu0 0.0
        %2624 = vmatpush1.msra.mxu0 0.0
        %2625 = vmatprep.subr.mxu0 0.0
        %2626 = vmatpush1.msra.mxu0 0.0
        %2627 = vmatprep.subr.mxu0 0.0
        %2628 = vmatpush1.msra.mxu0 0.0
        %2629 = vmatprep.subr.mxu0 0.0
        %2630 = vmatpush1.msra.mxu0 0.0
        %2631 = vmatprep.subr.mxu0 0.0
        %2632 = vmatpush1.msra.mxu0 0.0
        %2633 = vmatprep.subr.mxu0 0.0
        %2634 = vmatpush1.msra.mxu0 0.0
        %2635 = vmatprep.subr.mxu0 0.0
        %2636 = vmatpush1.msra.mxu0 0.0
        %2637 = vmatprep.subr.mxu0 0.0
        %2638 = vmatpush1.msra.mxu0 0.0
        %2639 = vmatprep.subr.mxu0 0.0
        %2640 = vmatpush1.msra.mxu0 0.0
        %2641 = vmatprep.subr.mxu0 0.0
        %2642 = vmatpush1.msra.mxu0 0.0
        %2643 = vmatprep.mubr.f32.mxu0 %v2543
        %2644 = vmatmul.mubr.f32.gmra.mrb[0].mxu0 %v2430
        %v2645 = vpop.f32.mrb[0].mxu0
        %v2646 = vadd.f32 0.0, %v2645
        %v2647 = vpop.f32.mrb[0].mxu0
        %v2648 = vadd.f32 0.0, %v2647
        %2649 = vmatprep.mubr.f32.mxu0 %v2546
        %2650 = vmatmul.mubr.f32.gmra.mrb[0].mxu0 %v2432
        %v2651 = vpop.f32.mrb[0].mxu0
        %v2652 = vadd.f32 0.0, %v2651
        %v2653 = vpop.f32.mrb[0].mxu0
        %v2654 = vadd.f32 0.0, %v2653
        %2655 = vmatprep.mubr.f32.mxu0 %v2549
        %2656 = vmatmul.mubr.f32.gmra.mrb[0].mxu0 %v2434
        %v2657 = vpop.f32.mrb[0].mxu0
        %v2658 = vadd.f32 0.0, %v2657
        %v2659 = vpop.f32.mrb[0].mxu0
        %v2660 = vadd.f32 0.0, %v2659
        %2661 = vmatprep.mubr.f32.mxu0 %v2552
        %2662 = vmatmul.mubr.f32.gmra.mrb[0].mxu0 %v2436
        %v2663 = vpop.f32.mrb[0].mxu0
        %v2664 = vadd.f32 0.0, %v2663
        %v2665 = vpop.f32.mrb[0].mxu0
        %v2666 = vadd.f32 0.0, %v2665
        %2667 = vmatprep.mubr.f32.mxu0 %v2555
        %2668 = vmatmul.mubr.f32.gmra.mrb[0].mxu0 %v2438
        %v2669 = vpop.f32.mrb[0].mxu0
        %v2670 = vadd.f32 0.0, %v2669
        %v2671 = vpop.f32.mrb[0].mxu0
        %v2672 = vadd.f32 0.0, %v2671
        %2673 = vmatprep.mubr.f32.mxu0 %v2558
        %2674 = vmatmul.mubr.f32.gmra.mrb[0].mxu0 %v2440
        %v2675 = vpop.f32.mrb[0].mxu0
        %v2676 = vadd.f32 0.0, %v2675
        %v2677 = vpop.f32.mrb[0].mxu0
        %v2678 = vadd.f32 0.0, %v2677
        %2679 = vmatprep.mubr.f32.mxu0 %v2561
        %2680 = vmatmul.mubr.f32.gmra.mrb[0].mxu0 %v2442
        %v2681 = vpop.f32.mrb[0].mxu0
        %v2682 = vadd.f32 0.0, %v2681
        %v2683 = vpop.f32.mrb[0].mxu0
        %v2684 = vadd.f32 0.0, %v2683
        %2685 = vmatprep.mubr.f32.mxu0 %v2564
        %2686 = vmatmul.mubr.f32.gmra.mrb[0].mxu0 %v2444
        %v2687 = vpop.f32.mrb[0].mxu0
        %v2688 = vadd.f32 0.0, %v2687
        %v2689 = vpop.f32.mrb[0].mxu0
        %v2690 = vadd.f32 0.0, %v2689
        %2691 = vmatprep.mubr.f32.mxu0 %v2567
        %2692 = vmatmul.mubr.f32.gmra.mrb[0].mxu0 %v2446
        %v2693 = vpop.f32.mrb[0].mxu0
        %v2694 = vadd.f32 0.0, %v2693
        %v2695 = vpop.f32.mrb[0].mxu0
        %v2696 = vadd.f32 0.0, %v2695
        %2697 = vmatprep.mubr.f32.mxu0 %v2570
        %2698 = vmatmul.mubr.f32.gmra.mrb[0].mxu0 %v2448
        %v2699 = vpop.f32.mrb[0].mxu0
        %v2700 = vadd.f32 0.0, %v2699
        %v2701 = vpop.f32.mrb[0].mxu0
        %v2702 = vadd.f32 0.0, %v2701
        %2703 = vdwg.mxu0
        %v2705 = vsel %vm2541, %v2429, 0
        %v2708 = vsel %vm2572, %v2496, 0
        %v2711 = vsel %vm2572, %v2497, 0
        %2713 = vmatprep.subr.mxu0 %v2457
        %2714 = vmatpush1.msra.mxu0 %v2456
        %2715 = vmatprep.subr.mxu0 %v2459
        %2716 = vmatpush1.msra.mxu0 %v2458
        %2717 = vmatprep.subr.mxu0 %v2461
        %2718 = vmatpush1.msra.mxu0 %v2460
        %2719 = vmatprep.subr.mxu0 %v2463
        %2720 = vmatpush1.msra.mxu0 %v2462
        %2721 = vmatprep.subr.mxu0 %v2465
        %2722 = vmatpush1.msra.mxu0 %v2464
        %2723 = vmatprep.subr.mxu0 %v2467
        %2724 = vmatpush1.msra.mxu0 %v2466
        %2725 = vmatprep.subr.mxu0 %v2469
        %2726 = vmatpush1.msra.mxu0 %v2468
        %2727 = vmatprep.subr.mxu0 %v2471
        %2728 = vmatpush1.msra.mxu0 %v2470
        %2729 = vmatprep.subr.mxu0 %v2473
        %2730 = vmatpush1.msra.mxu0 %v2472
        %2731 = vmatprep.subr.mxu0 %v2475
        %2732 = vmatpush1.msra.mxu0 %v2474
        %2733 = vmatprep.subr.mxu0 %v2477
        %2734 = vmatpush1.msra.mxu0 %v2476
        %2735 = vmatprep.subr.mxu0 %v2479
        %2736 = vmatpush1.msra.mxu0 %v2478
        %2737 = vmatprep.subr.mxu0 %v2481
        %2738 = vmatpush1.msra.mxu0 %v2480
        %2739 = vmatprep.subr.mxu0 %v2483
        %2740 = vmatpush1.msra.mxu0 %v2482
        %2741 = vmatprep.subr.mxu0 %v2485
        %2742 = vmatpush1.msra.mxu0 %v2484
        %2743 = vmatprep.subr.mxu0 %v2487
        %2744 = vmatpush1.msra.mxu0 %v2486
        %2745 = vmatprep.subr.mxu0 %v2489
        %2746 = vmatpush1.msra.mxu0 %v2488
        %2747 = vmatprep.subr.mxu0 %v2491
        %2748 = vmatpush1.msra.mxu0 %v2490
        %2749 = vmatprep.subr.mxu0 %v2493
        %2750 = vmatpush1.msra.mxu0 %v2492
        %2751 = vmatprep.subr.mxu0 %v2495
        %2752 = vmatpush1.msra.mxu0 %v2494
        %2753 = vmatprep.subr.mxu0 %v2711
        %2754 = vmatpush1.msra.mxu0 %v2708
        %2755 = vmatprep.subr.mxu0 0.0
        %2756 = vmatpush1.msra.mxu0 0.0
        %2757 = vmatprep.subr.mxu0 0.0
        %2758 = vmatpush1.msra.mxu0 0.0
        %2759 = vmatprep.subr.mxu0 0.0
        %2760 = vmatpush1.msra.mxu0 0.0
        %2761 = vmatprep.subr.mxu0 0.0
        %2762 = vmatpush1.msra.mxu0 0.0
        %2763 = vmatprep.subr.mxu0 0.0
        %2764 = vmatpush1.msra.mxu0 0.0
        %2765 = vmatprep.subr.mxu0 0.0
        %2766 = vmatpush1.msra.mxu0 0.0
        %2767 = vmatprep.subr.mxu0 0.0
        %2768 = vmatpush1.msra.mxu0 0.0
        %2769 = vmatprep.subr.mxu0 0.0
        %2770 = vmatpush1.msra.mxu0 0.0
        %2771 = vmatprep.subr.mxu0 0.0
        %2772 = vmatpush1.msra.mxu0 0.0
        %2773 = vmatprep.subr.mxu0 0.0
        %2774 = vmatpush1.msra.mxu0 0.0
        %2775 = vmatprep.subr.mxu0 0.0
        %2776 = vmatpush1.msra.mxu0 0.0
        %2777 = vmatprep.mubr.f32.mxu0 %v2705
        %2778 = vmatmul.mubr.f32.gmra.mrb[0].mxu0 %v2428
        %v2779 = vpop.f32.mrb[0].mxu0
        %v2780 = vadd.f32 %v2646, %v2779
        %v2781 = vpop.f32.mrb[0].mxu0
        %v2782 = vadd.f32 %v2648, %v2781
        %2783 = vmatprep.mubr.f32.mxu0 %v2543
        %2784 = vmatmul.mubr.f32.gmra.mrb[0].mxu0 %v2430
        %v2785 = vpop.f32.mrb[0].mxu0
        %v2786 = vadd.f32 %v2652, %v2785
        %v2787 = vpop.f32.mrb[0].mxu0
        %v2788 = vadd.f32 %v2654, %v2787
        %2789 = vmatprep.mubr.f32.mxu0 %v2546
        %2790 = vmatmul.mubr.f32.gmra.mrb[0].mxu0 %v2432
        %v2791 = vpop.f32.mrb[0].mxu0
        %v2792 = vadd.f32 %v2658, %v2791
        %v2793 = vpop.f32.mrb[0].mxu0
        %v2794 = vadd.f32 %v2660, %v2793
        %2795 = vmatprep.mubr.f32.mxu0 %v2549
        %2796 = vmatmul.mubr.f32.gmra.mrb[0].mxu0 %v2434
        %v2797 = vpop.f32.mrb[0].mxu0
        %v2798 = vadd.f32 %v2664, %v2797
        %v2799 = vpop.f32.mrb[0].mxu0
        %v2800 = vadd.f32 %v2666, %v2799
        %2801 = vmatprep.mubr.f32.mxu0 %v2552
        %2802 = vmatmul.mubr.f32.gmra.mrb[0].mxu0 %v2436
        %v2803 = vpop.f32.mrb[0].mxu0
        %v2804 = vadd.f32 %v2670, %v2803
        %v2805 = vpop.f32.mrb[0].mxu0
        %v2806 = vadd.f32 %v2672, %v2805
        %2807 = vmatprep.mubr.f32.mxu0 %v2555
        %2808 = vmatmul.mubr.f32.gmra.mrb[0].mxu0 %v2438
        %v2809 = vpop.f32.mrb[0].mxu0
        %v2810 = vadd.f32 %v2676, %v2809
        %v2811 = vpop.f32.mrb[0].mxu0
        %v2812 = vadd.f32 %v2678, %v2811
        %2813 = vmatprep.mubr.f32.mxu0 %v2558
        %2814 = vmatmul.mubr.f32.gmra.mrb[0].mxu0 %v2440
        %v2815 = vpop.f32.mrb[0].mxu0
        %v2816 = vadd.f32 %v2682, %v2815
        %v2817 = vpop.f32.mrb[0].mxu0
        %v2818 = vadd.f32 %v2684, %v2817
        %2819 = vmatprep.mubr.f32.mxu0 %v2561
        %2820 = vmatmul.mubr.f32.gmra.mrb[0].mxu0 %v2442
        %v2821 = vpop.f32.mrb[0].mxu0
        %v2822 = vadd.f32 %v2688, %v2821
        %v2823 = vpop.f32.mrb[0].mxu0
        %v2824 = vadd.f32 %v2690, %v2823
        %2825 = vmatprep.mubr.f32.mxu0 %v2564
        %2826 = vmatmul.mubr.f32.gmra.mrb[0].mxu0 %v2444
        %v2827 = vpop.f32.mrb[0].mxu0
        %v2828 = vadd.f32 %v2694, %v2827
        %v2829 = vpop.f32.mrb[0].mxu0
        %v2830 = vadd.f32 %v2696, %v2829
        %2831 = vmatprep.mubr.f32.mxu0 %v2567
        %2832 = vmatmul.mubr.f32.gmra.mrb[0].mxu0 %v2446
        %v2833 = vpop.f32.mrb[0].mxu0
        %v2834 = vadd.f32 %v2700, %v2833
        %v2835 = vpop.f32.mrb[0].mxu0
        %v2836 = vadd.f32 %v2702, %v2835
        %2837 = vdwg.mxu0
        %s2838 = scalar_lea.vmem %s3, 672
        %v2839 = vld [vmem:[%s2838] sm:$0xff]
        %v2840 = vld [vmem:[%s2838 + $0x8] sm:$0xff]
        %v2841 = vld [vmem:[%s2838 + $0x10] sm:$0xff]
        %v2842 = vld [vmem:[%s2838 + $0x18] sm:$0xff]
        %v2843 = vld [vmem:[%s2838 + $0x20] sm:$0xff]
        %v2844 = vld [vmem:[%s2838 + $0x28] sm:$0xff]
        %v2845 = vld [vmem:[%s2838 + $0x30] sm:$0xff]
        %v2846 = vld [vmem:[%s2838 + $0x38] sm:$0xff]
        %v2847 = vld [vmem:[%s2838 + $0x40] sm:$0xff]
        %v2848 = vld [vmem:[%s2838 + $0x48] sm:$0xff]
        %v2849 = vld [vmem:[%s2838 + $0x50] sm:$0xff]
        %v2850 = vld [vmem:[%s2838 + $0x58] sm:$0xff]
        %v2851 = vld [vmem:[%s2838 + $0x60] sm:$0xff]
        %v2852 = vld [vmem:[%s2838 + $0x68] sm:$0xff]
        %v2853 = vld [vmem:[%s2838 + $0x70] sm:$0xff]
        %v2854 = vld [vmem:[%s2838 + $0x78] sm:$0xff]
        %v2855 = vld [vmem:[%s2838 + $0x80] sm:$0xff]
        %v2856 = vld [vmem:[%s2838 + $0x88] sm:$0xff]
        %v2857 = vld [vmem:[%s2838 + $0x90] sm:$0xff]
        %v2858 = vld [vmem:[%s2838 + $0x98] sm:$0xff]
        %v2859 = vld [vmem:[%s2838 + $0xa0] sm:$0xff]
        %v2860 = vld [vmem:[%s2838 + $0xa8] sm:$0xff]
        %v2861 = vld [vmem:[%s2838 + $0xb0] sm:$0xff]
        %v2862 = vld [vmem:[%s2838 + $0xb8] sm:$0xff]
        %v2863 = vld [vmem:[%s2838 + $0xc0] sm:$0xff]
        %v2864 = vld [vmem:[%s2838 + $0xc8] sm:$0xff]
        %v2865 = vld [vmem:[%s2838 + $0xd0] sm:$0xff]
        %v2866 = vld [vmem:[%s2838 + $0xd8] sm:$0xff]
        %v2867 = vld [vmem:[%s2838 + $0xe0] sm:$0xff]
        %v2868 = vld [vmem:[%s2838 + $0xe8] sm:$0xff]
        %v2869 = vld [vmem:[%s2838 + $0xf0] sm:$0xff]
        %v2870 = vld [vmem:[%s2838 + $0xf8] sm:$0xff]
        %v2871 = vld [vmem:[%s2838 + $0x100] sm:$0xff]
        %v2872 = vld [vmem:[%s2838 + $0x108] sm:$0xff]
        %v2873 = vld [vmem:[%s2838 + $0x110] sm:$0xff]
        %v2874 = vld [vmem:[%s2838 + $0x118] sm:$0xff]
        %v2875 = vld [vmem:[%s2838 + $0x120] sm:$0xff]
        %v2876 = vld [vmem:[%s2838 + $0x128] sm:$0xff]
        %v2877 = vld [vmem:[%s2838 + $0x130] sm:$0xff]
        %v2878 = vld [vmem:[%s2838 + $0x138] sm:$0xff]
        %v2879 = vld [vmem:[%s2838 + $0x140] sm:$0x3]
        %v2880 = vld [vmem:[%s2838 + $0x148] sm:$0x3]
        %v2882 = vsel %vm2541, %v2451, 0
        %v2885 = vsel %vm2572, %v2879, 0
        %v2888 = vsel %vm2572, %v2880, 0
        %2890 = vmatprep.subr.mxu0 %v2840
        %2891 = vmatpush1.msra.mxu0 %v2839
        %2892 = vmatprep.subr.mxu0 %v2842
        %2893 = vmatpush1.msra.mxu0 %v2841
        %2894 = vmatprep.subr.mxu0 %v2844
        %2895 = vmatpush1.msra.mxu0 %v2843
        %2896 = vmatprep.subr.mxu0 %v2846
        %2897 = vmatpush1.msra.mxu0 %v2845
        %2898 = vmatprep.subr.mxu0 %v2848
        %2899 = vmatpush1.msra.mxu0 %v2847
        %2900 = vmatprep.subr.mxu0 %v2850
        %2901 = vmatpush1.msra.mxu0 %v2849
        %2902 = vmatprep.subr.mxu0 %v2852
        %2903 = vmatpush1.msra.mxu0 %v2851
        %2904 = vmatprep.subr.mxu0 %v2854
        %2905 = vmatpush1.msra.mxu0 %v2853
        %2906 = vmatprep.subr.mxu0 %v2856
        %2907 = vmatpush1.msra.mxu0 %v2855
        %2908 = vmatprep.subr.mxu0 %v2858
        %2909 = vmatpush1.msra.mxu0 %v2857
        %2910 = vmatprep.subr.mxu0 %v2860
        %2911 = vmatpush1.msra.mxu0 %v2859
        %2912 = vmatprep.subr.mxu0 %v2862
        %2913 = vmatpush1.msra.mxu0 %v2861
        %2914 = vmatprep.subr.mxu0 %v2864
        %2915 = vmatpush1.msra.mxu0 %v2863
        %2916 = vmatprep.subr.mxu0 %v2866
        %2917 = vmatpush1.msra.mxu0 %v2865
        %2918 = vmatprep.subr.mxu0 %v2868
        %2919 = vmatpush1.msra.mxu0 %v2867
        %2920 = vmatprep.subr.mxu0 %v2870
        %2921 = vmatpush1.msra.mxu0 %v2869
        %2922 = vmatprep.subr.mxu0 %v2872
        %2923 = vmatpush1.msra.mxu0 %v2871
        %2924 = vmatprep.subr.mxu0 %v2874
        %2925 = vmatpush1.msra.mxu0 %v2873
        %2926 = vmatprep.subr.mxu0 %v2876
        %2927 = vmatpush1.msra.mxu0 %v2875
        %2928 = vmatprep.subr.mxu0 %v2878
        %2929 = vmatpush1.msra.mxu0 %v2877
        %2930 = vmatprep.subr.mxu0 %v2888
        %2931 = vmatpush1.msra.mxu0 %v2885
        %2932 = vmatprep.subr.mxu0 0.0
        %2933 = vmatpush1.msra.mxu0 0.0
        %2934 = vmatprep.subr.mxu0 0.0
        %2935 = vmatpush1.msra.mxu0 0.0
        %2936 = vmatprep.subr.mxu0 0.0
        %2937 = vmatpush1.msra.mxu0 0.0
        %2938 = vmatprep.subr.mxu0 0.0
        %2939 = vmatpush1.msra.mxu0 0.0
        %2940 = vmatprep.subr.mxu0 0.0
        %2941 = vmatpush1.msra.mxu0 0.0
        %2942 = vmatprep.subr.mxu0 0.0
        %2943 = vmatpush1.msra.mxu0 0.0
        %2944 = vmatprep.subr.mxu0 0.0
        %2945 = vmatpush1.msra.mxu0 0.0
        %2946 = vmatprep.subr.mxu0 0.0
        %2947 = vmatpush1.msra.mxu0 0.0
        %2948 = vmatprep.subr.mxu0 0.0
        %2949 = vmatpush1.msra.mxu0 0.0
        %2950 = vmatprep.subr.mxu0 0.0
        %2951 = vmatpush1.msra.mxu0 0.0
        %2952 = vmatprep.subr.mxu0 0.0
        %2953 = vmatpush1.msra.mxu0 0.0
        %2954 = vmatprep.mubr.f32.mxu0 %v2546
        %2955 = vmatmul.mubr.f32.gmra.mrb[0].mxu0 %v2432
        %v2956 = vpop.f32.mrb[0].mxu0
        %v2957 = vadd.f32 0.0, %v2956
        %v2958 = vpop.f32.mrb[0].mxu0
        %v2959 = vadd.f32 0.0, %v2958
        %2960 = vmatprep.mubr.f32.mxu0 %v2549
        %2961 = vmatmul.mubr.f32.gmra.mrb[0].mxu0 %v2434
        %v2962 = vpop.f32.mrb[0].mxu0
        %v2963 = vadd.f32 0.0, %v2962
        %v2964 = vpop.f32.mrb[0].mxu0
        %v2965 = vadd.f32 0.0, %v2964
        %2966 = vmatprep.mubr.f32.mxu0 %v2552
        %2967 = vmatmul.mubr.f32.gmra.mrb[0].mxu0 %v2436
        %v2968 = vpop.f32.mrb[0].mxu0
        %v2969 = vadd.f32 0.0, %v2968
        %v2970 = vpop.f32.mrb[0].mxu0
        %v2971 = vadd.f32 0.0, %v2970
        %2972 = vmatprep.mubr.f32.mxu0 %v2555
        %2973 = vmatmul.mubr.f32.gmra.mrb[0].mxu0 %v2438
        %v2974 = vpop.f32.mrb[0].mxu0
        %v2975 = vadd.f32 0.0, %v2974
        %v2976 = vpop.f32.mrb[0].mxu0
        %v2977 = vadd.f32 0.0, %v2976
        %2978 = vmatprep.mubr.f32.mxu0 %v2558
        %2979 = vmatmul.mubr.f32.gmra.mrb[0].mxu0 %v2440
        %v2980 = vpop.f32.mrb[0].mxu0
        %v2981 = vadd.f32 0.0, %v2980
        %v2982 = vpop.f32.mrb[0].mxu0
        %v2983 = vadd.f32 0.0, %v2982
        %2984 = vmatprep.mubr.f32.mxu0 %v2561
        %2985 = vmatmul.mubr.f32.gmra.mrb[0].mxu0 %v2442
        %v2986 = vpop.f32.mrb[0].mxu0
        %v2987 = vadd.f32 0.0, %v2986
        %v2988 = vpop.f32.mrb[0].mxu0
        %v2989 = vadd.f32 0.0, %v2988
        %2990 = vmatprep.mubr.f32.mxu0 %v2564
        %2991 = vmatmul.mubr.f32.gmra.mrb[0].mxu0 %v2444
        %v2992 = vpop.f32.mrb[0].mxu0
        %v2993 = vadd.f32 0.0, %v2992
        %v2994 = vpop.f32.mrb[0].mxu0
        %v2995 = vadd.f32 0.0, %v2994
        %2996 = vmatprep.mubr.f32.mxu0 %v2567
        %2997 = vmatmul.mubr.f32.gmra.mrb[0].mxu0 %v2446
        %v2998 = vpop.f32.mrb[0].mxu0
        %v2999 = vadd.f32 0.0, %v2998
        %v3000 = vpop.f32.mrb[0].mxu0
        %v3001 = vadd.f32 0.0, %v3000
        %3002 = vmatprep.mubr.f32.mxu0 %v2570
        %3003 = vmatmul.mubr.f32.gmra.mrb[0].mxu0 %v2448
        %v3004 = vpop.f32.mrb[0].mxu0
        %v3005 = vadd.f32 0.0, %v3004
        %v3006 = vpop.f32.mrb[0].mxu0
        %v3007 = vadd.f32 0.0, %v3006
        %3008 = vmatprep.mubr.f32.mxu0 %v2882
        %3009 = vmatmul.mubr.f32.gmra.mrb[0].mxu0 %v2450
        %v3010 = vpop.f32.mrb[0].mxu0
        %v3011 = vadd.f32 0.0, %v3010
        %v3012 = vpop.f32.mrb[0].mxu0
        %v3013 = vadd.f32 0.0, %v3012
        %3014 = vdwg.mxu0
        %v3015 = vadd.f32 %v2780, %v2957
        %v3016 = vadd.f32 %v2782, %v2959
        %v3017 = vadd.f32 %v2786, %v2963
        %v3018 = vadd.f32 %v2788, %v2965
        %v3019 = vadd.f32 %v2792, %v2969
        %v3020 = vadd.f32 %v2794, %v2971
        %v3021 = vadd.f32 %v2798, %v2975
        %v3022 = vadd.f32 %v2800, %v2977
        %v3023 = vadd.f32 %v2804, %v2981
        %v3024 = vadd.f32 %v2806, %v2983
        %v3025 = vadd.f32 %v2810, %v2987
        %v3026 = vadd.f32 %v2812, %v2989
        %v3027 = vadd.f32 %v2816, %v2993
        %v3028 = vadd.f32 %v2818, %v2995
        %v3029 = vadd.f32 %v2822, %v2999
        %v3030 = vadd.f32 %v2824, %v3001
        %v3031 = vadd.f32 %v2828, %v3005
        %v3032 = vadd.f32 %v2830, %v3007
        %v3033 = vadd.f32 %v2834, %v3011
        %v3034 = vadd.f32 %v2836, %v3013
        %s3035 = scalar_lea.vmem %s3, 1008
        %v3036 = vld [vmem:[%s3035] sm:$0xff]
        %v3037 = vld [vmem:[%s3035 + $0x8] sm:$0xff]
        %v3038 = vld [vmem:[%s3035 + $0x10] sm:$0xff]
        %v3039 = vld [vmem:[%s3035 + $0x18] sm:$0xff]
        %v3040 = vld [vmem:[%s3035 + $0x20] sm:$0xff]
        %v3041 = vld [vmem:[%s3035 + $0x28] sm:$0xff]
        %v3042 = vld [vmem:[%s3035 + $0x30] sm:$0xff]
        %v3043 = vld [vmem:[%s3035 + $0x38] sm:$0xff]
        %v3044 = vld [vmem:[%s3035 + $0x40] sm:$0xff]
        %v3045 = vld [vmem:[%s3035 + $0x48] sm:$0xff]
        %v3046 = vld [vmem:[%s3035 + $0x50] sm:$0xff]
        %v3047 = vld [vmem:[%s3035 + $0x58] sm:$0xff]
        %v3048 = vld [vmem:[%s3035 + $0x60] sm:$0xff]
        %v3049 = vld [vmem:[%s3035 + $0x68] sm:$0xff]
        %v3050 = vld [vmem:[%s3035 + $0x70] sm:$0xff]
        %v3051 = vld [vmem:[%s3035 + $0x78] sm:$0xff]
        %v3052 = vld [vmem:[%s3035 + $0x80] sm:$0xff]
        %v3053 = vld [vmem:[%s3035 + $0x88] sm:$0xff]
        %v3054 = vld [vmem:[%s3035 + $0x90] sm:$0xff]
        %v3055 = vld [vmem:[%s3035 + $0x98] sm:$0xff]
        %v3056 = vld [vmem:[%s3035 + $0xa0] sm:$0xff]
        %v3057 = vld [vmem:[%s3035 + $0xa8] sm:$0xff]
        %v3058 = vld [vmem:[%s3035 + $0xb0] sm:$0xff]
        %v3059 = vld [vmem:[%s3035 + $0xb8] sm:$0xff]
        %v3060 = vld [vmem:[%s3035 + $0xc0] sm:$0xff]
        %v3061 = vld [vmem:[%s3035 + $0xc8] sm:$0xff]
        %v3062 = vld [vmem:[%s3035 + $0xd0] sm:$0xff]
        %v3063 = vld [vmem:[%s3035 + $0xd8] sm:$0xff]
        %v3064 = vld [vmem:[%s3035 + $0xe0] sm:$0xff]
        %v3065 = vld [vmem:[%s3035 + $0xe8] sm:$0xff]
        %v3066 = vld [vmem:[%s3035 + $0xf0] sm:$0xff]
        %v3067 = vld [vmem:[%s3035 + $0xf8] sm:$0xff]
        %v3068 = vld [vmem:[%s3035 + $0x100] sm:$0xff]
        %v3069 = vld [vmem:[%s3035 + $0x108] sm:$0xff]
        %v3070 = vld [vmem:[%s3035 + $0x110] sm:$0xff]
        %v3071 = vld [vmem:[%s3035 + $0x118] sm:$0xff]
        %v3072 = vld [vmem:[%s3035 + $0x120] sm:$0xff]
        %v3073 = vld [vmem:[%s3035 + $0x128] sm:$0xff]
        %v3074 = vld [vmem:[%s3035 + $0x130] sm:$0xff]
        %v3075 = vld [vmem:[%s3035 + $0x138] sm:$0xff]
        %v3076 = vld [vmem:[%s3035 + $0x140] sm:$0x3]
        %v3077 = vld [vmem:[%s3035 + $0x148] sm:$0x3]
        %v3079 = vsel %vm2541, %v2453, 0
        %v3082 = vsel %vm2572, %v3076, 0
        %v3085 = vsel %vm2572, %v3077, 0
        %3087 = vmatprep.subr.mxu0 %v3037
        %3088 = vmatpush1.msra.mxu0 %v3036
        %3089 = vmatprep.subr.mxu0 %v3039
        %3090 = vmatpush1.msra.mxu0 %v3038
        %3091 = vmatprep.subr.mxu0 %v3041
        %3092 = vmatpush1.msra.mxu0 %v3040
        %3093 = vmatprep.subr.mxu0 %v3043
        %3094 = vmatpush1.msra.mxu0 %v3042
        %3095 = vmatprep.subr.mxu0 %v3045
        %3096 = vmatpush1.msra.mxu0 %v3044
        %3097 = vmatprep.subr.mxu0 %v3047
        %3098 = vmatpush1.msra.mxu0 %v3046
        %3099 = vmatprep.subr.mxu0 %v3049
        %3100 = vmatpush1.msra.mxu0 %v3048
        %3101 = vmatprep.subr.mxu0 %v3051
        %3102 = vmatpush1.msra.mxu0 %v3050
        %3103 = vmatprep.subr.mxu0 %v3053
        %3104 = vmatpush1.msra.mxu0 %v3052
        %3105 = vmatprep.subr.mxu0 %v3055
        %3106 = vmatpush1.msra.mxu0 %v3054
        %3107 = vmatprep.subr.mxu0 %v3057
        %3108 = vmatpush1.msra.mxu0 %v3056
        %3109 = vmatprep.subr.mxu0 %v3059
        %3110 = vmatpush1.msra.mxu0 %v3058
        %3111 = vmatprep.subr.mxu0 %v3061
        %3112 = vmatpush1.msra.mxu0 %v3060
        %3113 = vmatprep.subr.mxu0 %v3063
        %3114 = vmatpush1.msra.mxu0 %v3062
        %3115 = vmatprep.subr.mxu0 %v3065
        %3116 = vmatpush1.msra.mxu0 %v3064
        %3117 = vmatprep.subr.mxu0 %v3067
        %3118 = vmatpush1.msra.mxu0 %v3066
        %3119 = vmatprep.subr.mxu0 %v3069
        %3120 = vmatpush1.msra.mxu0 %v3068
        %3121 = vmatprep.subr.mxu0 %v3071
        %3122 = vmatpush1.msra.mxu0 %v3070
        %3123 = vmatprep.subr.mxu0 %v3073
        %3124 = vmatpush1.msra.mxu0 %v3072
        %3125 = vmatprep.subr.mxu0 %v3075
        %3126 = vmatpush1.msra.mxu0 %v3074
        %3127 = vmatprep.subr.mxu0 %v3085
        %3128 = vmatpush1.msra.mxu0 %v3082
        %3129 = vmatprep.subr.mxu0 0.0
        %3130 = vmatpush1.msra.mxu0 0.0
        %3131 = vmatprep.subr.mxu0 0.0
        %3132 = vmatpush1.msra.mxu0 0.0
        %3133 = vmatprep.subr.mxu0 0.0
        %3134 = vmatpush1.msra.mxu0 0.0
        %3135 = vmatprep.subr.mxu0 0.0
        %3136 = vmatpush1.msra.mxu0 0.0
        %3137 = vmatprep.subr.mxu0 0.0
        %3138 = vmatpush1.msra.mxu0 0.0
        %3139 = vmatprep.subr.mxu0 0.0
        %3140 = vmatpush1.msra.mxu0 0.0
        %3141 = vmatprep.subr.mxu0 0.0
        %3142 = vmatpush1.msra.mxu0 0.0
        %3143 = vmatprep.subr.mxu0 0.0
        %3144 = vmatpush1.msra.mxu0 0.0
        %3145 = vmatprep.subr.mxu0 0.0
        %3146 = vmatpush1.msra.mxu0 0.0
        %3147 = vmatprep.subr.mxu0 0.0
        %3148 = vmatpush1.msra.mxu0 0.0
        %3149 = vmatprep.subr.mxu0 0.0
        %3150 = vmatpush1.msra.mxu0 0.0
        %3151 = vmatprep.mubr.f32.mxu0 %v2549
        %3152 = vmatmul.mubr.f32.gmra.mrb[0].mxu0 %v2434
        %v3153 = vpop.f32.mrb[0].mxu0
        %v3154 = vadd.f32 0.0, %v3153
        %v3155 = vpop.f32.mrb[0].mxu0
        %v3156 = vadd.f32 0.0, %v3155
        %3157 = vmatprep.mubr.f32.mxu0 %v2552
        %3158 = vmatmul.mubr.f32.gmra.mrb[0].mxu0 %v2436
        %v3159 = vpop.f32.mrb[0].mxu0
        %v3160 = vadd.f32 0.0, %v3159
        %v3161 = vpop.f32.mrb[0].mxu0
        %v3162 = vadd.f32 0.0, %v3161
        %3163 = vmatprep.mubr.f32.mxu0 %v2555
        %3164 = vmatmul.mubr.f32.gmra.mrb[0].mxu0 %v2438
        %v3165 = vpop.f32.mrb[0].mxu0
        %v3166 = vadd.f32 0.0, %v3165
        %v3167 = vpop.f32.mrb[0].mxu0
        %v3168 = vadd.f32 0.0, %v3167
        %3169 = vmatprep.mubr.f32.mxu0 %v2558
        %3170 = vmatmul.mubr.f32.gmra.mrb[0].mxu0 %v2440
        %v3171 = vpop.f32.mrb[0].mxu0
        %v3172 = vadd.f32 0.0, %v3171
        %v3173 = vpop.f32.mrb[0].mxu0
        %v3174 = vadd.f32 0.0, %v3173
        %3175 = vmatprep.mubr.f32.mxu0 %v2561
        %3176 = vmatmul.mubr.f32.gmra.mrb[0].mxu0 %v2442
        %v3177 = vpop.f32.mrb[0].mxu0
        %v3178 = vadd.f32 0.0, %v3177
        %v3179 = vpop.f32.mrb[0].mxu0
        %v3180 = vadd.f32 0.0, %v3179
        %3181 = vmatprep.mubr.f32.mxu0 %v2564
        %3182 = vmatmul.mubr.f32.gmra.mrb[0].mxu0 %v2444
        %v3183 = vpop.f32.mrb[0].mxu0
        %v3184 = vadd.f32 0.0, %v3183
        %v3185 = vpop.f32.mrb[0].mxu0
        %v3186 = vadd.f32 0.0, %v3185
        %3187 = vmatprep.mubr.f32.mxu0 %v2567
        %3188 = vmatmul.mubr.f32.gmra.mrb[0].mxu0 %v2446
        %v3189 = vpop.f32.mrb[0].mxu0
        %v3190 = vadd.f32 0.0, %v3189
        %v3191 = vpop.f32.mrb[0].mxu0
        %v3192 = vadd.f32 0.0, %v3191
        %3193 = vmatprep.mubr.f32.mxu0 %v2570
        %3194 = vmatmul.mubr.f32.gmra.mrb[0].mxu0 %v2448
        %v3195 = vpop.f32.mrb[0].mxu0
        %v3196 = vadd.f32 0.0, %v3195
        %v3197 = vpop.f32.mrb[0].mxu0
        %v3198 = vadd.f32 0.0, %v3197
        %3199 = vmatprep.mubr.f32.mxu0 %v2882
        %3200 = vmatmul.mubr.f32.gmra.mrb[0].mxu0 %v2450
        %v3201 = vpop.f32.mrb[0].mxu0
        %v3202 = vadd.f32 0.0, %v3201
        %v3203 = vpop.f32.mrb[0].mxu0
        %v3204 = vadd.f32 0.0, %v3203
        %3205 = vmatprep.mubr.f32.mxu0 %v3079
        %3206 = vmatmul.mubr.f32.gmra.mrb[0].mxu0 %v2452
        %v3207 = vpop.f32.mrb[0].mxu0
        %v3208 = vadd.f32 0.0, %v3207
        %v3209 = vpop.f32.mrb[0].mxu0
        %v3210 = vadd.f32 0.0, %v3209
        %3211 = vdwg.mxu0
        %v3212 = vadd.f32 %v3015, %v3154
        %v3213 = vadd.f32 %v3016, %v3156
        %v3214 = vadd.f32 %v3017, %v3160
        %v3215 = vadd.f32 %v3018, %v3162
        %v3216 = vadd.f32 %v3019, %v3166
        %v3217 = vadd.f32 %v3020, %v3168
        %v3218 = vadd.f32 %v3021, %v3172
        %v3219 = vadd.f32 %v3022, %v3174
        %v3220 = vadd.f32 %v3023, %v3178
        %v3221 = vadd.f32 %v3024, %v3180
        %v3222 = vadd.f32 %v3025, %v3184
        %v3223 = vadd.f32 %v3026, %v3186
        %v3224 = vadd.f32 %v3027, %v3190
        %v3225 = vadd.f32 %v3028, %v3192
        %v3226 = vadd.f32 %v3029, %v3196
        %v3227 = vadd.f32 %v3030, %v3198
        %v3228 = vadd.f32 %v3031, %v3202
        %v3229 = vadd.f32 %v3032, %v3204
        %v3230 = vadd.f32 %v3033, %v3208
        %v3231 = vadd.f32 %v3034, %v3210
        %s3232 = scalar_lea.vmem %s3, 1344
        %v3233 = vld [vmem:[%s3232] sm:$0xff]
        %v3234 = vld [vmem:[%s3232 + $0x8] sm:$0xff]
        %v3235 = vld [vmem:[%s3232 + $0x10] sm:$0xff]
        %v3236 = vld [vmem:[%s3232 + $0x18] sm:$0xff]
        %v3237 = vld [vmem:[%s3232 + $0x20] sm:$0xff]
        %v3238 = vld [vmem:[%s3232 + $0x28] sm:$0xff]
        %v3239 = vld [vmem:[%s3232 + $0x30] sm:$0xff]
        %v3240 = vld [vmem:[%s3232 + $0x38] sm:$0xff]
        %v3241 = vld [vmem:[%s3232 + $0x40] sm:$0xff]
        %v3242 = vld [vmem:[%s3232 + $0x48] sm:$0xff]
        %v3243 = vld [vmem:[%s3232 + $0x50] sm:$0xff]
        %v3244 = vld [vmem:[%s3232 + $0x58] sm:$0xff]
        %v3245 = vld [vmem:[%s3232 + $0x60] sm:$0xff]
        %v3246 = vld [vmem:[%s3232 + $0x68] sm:$0xff]
        %v3247 = vld [vmem:[%s3232 + $0x70] sm:$0xff]
        %v3248 = vld [vmem:[%s3232 + $0x78] sm:$0xff]
        %v3249 = vld [vmem:[%s3232 + $0x80] sm:$0xff]
        %v3250 = vld [vmem:[%s3232 + $0x88] sm:$0xff]
        %v3251 = vld [vmem:[%s3232 + $0x90] sm:$0xff]
        %v3252 = vld [vmem:[%s3232 + $0x98] sm:$0xff]
        %v3253 = vld [vmem:[%s3232 + $0xa0] sm:$0xff]
        %v3254 = vld [vmem:[%s3232 + $0xa8] sm:$0xff]
        %v3255 = vld [vmem:[%s3232 + $0xb0] sm:$0xff]
        %v3256 = vld [vmem:[%s3232 + $0xb8] sm:$0xff]
        %v3257 = vld [vmem:[%s3232 + $0xc0] sm:$0xff]
        %v3258 = vld [vmem:[%s3232 + $0xc8] sm:$0xff]
        %v3259 = vld [vmem:[%s3232 + $0xd0] sm:$0xff]
        %v3260 = vld [vmem:[%s3232 + $0xd8] sm:$0xff]
        %v3261 = vld [vmem:[%s3232 + $0xe0] sm:$0xff]
        %v3262 = vld [vmem:[%s3232 + $0xe8] sm:$0xff]
        %v3263 = vld [vmem:[%s3232 + $0xf0] sm:$0xff]
        %v3264 = vld [vmem:[%s3232 + $0xf8] sm:$0xff]
        %v3265 = vld [vmem:[%s3232 + $0x100] sm:$0xff]
        %v3266 = vld [vmem:[%s3232 + $0x108] sm:$0xff]
        %v3267 = vld [vmem:[%s3232 + $0x110] sm:$0xff]
        %v3268 = vld [vmem:[%s3232 + $0x118] sm:$0xff]
        %v3269 = vld [vmem:[%s3232 + $0x120] sm:$0xff]
        %v3270 = vld [vmem:[%s3232 + $0x128] sm:$0xff]
        %v3271 = vld [vmem:[%s3232 + $0x130] sm:$0xff]
        %v3272 = vld [vmem:[%s3232 + $0x138] sm:$0xff]
        %v3273 = vld [vmem:[%s3232 + $0x140] sm:$0x3]
        %v3274 = vld [vmem:[%s3232 + $0x148] sm:$0x3]
        %v3276 = vsel %vm2541, %v2455, 0
        %v3279 = vsel %vm2572, %v3273, 0
        %v3282 = vsel %vm2572, %v3274, 0
        %3284 = vmatprep.subr.mxu0 %v3234
        %3285 = vmatpush1.msra.mxu0 %v3233
        %3286 = vmatprep.subr.mxu0 %v3236
        %3287 = vmatpush1.msra.mxu0 %v3235
        %3288 = vmatprep.subr.mxu0 %v3238
        %3289 = vmatpush1.msra.mxu0 %v3237
        %3290 = vmatprep.subr.mxu0 %v3240
        %3291 = vmatpush1.msra.mxu0 %v3239
        %3292 = vmatprep.subr.mxu0 %v3242
        %3293 = vmatpush1.msra.mxu0 %v3241
        %3294 = vmatprep.subr.mxu0 %v3244
        %3295 = vmatpush1.msra.mxu0 %v3243
        %3296 = vmatprep.subr.mxu0 %v3246
        %3297 = vmatpush1.msra.mxu0 %v3245
        %3298 = vmatprep.subr.mxu0 %v3248
        %3299 = vmatpush1.msra.mxu0 %v3247
        %3300 = vmatprep.subr.mxu0 %v3250
        %3301 = vmatpush1.msra.mxu0 %v3249
        %3302 = vmatprep.subr.mxu0 %v3252
        %3303 = vmatpush1.msra.mxu0 %v3251
        %3304 = vmatprep.subr.mxu0 %v3254
        %3305 = vmatpush1.msra.mxu0 %v3253
        %3306 = vmatprep.subr.mxu0 %v3256
        %3307 = vmatpush1.msra.mxu0 %v3255
        %3308 = vmatprep.subr.mxu0 %v3258
        %3309 = vmatpush1.msra.mxu0 %v3257
        %3310 = vmatprep.subr.mxu0 %v3260
        %3311 = vmatpush1.msra.mxu0 %v3259
        %3312 = vmatprep.subr.mxu0 %v3262
        %3313 = vmatpush1.msra.mxu0 %v3261
        %3314 = vmatprep.subr.mxu0 %v3264
        %3315 = vmatpush1.msra.mxu0 %v3263
        %3316 = vmatprep.subr.mxu0 %v3266
        %3317 = vmatpush1.msra.mxu0 %v3265
        %3318 = vmatprep.subr.mxu0 %v3268
        %3319 = vmatpush1.msra.mxu0 %v3267
        %3320 = vmatprep.subr.mxu0 %v3270
        %3321 = vmatpush1.msra.mxu0 %v3269
        %3322 = vmatprep.subr.mxu0 %v3272
        %3323 = vmatpush1.msra.mxu0 %v3271
        %3324 = vmatprep.subr.mxu0 %v3282
        %3325 = vmatpush1.msra.mxu0 %v3279
        %3326 = vmatprep.subr.mxu0 0.0
        %3327 = vmatpush1.msra.mxu0 0.0
        %3328 = vmatprep.subr.mxu0 0.0
        %3329 = vmatpush1.msra.mxu0 0.0
        %3330 = vmatprep.subr.mxu0 0.0
        %3331 = vmatpush1.msra.mxu0 0.0
        %3332 = vmatprep.subr.mxu0 0.0
        %3333 = vmatpush1.msra.mxu0 0.0
        %3334 = vmatprep.subr.mxu0 0.0
        %3335 = vmatpush1.msra.mxu0 0.0
        %3336 = vmatprep.subr.mxu0 0.0
        %3337 = vmatpush1.msra.mxu0 0.0
        %3338 = vmatprep.subr.mxu0 0.0
        %3339 = vmatpush1.msra.mxu0 0.0
        %3340 = vmatprep.subr.mxu0 0.0
        %3341 = vmatpush1.msra.mxu0 0.0
        %3342 = vmatprep.subr.mxu0 0.0
        %3343 = vmatpush1.msra.mxu0 0.0
        %3344 = vmatprep.subr.mxu0 0.0
        %3345 = vmatpush1.msra.mxu0 0.0
        %3346 = vmatprep.subr.mxu0 0.0
        %3347 = vmatpush1.msra.mxu0 0.0
        %3348 = vmatprep.mubr.f32.mxu0 %v2552
        %3349 = vmatmul.mubr.f32.gmra.mrb[0].mxu0 %v2436
        %v3350 = vpop.f32.mrb[0].mxu0
        %v3351 = vadd.f32 0.0, %v3350
        %v3352 = vpop.f32.mrb[0].mxu0
        %v3353 = vadd.f32 0.0, %v3352
        %3354 = vmatprep.mubr.f32.mxu0 %v2555
        %3355 = vmatmul.mubr.f32.gmra.mrb[0].mxu0 %v2438
        %v3356 = vpop.f32.mrb[0].mxu0
        %v3357 = vadd.f32 0.0, %v3356
        %v3358 = vpop.f32.mrb[0].mxu0
        %v3359 = vadd.f32 0.0, %v3358
        %3360 = vmatprep.mubr.f32.mxu0 %v2558
        %3361 = vmatmul.mubr.f32.gmra.mrb[0].mxu0 %v2440
        %v3362 = vpop.f32.mrb[0].mxu0
        %v3363 = vadd.f32 0.0, %v3362
        %v3364 = vpop.f32.mrb[0].mxu0
        %v3365 = vadd.f32 0.0, %v3364
        %3366 = vmatprep.mubr.f32.mxu0 %v2561
        %3367 = vmatmul.mubr.f32.gmra.mrb[0].mxu0 %v2442
        %v3368 = vpop.f32.mrb[0].mxu0
        %v3369 = vadd.f32 0.0, %v3368
        %v3370 = vpop.f32.mrb[0].mxu0
        %v3371 = vadd.f32 0.0, %v3370
        %3372 = vmatprep.mubr.f32.mxu0 %v2564
        %3373 = vmatmul.mubr.f32.gmra.mrb[0].mxu0 %v2444
        %v3374 = vpop.f32.mrb[0].mxu0
        %v3375 = vadd.f32 0.0, %v3374
        %v3376 = vpop.f32.mrb[0].mxu0
        %v3377 = vadd.f32 0.0, %v3376
        %3378 = vmatprep.mubr.f32.mxu0 %v2567
        %3379 = vmatmul.mubr.f32.gmra.mrb[0].mxu0 %v2446
        %v3380 = vpop.f32.mrb[0].mxu0
        %v3381 = vadd.f32 0.0, %v3380
        %v3382 = vpop.f32.mrb[0].mxu0
        %v3383 = vadd.f32 0.0, %v3382
        %3384 = vmatprep.mubr.f32.mxu0 %v2570
        %3385 = vmatmul.mubr.f32.gmra.mrb[0].mxu0 %v2448
        %v3386 = vpop.f32.mrb[0].mxu0
        %v3387 = vadd.f32 0.0, %v3386
        %v3388 = vpop.f32.mrb[0].mxu0
        %v3389 = vadd.f32 0.0, %v3388
        %3390 = vmatprep.mubr.f32.mxu0 %v2882
        %3391 = vmatmul.mubr.f32.gmra.mrb[0].mxu0 %v2450
        %v3392 = vpop.f32.mrb[0].mxu0
        %v3393 = vadd.f32 0.0, %v3392
        %v3394 = vpop.f32.mrb[0].mxu0
        %v3395 = vadd.f32 0.0, %v3394
        %3396 = vmatprep.mubr.f32.mxu0 %v3079
        %3397 = vmatmul.mubr.f32.gmra.mrb[0].mxu0 %v2452
        %v3398 = vpop.f32.mrb[0].mxu0
        %v3399 = vadd.f32 0.0, %v3398
        %v3400 = vpop.f32.mrb[0].mxu0
        %v3401 = vadd.f32 0.0, %v3400
        %3402 = vmatprep.mubr.f32.mxu0 %v3276
        %3403 = vmatmul.mubr.f32.gmra.mrb[0].mxu0 %v2454
        %v3404 = vpop.f32.mrb[0].mxu0
        %v3405 = vadd.f32 0.0, %v3404
        %v3406 = vpop.f32.mrb[0].mxu0
        %v3407 = vadd.f32 0.0, %v3406
        %3408 = vdwg.mxu0
        %v3409 = vadd.f32 %v3212, %v3351
        %v3410 = vadd.f32 %v3213, %v3353
        %v3411 = vadd.f32 %v3214, %v3357
        %v3412 = vadd.f32 %v3215, %v3359
        %v3413 = vadd.f32 %v3216, %v3363
        %v3414 = vadd.f32 %v3217, %v3365
        %v3415 = vadd.f32 %v3218, %v3369
        %v3416 = vadd.f32 %v3219, %v3371
        %v3417 = vadd.f32 %v3220, %v3375
        %v3418 = vadd.f32 %v3221, %v3377
        %v3419 = vadd.f32 %v3222, %v3381
        %v3420 = vadd.f32 %v3223, %v3383
        %v3421 = vadd.f32 %v3224, %v3387
        %v3422 = vadd.f32 %v3225, %v3389
        %v3423 = vadd.f32 %v3226, %v3393
        %v3424 = vadd.f32 %v3227, %v3395
        %v3425 = vadd.f32 %v3228, %v3399
        %v3426 = vadd.f32 %v3229, %v3401
        %v3427 = vadd.f32 %v3230, %v3405
        %v3428 = vadd.f32 %v3231, %v3407
        %v3429 = vld [vmem:[%s4] sm:$0x3]
        %v3431 = vlaneseq
        %v3432 = vshrl.u32 %v3431, 7
        %v3433 = vsub.s32 0, %v3432
        %v3434 = vrot.slane %v3429, %v3433
        %v3435 = vlaneseq
        %v3436 = vshrl.u32 %v3435, 7
        %v3437 = vsub.s32 1, %v3436
        %v3438 = vrot.slane %v3429, %v3437
        %v3441 = vadd.f32 %v3409, %v3434
        %v3442 = vadd.f32 %v3410, %v3438
        %v3443 = vadd.f32 %v3411, %v3434
        %v3444 = vadd.f32 %v3412, %v3438
        %v3445 = vadd.f32 %v3413, %v3434
        %v3446 = vadd.f32 %v3414, %v3438
        %v3447 = vadd.f32 %v3415, %v3434
        %v3448 = vadd.f32 %v3416, %v3438
        %v3449 = vadd.f32 %v3417, %v3434
        %v3450 = vadd.f32 %v3418, %v3438
        %v3451 = vadd.f32 %v3419, %v3434
        %v3452 = vadd.f32 %v3420, %v3438
        %v3453 = vadd.f32 %v3421, %v3434
        %v3454 = vadd.f32 %v3422, %v3438
        %v3455 = vadd.f32 %v3423, %v3434
        %v3456 = vadd.f32 %v3424, %v3438
        %v3457 = vadd.f32 %v3425, %v3434
        %v3458 = vadd.f32 %v3426, %v3438
        %v3459 = vadd.f32 %v3427, %v3434
        %v3460 = vadd.f32 %v3428, %v3438
        %v3461 = vmax.f32 %v3441, 0.0
        %v3462 = vmax.f32 %v3442, 0.0
        %v3463 = vmax.f32 %v3443, 0.0
        %v3464 = vmax.f32 %v3444, 0.0
        %v3465 = vmax.f32 %v3445, 0.0
        %v3466 = vmax.f32 %v3446, 0.0
        %v3467 = vmax.f32 %v3447, 0.0
        %v3468 = vmax.f32 %v3448, 0.0
        %v3469 = vmax.f32 %v3449, 0.0
        %v3470 = vmax.f32 %v3450, 0.0
        %v3471 = vmax.f32 %v3451, 0.0
        %v3472 = vmax.f32 %v3452, 0.0
        %v3473 = vmax.f32 %v3453, 0.0
        %v3474 = vmax.f32 %v3454, 0.0
        %v3475 = vmax.f32 %v3455, 0.0
        %v3476 = vmax.f32 %v3456, 0.0
        %v3477 = vmax.f32 %v3457, 0.0
        %v3478 = vmax.f32 %v3458, 0.0
        %v3479 = vmax.f32 %v3459, 0.0
        %v3480 = vmax.f32 %v3460, 0.0
        %3501 = vrot.lane.b32.xlu0 %v3461, 112
        %v3502 = vpop.permute.xlu0 %3501
        %3503 = vrot.lane.b32.xlu0 %v3462, 112
        %v3504 = vpop.permute.xlu0 %3503
        %3505 = vrot.lane.b32.xlu0 %v3463, 112
        %v3506 = vpop.permute.xlu0 %3505
        %3507 = vrot.lane.b32.xlu0 %v3464, 112
        %v3508 = vpop.permute.xlu0 %3507
        %3509 = vrot.lane.b32.xlu0 %v3465, 112
        %v3510 = vpop.permute.xlu0 %3509
        %3511 = vrot.lane.b32.xlu0 %v3466, 112
        %v3512 = vpop.permute.xlu0 %3511
        %3513 = vrot.lane.b32.xlu0 %v3467, 112
        %v3514 = vpop.permute.xlu0 %3513
        %3515 = vrot.lane.b32.xlu0 %v3468, 112
        %v3516 = vpop.permute.xlu0 %3515
        %3517 = vrot.lane.b32.xlu0 %v3469, 112
        %v3518 = vpop.permute.xlu0 %3517
        %3519 = vrot.lane.b32.xlu0 %v3470, 112
        %v3520 = vpop.permute.xlu0 %3519
        %3521 = vrot.lane.b32.xlu0 %v3471, 112
        %v3522 = vpop.permute.xlu0 %3521
        %3523 = vrot.lane.b32.xlu0 %v3472, 112
        %v3524 = vpop.permute.xlu0 %3523
        %3525 = vrot.lane.b32.xlu0 %v3473, 112
        %v3526 = vpop.permute.xlu0 %3525
        %3527 = vrot.lane.b32.xlu0 %v3474, 112
        %v3528 = vpop.permute.xlu0 %3527
        %3529 = vrot.lane.b32.xlu0 %v3475, 112
        %v3530 = vpop.permute.xlu0 %3529
        %3531 = vrot.lane.b32.xlu0 %v3476, 112
        %v3532 = vpop.permute.xlu0 %3531
        %3533 = vrot.lane.b32.xlu0 %v3477, 112
        %v3534 = vpop.permute.xlu0 %3533
        %3535 = vrot.lane.b32.xlu0 %v3478, 112
        %v3536 = vpop.permute.xlu0 %3535
        %3537 = vrot.lane.b32.xlu0 %v3479, 112
        %v3538 = vpop.permute.xlu0 %3537
        %3539 = vrot.lane.b32.xlu0 %v3480, 112
        %v3540 = vpop.permute.xlu0 %3539
        %vm3541 = vcmask 916480
        %v3542 = vsel %vm3541, %v3502, %v3504
        %v3543 = vsel %vm3541, %v3506, %v3508
        %v3544 = vsel %vm3541, %v3510, %v3512
        %v3545 = vsel %vm3541, %v3514, %v3516
        %v3546 = vsel %vm3541, %v3518, %v3520
        %v3547 = vsel %vm3541, %v3522, %v3524
        %v3548 = vsel %vm3541, %v3526, %v3528
        %v3549 = vsel %vm3541, %v3530, %v3532
        %v3550 = vsel %vm3541, %v3534, %v3536
        %v3551 = vsel %vm3541, %v3538, %v3540
        %v3572 = vmax.f32 %v3461, %v3542
        %v3573 = vmax.f32 %v3462, %v3504
        %v3574 = vmax.f32 %v3463, %v3543
        %v3575 = vmax.f32 %v3464, %v3508
        %v3576 = vmax.f32 %v3465, %v3544
        %v3577 = vmax.f32 %v3466, %v3512
        %v3578 = vmax.f32 %v3467, %v3545
        %v3579 = vmax.f32 %v3468, %v3516
        %v3580 = vmax.f32 %v3469, %v3546
        %v3581 = vmax.f32 %v3470, %v3520
        %v3582 = vmax.f32 %v3471, %v3547
        %v3583 = vmax.f32 %v3472, %v3524
        %v3584 = vmax.f32 %v3473, %v3548
        %v3585 = vmax.f32 %v3474, %v3528
        %v3586 = vmax.f32 %v3475, %v3549
        %v3587 = vmax.f32 %v3476, %v3532
        %v3588 = vmax.f32 %v3477, %v3550
        %v3589 = vmax.f32 %v3478, %v3536
        %v3590 = vmax.f32 %v3479, %v3551
        %v3591 = vmax.f32 %v3480, %v3540
        %v3592 = vmax.f32 %v3572, %v3574
        %v3593 = vmax.f32 %v3573, %v3575
        %v3594 = vmax.f32 %v3576, %v3578
        %v3595 = vmax.f32 %v3577, %v3579
        %v3596 = vmax.f32 %v3580, %v3582
        %v3597 = vmax.f32 %v3581, %v3583
        %v3598 = vmax.f32 %v3584, %v3586
        %v3599 = vmax.f32 %v3585, %v3587
        %v3600 = vmax.f32 %v3588, %v3590
        %v3601 = vmax.f32 %v3589, %v3591
        %v3602 = vld [vmem:[%s5] sm:$0xff]
        %v3603 = vld [vmem:[%s5 + $0x8] sm:$0xff]
        %v3604 = vld [vmem:[%s5 + $0x10] sm:$0xff]
        %v3605 = vld [vmem:[%s5 + $0x18] sm:$0xff]
        %v3606 = vld [vmem:[%s5 + $0x20] sm:$0xff]
        %v3607 = vld [vmem:[%s5 + $0x28] sm:$0xff]
        %v3608 = vld [vmem:[%s5 + $0x30] sm:$0xff]
        %v3609 = vld [vmem:[%s5 + $0x38] sm:$0xff]
        %v3610 = vld [vmem:[%s5 + $0x40] sm:$0xff]
        %v3611 = vld [vmem:[%s5 + $0x48] sm:$0xff]
        %v3612 = vld [vmem:[%s5 + $0x50] sm:$0xff]
        %v3613 = vld [vmem:[%s5 + $0x58] sm:$0xff]
        %v3614 = vld [vmem:[%s5 + $0x60] sm:$0xff]
        %v3615 = vld [vmem:[%s5 + $0x68] sm:$0xff]
        %v3616 = vld [vmem:[%s5 + $0x70] sm:$0xff]
        %v3617 = vld [vmem:[%s5 + $0x78] sm:$0xff]
        %v3618 = vld [vmem:[%s5 + $0x80] sm:$0xff]
        %v3619 = vld [vmem:[%s5 + $0x88] sm:$0xff]
        %s3620 = scalar_lea.vmem %s5, 144
        %v3621 = vld [vmem:[%s3620] sm:$0xff]
        %v3622 = vld [vmem:[%s3620 + $0x8] sm:$0xff]
        %v3623 = vld [vmem:[%s3620 + $0x10] sm:$0xff]
        %v3624 = vld [vmem:[%s3620 + $0x18] sm:$0xff]
        %v3625 = vld [vmem:[%s3620 + $0x20] sm:$0xff]
        %v3626 = vld [vmem:[%s3620 + $0x28] sm:$0xff]
        %v3627 = vld [vmem:[%s3620 + $0x30] sm:$0xff]
        %v3628 = vld [vmem:[%s3620 + $0x38] sm:$0xff]
        %v3629 = vld [vmem:[%s3620 + $0x40] sm:$0xff]
        %v3630 = vld [vmem:[%s3620 + $0x48] sm:$0xff]
        %v3631 = vld [vmem:[%s3620 + $0x50] sm:$0xff]
        %v3632 = vld [vmem:[%s3620 + $0x58] sm:$0xff]
        %v3633 = vld [vmem:[%s3620 + $0x60] sm:$0xff]
        %v3634 = vld [vmem:[%s3620 + $0x68] sm:$0xff]
        %v3635 = vld [vmem:[%s3620 + $0x70] sm:$0xff]
        %v3636 = vld [vmem:[%s3620 + $0x78] sm:$0xff]
        %v3637 = vld [vmem:[%s3620 + $0x80] sm:$0xff]
        %v3638 = vld [vmem:[%s3620 + $0x88] sm:$0xff]
        %vm3639 = vcmask 130048
        %v3641 = vsel %vm3639, %v3595, 0
        %3643 = vmatprep.subr.mxu0 0.0
        %3644 = vmatpush1.msra.mxu0 %v3621
        %3645 = vmatprep.subr.mxu0 0.0
        %3646 = vmatpush1.msra.mxu0 %v3622
        %3647 = vmatprep.subr.mxu0 0.0
        %3648 = vmatpush1.msra.mxu0 %v3623
        %3649 = vmatprep.subr.mxu0 0.0
        %3650 = vmatpush1.msra.mxu0 %v3624
        %3651 = vmatprep.subr.mxu0 0.0
        %3652 = vmatpush1.msra.mxu0 %v3625
        %3653 = vmatprep.subr.mxu0 0.0
        %3654 = vmatpush1.msra.mxu0 %v3626
        %3655 = vmatprep.subr.mxu0 0.0
        %3656 = vmatpush1.msra.mxu0 %v3627
        %3657 = vmatprep.subr.mxu0 0.0
        %3658 = vmatpush1.msra.mxu0 %v3628
        %3659 = vmatprep.subr.mxu0 0.0
        %3660 = vmatpush1.msra.mxu0 %v3629
        %3661 = vmatprep.subr.mxu0 0.0
        %3662 = vmatpush1.msra.mxu0 %v3630
        %3663 = vmatprep.subr.mxu0 0.0
        %3664 = vmatpush1.msra.mxu0 %v3631
        %3665 = vmatprep.subr.mxu0 0.0
        %3666 = vmatpush1.msra.mxu0 %v3632
        %3667 = vmatprep.subr.mxu0 0.0
        %3668 = vmatpush1.msra.mxu0 %v3633
        %3669 = vmatprep.subr.mxu0 0.0
        %3670 = vmatpush1.msra.mxu0 %v3634
        %3671 = vmatprep.subr.mxu0 0.0
        %3672 = vmatpush1.msra.mxu0 %v3635
        %3673 = vmatprep.subr.mxu0 0.0
        %3674 = vmatpush1.msra.mxu0 %v3636
        %3675 = vmatprep.subr.mxu0 0.0
        %3676 = vmatpush1.msra.mxu0 %v3637
        %3677 = vmatprep.subr.mxu0 0.0
        %3678 = vmatpush1.msra.mxu0 %v3638
        %3679 = vmatprep.subr.mxu0 0.0
        %3680 = vmatpush1.msra.mxu0 0.0
        %3681 = vmatprep.subr.mxu0 0.0
        %3682 = vmatpush1.msra.mxu0 0.0
        %3683 = vmatprep.subr.mxu0 0.0
        %3684 = vmatpush1.msra.mxu0 0.0
        %3685 = vmatprep.subr.mxu0 0.0
        %3686 = vmatpush1.msra.mxu0 0.0
        %3687 = vmatprep.subr.mxu0 0.0
        %3688 = vmatpush1.msra.mxu0 0.0
        %3689 = vmatprep.subr.mxu0 0.0
        %3690 = vmatpush1.msra.mxu0 0.0
        %3691 = vmatprep.subr.mxu0 0.0
        %3692 = vmatpush1.msra.mxu0 0.0
        %3693 = vmatprep.subr.mxu0 0.0
        %3694 = vmatpush1.msra.mxu0 0.0
        %3695 = vmatprep.subr.mxu0 0.0
        %3696 = vmatpush1.msra.mxu0 0.0
        %3697 = vmatprep.subr.mxu0 0.0
        %3698 = vmatpush1.msra.mxu0 0.0
        %3699 = vmatprep.subr.mxu0 0.0
        %3700 = vmatpush1.msra.mxu0 0.0
        %3701 = vmatprep.subr.mxu0 0.0
        %3702 = vmatpush1.msra.mxu0 0.0
        %3703 = vmatprep.subr.mxu0 0.0
        %3704 = vmatpush1.msra.mxu0 0.0
        %3705 = vmatprep.subr.mxu0 0.0
        %3706 = vmatpush1.msra.mxu0 0.0
        %3707 = vmatprep.mubr.f32.mxu0 %v3641
        %3708 = vmatmul.mubr.f32.gmra.mrb[0].mxu0 %v3594
        %v3709 = vpop.f32.mrb[0].mxu0
        %v3710 = vadd.f32 0.0, %v3709
        %v3711 = vpop.f32.mrb[0].mxu0
        %3712 = vdwg.mxu0
        %v3714 = vsel %vm3639, %v3593, 0
        %3716 = vmatprep.subr.mxu0 0.0
        %3717 = vmatpush1.msra.mxu0 %v3602
        %3718 = vmatprep.subr.mxu0 0.0
        %3719 = vmatpush1.msra.mxu0 %v3603
        %3720 = vmatprep.subr.mxu0 0.0
        %3721 = vmatpush1.msra.mxu0 %v3604
        %3722 = vmatprep.subr.mxu0 0.0
        %3723 = vmatpush1.msra.mxu0 %v3605
        %3724 = vmatprep.subr.mxu0 0.0
        %3725 = vmatpush1.msra.mxu0 %v3606
        %3726 = vmatprep.subr.mxu0 0.0
        %3727 = vmatpush1.msra.mxu0 %v3607
        %3728 = vmatprep.subr.mxu0 0.0
        %3729 = vmatpush1.msra.mxu0 %v3608
        %3730 = vmatprep.subr.mxu0 0.0
        %3731 = vmatpush1.msra.mxu0 %v3609
        %3732 = vmatprep.subr.mxu0 0.0
        %3733 = vmatpush1.msra.mxu0 %v3610
        %3734 = vmatprep.subr.mxu0 0.0
        %3735 = vmatpush1.msra.mxu0 %v3611
        %3736 = vmatprep.subr.mxu0 0.0
        %3737 = vmatpush1.msra.mxu0 %v3612
        %3738 = vmatprep.subr.mxu0 0.0
        %3739 = vmatpush1.msra.mxu0 %v3613
        %3740 = vmatprep.subr.mxu0 0.0
        %3741 = vmatpush1.msra.mxu0 %v3614
        %3742 = vmatprep.subr.mxu0 0.0
        %3743 = vmatpush1.msra.mxu0 %v3615
        %3744 = vmatprep.subr.mxu0 0.0
        %3745 = vmatpush1.msra.mxu0 %v3616
        %3746 = vmatprep.subr.mxu0 0.0
        %3747 = vmatpush1.msra.mxu0 %v3617
        %3748 = vmatprep.subr.mxu0 0.0
        %3749 = vmatpush1.msra.mxu0 %v3618
        %3750 = vmatprep.subr.mxu0 0.0
        %3751 = vmatpush1.msra.mxu0 %v3619
        %3752 = vmatprep.subr.mxu0 0.0
        %3753 = vmatpush1.msra.mxu0 0.0
        %3754 = vmatprep.subr.mxu0 0.0
        %3755 = vmatpush1.msra.mxu0 0.0
        %3756 = vmatprep.subr.mxu0 0.0
        %3757 = vmatpush1.msra.mxu0 0.0
        %3758 = vmatprep.subr.mxu0 0.0
        %3759 = vmatpush1.msra.mxu0 0.0
        %3760 = vmatprep.subr.mxu0 0.0
        %3761 = vmatpush1.msra.mxu0 0.0
        %3762 = vmatprep.subr.mxu0 0.0
        %3763 = vmatpush1.msra.mxu0 0.0
        %3764 = vmatprep.subr.mxu0 0.0
        %3765 = vmatpush1.msra.mxu0 0.0
        %3766 = vmatprep.subr.mxu0 0.0
        %3767 = vmatpush1.msra.mxu0 0.0
        %3768 = vmatprep.subr.mxu0 0.0
        %3769 = vmatpush1.msra.mxu0 0.0
        %3770 = vmatprep.subr.mxu0 0.0
        %3771 = vmatpush1.msra.mxu0 0.0
        %3772 = vmatprep.subr.mxu0 0.0
        %3773 = vmatpush1.msra.mxu0 0.0
        %3774 = vmatprep.subr.mxu0 0.0
        %3775 = vmatpush1.msra.mxu0 0.0
        %3776 = vmatprep.subr.mxu0 0.0
        %3777 = vmatpush1.msra.mxu0 0.0
        %3778 = vmatprep.subr.mxu0 0.0
        %3779 = vmatpush1.msra.mxu0 0.0
        %3780 = vmatprep.mubr.f32.mxu0 %v3714
        %3781 = vmatmul.mubr.f32.gmra.mrb[0].mxu0 %v3592
        %v3782 = vpop.f32.mrb[0].mxu0
        %v3783 = vadd.f32 %v3710, %v3782
        %v3784 = vpop.f32.mrb[0].mxu0
        %3785 = vdwg.mxu0
        %s3786 = scalar_lea.vmem %s5, 288
        %v3787 = vld [vmem:[%s3786] sm:$0xff]
        %v3788 = vld [vmem:[%s3786 + $0x8] sm:$0xff]
        %v3789 = vld [vmem:[%s3786 + $0x10] sm:$0xff]
        %v3790 = vld [vmem:[%s3786 + $0x18] sm:$0xff]
        %v3791 = vld [vmem:[%s3786 + $0x20] sm:$0xff]
        %v3792 = vld [vmem:[%s3786 + $0x28] sm:$0xff]
        %v3793 = vld [vmem:[%s3786 + $0x30] sm:$0xff]
        %v3794 = vld [vmem:[%s3786 + $0x38] sm:$0xff]
        %v3795 = vld [vmem:[%s3786 + $0x40] sm:$0xff]
        %v3796 = vld [vmem:[%s3786 + $0x48] sm:$0xff]
        %v3797 = vld [vmem:[%s3786 + $0x50] sm:$0xff]
        %v3798 = vld [vmem:[%s3786 + $0x58] sm:$0xff]
        %v3799 = vld [vmem:[%s3786 + $0x60] sm:$0xff]
        %v3800 = vld [vmem:[%s3786 + $0x68] sm:$0xff]
        %v3801 = vld [vmem:[%s3786 + $0x70] sm:$0xff]
        %v3802 = vld [vmem:[%s3786 + $0x78] sm:$0xff]
        %v3803 = vld [vmem:[%s3786 + $0x80] sm:$0xff]
        %v3804 = vld [vmem:[%s3786 + $0x88] sm:$0xff]
        %v3806 = vsel %vm3639, %v3597, 0
        %3808 = vmatprep.subr.mxu0 0.0
        %3809 = vmatpush1.msra.mxu0 %v3787
        %3810 = vmatprep.subr.mxu0 0.0
        %3811 = vmatpush1.msra.mxu0 %v3788
        %3812 = vmatprep.subr.mxu0 0.0
        %3813 = vmatpush1.msra.mxu0 %v3789
        %3814 = vmatprep.subr.mxu0 0.0
        %3815 = vmatpush1.msra.mxu0 %v3790
        %3816 = vmatprep.subr.mxu0 0.0
        %3817 = vmatpush1.msra.mxu0 %v3791
        %3818 = vmatprep.subr.mxu0 0.0
        %3819 = vmatpush1.msra.mxu0 %v3792
        %3820 = vmatprep.subr.mxu0 0.0
        %3821 = vmatpush1.msra.mxu0 %v3793
        %3822 = vmatprep.subr.mxu0 0.0
        %3823 = vmatpush1.msra.mxu0 %v3794
        %3824 = vmatprep.subr.mxu0 0.0
        %3825 = vmatpush1.msra.mxu0 %v3795
        %3826 = vmatprep.subr.mxu0 0.0
        %3827 = vmatpush1.msra.mxu0 %v3796
        %3828 = vmatprep.subr.mxu0 0.0
        %3829 = vmatpush1.msra.mxu0 %v3797
        %3830 = vmatprep.subr.mxu0 0.0
        %3831 = vmatpush1.msra.mxu0 %v3798
        %3832 = vmatprep.subr.mxu0 0.0
        %3833 = vmatpush1.msra.mxu0 %v3799
        %3834 = vmatprep.subr.mxu0 0.0
        %3835 = vmatpush1.msra.mxu0 %v3800
        %3836 = vmatprep.subr.mxu0 0.0
        %3837 = vmatpush1.msra.mxu0 %v3801
        %3838 = vmatprep.subr.mxu0 0.0
        %3839 = vmatpush1.msra.mxu0 %v3802
        %3840 = vmatprep.subr.mxu0 0.0
        %3841 = vmatpush1.msra.mxu0 %v3803
        %3842 = vmatprep.subr.mxu0 0.0
        %3843 = vmatpush1.msra.mxu0 %v3804
        %3844 = vmatprep.subr.mxu0 0.0
        %3845 = vmatpush1.msra.mxu0 0.0
        %3846 = vmatprep.subr.mxu0 0.0
        %3847 = vmatpush1.msra.mxu0 0.0
        %3848 = vmatprep.subr.mxu0 0.0
        %3849 = vmatpush1.msra.mxu0 0.0
        %3850 = vmatprep.subr.mxu0 0.0
        %3851 = vmatpush1.msra.mxu0 0.0
        %3852 = vmatprep.subr.mxu0 0.0
        %3853 = vmatpush1.msra.mxu0 0.0
        %3854 = vmatprep.subr.mxu0 0.0
        %3855 = vmatpush1.msra.mxu0 0.0
        %3856 = vmatprep.subr.mxu0 0.0
        %3857 = vmatpush1.msra.mxu0 0.0
        %3858 = vmatprep.subr.mxu0 0.0
        %3859 = vmatpush1.msra.mxu0 0.0
        %3860 = vmatprep.subr.mxu0 0.0
        %3861 = vmatpush1.msra.mxu0 0.0
        %3862 = vmatprep.subr.mxu0 0.0
        %3863 = vmatpush1.msra.mxu0 0.0
        %3864 = vmatprep.subr.mxu0 0.0
        %3865 = vmatpush1.msra.mxu0 0.0
        %3866 = vmatprep.subr.mxu0 0.0
        %3867 = vmatpush1.msra.mxu0 0.0
        %3868 = vmatprep.subr.mxu0 0.0
        %3869 = vmatpush1.msra.mxu0 0.0
        %3870 = vmatprep.subr.mxu0 0.0
        %3871 = vmatpush1.msra.mxu0 0.0
        %3872 = vmatprep.mubr.f32.mxu0 %v3806
        %3873 = vmatmul.mubr.f32.gmra.mrb[0].mxu0 %v3596
        %v3874 = vpop.f32.mrb[0].mxu0
        %v3875 = vadd.f32 0.0, %v3874
        %v3876 = vpop.f32.mrb[0].mxu0
        %3877 = vdwg.mxu0
        %v3878 = vadd.f32 %v3783, %v3875
        %s3879 = scalar_lea.vmem %s5, 432
        %v3880 = vld [vmem:[%s3879] sm:$0xff]
        %v3881 = vld [vmem:[%s3879 + $0x8] sm:$0xff]
        %v3882 = vld [vmem:[%s3879 + $0x10] sm:$0xff]
        %v3883 = vld [vmem:[%s3879 + $0x18] sm:$0xff]
        %v3884 = vld [vmem:[%s3879 + $0x20] sm:$0xff]
        %v3885 = vld [vmem:[%s3879 + $0x28] sm:$0xff]
        %v3886 = vld [vmem:[%s3879 + $0x30] sm:$0xff]
        %v3887 = vld [vmem:[%s3879 + $0x38] sm:$0xff]
        %v3888 = vld [vmem:[%s3879 + $0x40] sm:$0xff]
        %v3889 = vld [vmem:[%s3879 + $0x48] sm:$0xff]
        %v3890 = vld [vmem:[%s3879 + $0x50] sm:$0xff]
        %v3891 = vld [vmem:[%s3879 + $0x58] sm:$0xff]
        %v3892 = vld [vmem:[%s3879 + $0x60] sm:$0xff]
        %v3893 = vld [vmem:[%s3879 + $0x68] sm:$0xff]
        %v3894 = vld [vmem:[%s3879 + $0x70] sm:$0xff]
        %v3895 = vld [vmem:[%s3879 + $0x78] sm:$0xff]
        %v3896 = vld [vmem:[%s3879 + $0x80] sm:$0xff]
        %v3897 = vld [vmem:[%s3879 + $0x88] sm:$0xff]
        %v3899 = vsel %vm3639, %v3599, 0
        %3901 = vmatprep.subr.mxu0 0.0
        %3902 = vmatpush1.msra.mxu0 %v3880
        %3903 = vmatprep.subr.mxu0 0.0
        %3904 = vmatpush1.msra.mxu0 %v3881
        %3905 = vmatprep.subr.mxu0 0.0
        %3906 = vmatpush1.msra.mxu0 %v3882
        %3907 = vmatprep.subr.mxu0 0.0
        %3908 = vmatpush1.msra.mxu0 %v3883
        %3909 = vmatprep.subr.mxu0 0.0
        %3910 = vmatpush1.msra.mxu0 %v3884
        %3911 = vmatprep.subr.mxu0 0.0
        %3912 = vmatpush1.msra.mxu0 %v3885
        %3913 = vmatprep.subr.mxu0 0.0
        %3914 = vmatpush1.msra.mxu0 %v3886
        %3915 = vmatprep.subr.mxu0 0.0
        %3916 = vmatpush1.msra.mxu0 %v3887
        %3917 = vmatprep.subr.mxu0 0.0
        %3918 = vmatpush1.msra.mxu0 %v3888
        %3919 = vmatprep.subr.mxu0 0.0
        %3920 = vmatpush1.msra.mxu0 %v3889
        %3921 = vmatprep.subr.mxu0 0.0
        %3922 = vmatpush1.msra.mxu0 %v3890
        %3923 = vmatprep.subr.mxu0 0.0
        %3924 = vmatpush1.msra.mxu0 %v3891
        %3925 = vmatprep.subr.mxu0 0.0
        %3926 = vmatpush1.msra.mxu0 %v3892
        %3927 = vmatprep.subr.mxu0 0.0
        %3928 = vmatpush1.msra.mxu0 %v3893
        %3929 = vmatprep.subr.mxu0 0.0
        %3930 = vmatpush1.msra.mxu0 %v3894
        %3931 = vmatprep.subr.mxu0 0.0
        %3932 = vmatpush1.msra.mxu0 %v3895
        %3933 = vmatprep.subr.mxu0 0.0
        %3934 = vmatpush1.msra.mxu0 %v3896
        %3935 = vmatprep.subr.mxu0 0.0
        %3936 = vmatpush1.msra.mxu0 %v3897
        %3937 = vmatprep.subr.mxu0 0.0
        %3938 = vmatpush1.msra.mxu0 0.0
        %3939 = vmatprep.subr.mxu0 0.0
        %3940 = vmatpush1.msra.mxu0 0.0
        %3941 = vmatprep.subr.mxu0 0.0
        %3942 = vmatpush1.msra.mxu0 0.0
        %3943 = vmatprep.subr.mxu0 0.0
        %3944 = vmatpush1.msra.mxu0 0.0
        %3945 = vmatprep.subr.mxu0 0.0
        %3946 = vmatpush1.msra.mxu0 0.0
        %3947 = vmatprep.subr.mxu0 0.0
        %3948 = vmatpush1.msra.mxu0 0.0
        %3949 = vmatprep.subr.mxu0 0.0
        %3950 = vmatpush1.msra.mxu0 0.0
        %3951 = vmatprep.subr.mxu0 0.0
        %3952 = vmatpush1.msra.mxu0 0.0
        %3953 = vmatprep.subr.mxu0 0.0
        %3954 = vmatpush1.msra.mxu0 0.0
        %3955 = vmatprep.subr.mxu0 0.0
        %3956 = vmatpush1.msra.mxu0 0.0
        %3957 = vmatprep.subr.mxu0 0.0
        %3958 = vmatpush1.msra.mxu0 0.0
        %3959 = vmatprep.subr.mxu0 0.0
        %3960 = vmatpush1.msra.mxu0 0.0
        %3961 = vmatprep.subr.mxu0 0.0
        %3962 = vmatpush1.msra.mxu0 0.0
        %3963 = vmatprep.subr.mxu0 0.0
        %3964 = vmatpush1.msra.mxu0 0.0
        %3965 = vmatprep.mubr.f32.mxu0 %v3899
        %3966 = vmatmul.mubr.f32.gmra.mrb[0].mxu0 %v3598
        %v3967 = vpop.f32.mrb[0].mxu0
        %v3968 = vadd.f32 0.0, %v3967
        %v3969 = vpop.f32.mrb[0].mxu0
        %3970 = vdwg.mxu0
        %v3971 = vadd.f32 %v3878, %v3968
        %s3972 = scalar_lea.vmem %s5, 576
        %v3973 = vld [vmem:[%s3972] sm:$0xff]
        %v3974 = vld [vmem:[%s3972 + $0x8] sm:$0xff]
        %v3975 = vld [vmem:[%s3972 + $0x10] sm:$0xff]
        %v3976 = vld [vmem:[%s3972 + $0x18] sm:$0xff]
        %v3977 = vld [vmem:[%s3972 + $0x20] sm:$0xff]
        %v3978 = vld [vmem:[%s3972 + $0x28] sm:$0xff]
        %v3979 = vld [vmem:[%s3972 + $0x30] sm:$0xff]
        %v3980 = vld [vmem:[%s3972 + $0x38] sm:$0xff]
        %v3981 = vld [vmem:[%s3972 + $0x40] sm:$0xff]
        %v3982 = vld [vmem:[%s3972 + $0x48] sm:$0xff]
        %v3983 = vld [vmem:[%s3972 + $0x50] sm:$0xff]
        %v3984 = vld [vmem:[%s3972 + $0x58] sm:$0xff]
        %v3985 = vld [vmem:[%s3972 + $0x60] sm:$0xff]
        %v3986 = vld [vmem:[%s3972 + $0x68] sm:$0xff]
        %v3987 = vld [vmem:[%s3972 + $0x70] sm:$0xff]
        %v3988 = vld [vmem:[%s3972 + $0x78] sm:$0xff]
        %v3989 = vld [vmem:[%s3972 + $0x80] sm:$0xff]
        %v3990 = vld [vmem:[%s3972 + $0x88] sm:$0xff]
        %v3992 = vsel %vm3639, %v3601, 0
        %3994 = vmatprep.subr.mxu0 0.0
        %3995 = vmatpush1.msra.mxu0 %v3973
        %3996 = vmatprep.subr.mxu0 0.0
        %3997 = vmatpush1.msra.mxu0 %v3974
        %3998 = vmatprep.subr.mxu0 0.0
        %3999 = vmatpush1.msra.mxu0 %v3975
        %4000 = vmatprep.subr.mxu0 0.0
        %4001 = vmatpush1.msra.mxu0 %v3976
        %4002 = vmatprep.subr.mxu0 0.0
        %4003 = vmatpush1.msra.mxu0 %v3977
        %4004 = vmatprep.subr.mxu0 0.0
        %4005 = vmatpush1.msra.mxu0 %v3978
        %4006 = vmatprep.subr.mxu0 0.0
        %4007 = vmatpush1.msra.mxu0 %v3979
        %4008 = vmatprep.subr.mxu0 0.0
        %4009 = vmatpush1.msra.mxu0 %v3980
        %4010 = vmatprep.subr.mxu0 0.0
        %4011 = vmatpush1.msra.mxu0 %v3981
        %4012 = vmatprep.subr.mxu0 0.0
        %4013 = vmatpush1.msra.mxu0 %v3982
        %4014 = vmatprep.subr.mxu0 0.0
        %4015 = vmatpush1.msra.mxu0 %v3983
        %4016 = vmatprep.subr.mxu0 0.0
        %4017 = vmatpush1.msra.mxu0 %v3984
        %4018 = vmatprep.subr.mxu0 0.0
        %4019 = vmatpush1.msra.mxu0 %v3985
        %4020 = vmatprep.subr.mxu0 0.0
        %4021 = vmatpush1.msra.mxu0 %v3986
        %4022 = vmatprep.subr.mxu0 0.0
        %4023 = vmatpush1.msra.mxu0 %v3987
        %4024 = vmatprep.subr.mxu0 0.0
        %4025 = vmatpush1.msra.mxu0 %v3988
        %4026 = vmatprep.subr.mxu0 0.0
        %4027 = vmatpush1.msra.mxu0 %v3989
        %4028 = vmatprep.subr.mxu0 0.0
        %4029 = vmatpush1.msra.mxu0 %v3990
        %4030 = vmatprep.subr.mxu0 0.0
        %4031 = vmatpush1.msra.mxu0 0.0
        %4032 = vmatprep.subr.mxu0 0.0
        %4033 = vmatpush1.msra.mxu0 0.0
        %4034 = vmatprep.subr.mxu0 0.0
        %4035 = vmatpush1.msra.mxu0 0.0
        %4036 = vmatprep.subr.mxu0 0.0
        %4037 = vmatpush1.msra.mxu0 0.0
        %4038 = vmatprep.subr.mxu0 0.0
        %4039 = vmatpush1.msra.mxu0 0.0
        %4040 = vmatprep.subr.mxu0 0.0
        %4041 = vmatpush1.msra.mxu0 0.0
        %4042 = vmatprep.subr.mxu0 0.0
        %4043 = vmatpush1.msra.mxu0 0.0
        %4044 = vmatprep.subr.mxu0 0.0
        %4045 = vmatpush1.msra.mxu0 0.0
        %4046 = vmatprep.subr.mxu0 0.0
        %4047 = vmatpush1.msra.mxu0 0.0
        %4048 = vmatprep.subr.mxu0 0.0
        %4049 = vmatpush1.msra.mxu0 0.0
        %4050 = vmatprep.subr.mxu0 0.0
        %4051 = vmatpush1.msra.mxu0 0.0
        %4052 = vmatprep.subr.mxu0 0.0
        %4053 = vmatpush1.msra.mxu0 0.0
        %4054 = vmatprep.subr.mxu0 0.0
        %4055 = vmatpush1.msra.mxu0 0.0
        %4056 = vmatprep.subr.mxu0 0.0
        %4057 = vmatpush1.msra.mxu0 0.0
        %4058 = vmatprep.mubr.f32.mxu0 %v3992
        %4059 = vmatmul.mubr.f32.gmra.mrb[0].mxu0 %v3600
        %v4060 = vpop.f32.mrb[0].mxu0
        %v4061 = vadd.f32 0.0, %v4060
        %v4062 = vpop.f32.mrb[0].mxu0
        %4063 = vdwg.mxu0
        %v4064 = vadd.f32 %v3971, %v4061
        %v4065 = vld [vmem:[%s6] sm:$0x1]
        %v4067 = vlaneseq
        %v4068 = vshrl.u32 %v4067, 7
        %v4069 = vsub.s32 0, %v4068
        %v4070 = vrot.slane %v4065, %v4069
        %v4072 = vadd.f32 %v4064, %v4070
        %v4073 = vmax.f32 %v4072, 0.0
        %v4074 = vld [vmem:[%s7] sm:$0xff]
        %v4075 = vld [vmem:[%s7 + $0x8] sm:$0xff]
        %v4076 = vld [vmem:[%s7 + $0x10] sm:$0xff]
        %v4077 = vld [vmem:[%s7 + $0x18] sm:$0xff]
        %v4078 = vld [vmem:[%s7 + $0x20] sm:$0xff]
        %v4079 = vld [vmem:[%s7 + $0x28] sm:$0xff]
        %v4080 = vld [vmem:[%s7 + $0x30] sm:$0xff]
        %v4081 = vld [vmem:[%s7 + $0x38] sm:$0xff]
        %v4082 = vld [vmem:[%s7 + $0x40] sm:$0xff]
        %v4083 = vld [vmem:[%s7 + $0x48] sm:$0xff]
        %v4084 = vld [vmem:[%s7 + $0x50] sm:$0xff]
        %v4085 = vld [vmem:[%s7 + $0x58] sm:$0xff]
        %v4086 = vld [vmem:[%s7 + $0x60] sm:$0xff]
        %v4087 = vld [vmem:[%s7 + $0x68] sm:$0xff]
        %v4088 = vld [vmem:[%s7 + $0x70] sm:$0xff]
        %v4089 = vld [vmem:[%s8] sm:$0x1]
        %v4091 = vlaneseq
        %v4092 = vshrl.u32 %v4091, 7
        %v4093 = vsub.s32 0, %v4092
        %v4094 = vrot.slane %v4089, %v4093
        %vm4096 = vcmask 982016
        %v4098 = vsel %vm4096, %v4073, 0
        %4100 = vmatprep.subr.mxu0 0.0
        %4101 = vmatpush1.msra.mxu0 %v4074
        %4102 = vmatprep.subr.mxu0 0.0
        %4103 = vmatpush1.msra.mxu0 %v4075
        %4104 = vmatprep.subr.mxu0 0.0
        %4105 = vmatpush1.msra.mxu0 %v4076
        %4106 = vmatprep.subr.mxu0 0.0
        %4107 = vmatpush1.msra.mxu0 %v4077
        %4108 = vmatprep.subr.mxu0 0.0
        %4109 = vmatpush1.msra.mxu0 %v4078
        %4110 = vmatprep.subr.mxu0 0.0
        %4111 = vmatpush1.msra.mxu0 %v4079
        %4112 = vmatprep.subr.mxu0 0.0
        %4113 = vmatpush1.msra.mxu0 %v4080
        %4114 = vmatprep.subr.mxu0 0.0
        %4115 = vmatpush1.msra.mxu0 %v4081
        %4116 = vmatprep.subr.mxu0 0.0
        %4117 = vmatpush1.msra.mxu0 %v4082
        %4118 = vmatprep.subr.mxu0 0.0
        %4119 = vmatpush1.msra.mxu0 %v4083
        %4120 = vmatprep.subr.mxu0 0.0
        %4121 = vmatpush1.msra.mxu0 %v4084
        %4122 = vmatprep.subr.mxu0 0.0
        %4123 = vmatpush1.msra.mxu0 %v4085
        %4124 = vmatprep.subr.mxu0 0.0
        %4125 = vmatpush1.msra.mxu0 %v4086
        %4126 = vmatprep.subr.mxu0 0.0
        %4127 = vmatpush1.msra.mxu0 %v4087
        %4128 = vmatprep.subr.mxu0 0.0
        %4129 = vmatpush1.msra.mxu0 %v4088
        %4130 = vmatprep.subr.mxu0 0.0
        %4131 = vmatpush1.msra.mxu0 0.0
        %4132 = vmatprep.subr.mxu0 0.0
        %4133 = vmatpush1.msra.mxu0 0.0
        %4134 = vmatprep.subr.mxu0 0.0
        %4135 = vmatpush1.msra.mxu0 0.0
        %4136 = vmatprep.subr.mxu0 0.0
        %4137 = vmatpush1.msra.mxu0 0.0
        %4138 = vmatprep.subr.mxu0 0.0
        %4139 = vmatpush1.msra.mxu0 0.0
        %4140 = vmatprep.subr.mxu0 0.0
        %4141 = vmatpush1.msra.mxu0 0.0
        %4142 = vmatprep.subr.mxu0 0.0
        %4143 = vmatpush1.msra.mxu0 0.0
        %4144 = vmatprep.subr.mxu0 0.0
        %4145 = vmatpush1.msra.mxu0 0.0
        %4146 = vmatprep.subr.mxu0 0.0
        %4147 = vmatpush1.msra.mxu0 0.0
        %4148 = vmatprep.subr.mxu0 0.0
        %4149 = vmatpush1.msra.mxu0 0.0
        %4150 = vmatprep.subr.mxu0 0.0
        %4151 = vmatpush1.msra.mxu0 0.0
        %4152 = vmatprep.subr.mxu0 0.0
        %4153 = vmatpush1.msra.mxu0 0.0
        %4154 = vmatprep.subr.mxu0 0.0
        %4155 = vmatpush1.msra.mxu0 0.0
        %4156 = vmatprep.subr.mxu0 0.0
        %4157 = vmatpush1.msra.mxu0 0.0
        %4158 = vmatprep.subr.mxu0 0.0
        %4159 = vmatpush1.msra.mxu0 0.0
        %4160 = vmatprep.subr.mxu0 0.0
        %4161 = vmatpush1.msra.mxu0 0.0
        %4162 = vmatprep.subr.mxu0 0.0
        %4163 = vmatpush1.msra.mxu0 0.0
        %4164 = vmatprep.mubr.f32.mxu0 0.0
        %4165 = vmatmul.mubr.f32.gmra.mrb[0].mxu0 %v4098
        %v4166 = vpop.f32.mrb[0].mxu0
        %v4167 = vadd.f32 %v4094, %v4166
        %v4168 = vpop.f32.mrb[0].mxu0
        %4169 = vdwg.mxu0
        %4170 = vst [vmem:[%s488] sm:$0xff] %v4167
        %s4171 = sand.u32 %s225, 1
        %s4172 = scalar_lea.sflag [#allocation4], %s4171
        %s4173 = sand.u32 %s225, 1
        %s4174 = smul.addr %s4173, 8
        %s4175 = scalar_lea.vmem [#allocation3], %s4174
        // Predicated region
        $region95: #{parallel_net_forward.1} parent=89 // pred_check
          %p4176 = pneg %p235
        $region96: #{parallel_net_forward.1} parent=89 // pred_check_branch
          %4178 = sbr.rel (%p4176) target = $region98
        $region97: #{parallel_net_forward.1} parent=89 // pred_region
          %s4180 = ssub.s32 128, 128
          %4181 = vsyncadd %s4172, %s4180
          %s4182 = smul.addr %s23, 128
          %s4183 = scalar_lea.hbm %s9, %s4182
          %s4185 = sshll.u32 %s4175, 4
          %s4186 = int_to_ptr.vmem [resolvable:$true] %s4185
          %4188 = dma.vmem_to_hbm [thread:$0]  %s4186, 128, %s4183, %s4172
        $region98: #{parallel_net_forward.1} parent=89 // pred_fallthru
          _
      $region90: #{parallel_net_forward.1} parent=5 // pred_fallthru
        _
      %p4189 = scmp.le.s32.totalorder 2, %s18
      // Predicated region
      $region99: #{parallel_net_forward.1} parent=5 // pred_check
        %p4190 = pneg %p4189
      $region100: #{parallel_net_forward.1} parent=5 // pred_check_branch
        %4192 = sbr.rel (%p4190) target = $region102
      $region101: #{parallel_net_forward.1} parent=5 // pred_region
        %s4193 = ssub.s32 %s18, 2
        // Predicated region
        $region103: #{parallel_net_forward.1} parent=101 // pred_check
          %p4194 = pneg %p241
        $region104: #{parallel_net_forward.1} parent=101 // pred_check_branch
          %4196 = sbr.rel (%p4194) target = $region106
        $region105: #{parallel_net_forward.1} parent=101 // pred_region
          %s4197 = sand.u32 %s226, 1
          %s4198 = scalar_lea.sflag [#allocation4], %s4197
          %s4199 = sand.u32 %s226, 1
          %s4200 = smul.addr %s4199, 8
          %s4201 = scalar_lea.vmem [#allocation3], %s4200
          %4202 = dma.done %s4198, 128
        $region106: #{parallel_net_forward.1} parent=101 // pred_fallthru
          _
      $region102: #{parallel_net_forward.1} parent=5 // pred_fallthru
        _
    $region6: #{parallel_net_forward.1} parent=1 // loop_footer
      %s22 = sadd.s32 1, %s18
    $region7: #{parallel_net_forward.1} parent=1 // loop_footer_branch
      %17 = sbr.rel target = $region3
    $region8: #{parallel_net_forward.1} parent=1 // loop_exit
      _
    %4203 = vsyncpa [#allocation4], 1
    %s4204 = scalar_lea.sflag [#allocation4], 1
    %4205 = vsyncpa %s4204, 1

</llo_original>
